<compile_context>
chip_gen: v6e
topology: v6e:2x2x1
jax: 0.10.0
libtpu: 0.0.40
codegen_flags: <defaults>
</compile_context>

<pallas_src>
import functools

import numpy as np
import jax
import jax.numpy as jnp
from jax.experimental import pallas as pl
from jax.experimental.pallas import tpu as pltpu

# (C, H, W). 66x66 is the smallest spatial size that survives the conv stack
# (three 5x5/stride-2 convs + two 3x3 convs, all valid padding).
IMG_SHAPE = (3, 66, 66)
LANE = 128

CONV_DEFS = [
    # name,   k, stride, cin, cout, elu-after
    ("conv1", 5, 2,       3,  24,  True),
    ("conv2", 5, 2,      24,  36,  True),
    ("conv3", 5, 2,      36,  48,  True),
    ("conv4", 3, 1,      48,  64,  True),
    ("conv5", 3, 1,      64,  64,  False),   # followed by Dropout (identity in eval)
]
FC_DEFS = [
    # name, fan_in, fan_out, elu-after   (fc1 fan_in = flatsize, filled at init)
    ("fc1", None, 100, True),
    ("fc2", 100,  50,  True),
    ("fc3", 50,   10,  False),
    ("fc4", 10,   1,   False),
]


def _round_up(x, m):
    return (x + m - 1) // m * m


def _choose_tm(m):
    """M-tile size: big tiles for big GEMMs, single 8-aligned block otherwise."""
    if m >= 1024:
        return 512
    if m >= 256:
        return 256
    return _round_up(max(m, 1), 8)


def _elu(x):
    # ELU(alpha=1): x if x > 0 else exp(x) - 1 (min() keeps the unselected branch finite)
    return jnp.where(x > 0, x, jnp.exp(jnp.minimum(x, 0.0)) - 1.0)


# ---------------------------------------------------------------------------
# Pallas kernel 1: tiled GEMM + bias (+ optional fused ELU)
# ---------------------------------------------------------------------------
def _gemm_bias_kernel(a_ref, w_ref, b_ref, o_ref, *, apply_elu):
    acc = jnp.dot(a_ref[...], w_ref[...], preferred_element_type=jnp.float32)
    acc = acc + b_ref[...]
    if apply_elu:
        acc = _elu(acc)
    o_ref[...] = acc.astype(o_ref.dtype)


def gemm_bias(a, w_p, b_p, *, apply_elu, out_dtype=jnp.float32):
    """(M, K) @ (Kp, Np) + (1, Np), tiled over M.

    `w_p` / `b_p` are pre-padded (Kp, Np multiples of 128, zero-filled); the A
    matrix is zero-padded to (Mp, Kp) here.  Only the padded M rows are sliced
    off on return — padded N columns stay (they are exactly zero downstream).
    """
    M, K = a.shape
    Kp, Np = w_p.shape
    assert K <= Kp and Kp % LANE == 0 and Np % LANE == 0 and b_p.shape == (1, Np)

    tm = _choose_tm(M)
    Mp = _round_up(M, tm)
    a_p = jnp.pad(a.astype(jnp.bfloat16), ((0, Mp - M), (0, Kp - K)))

    out_itemsize = jnp.dtype(out_dtype).itemsize
    cost = pl.CostEstimate(
        flops=int(2 * Mp * Kp * Np),
        transcendentals=int(Mp * Np) if apply_elu else 0,
        bytes_accessed=int(Mp * Kp * 2 + Kp * Np * 2 + Np * 4 + Mp * Np * out_itemsize),
    )

    out = pl.pallas_call(
        functools.partial(_gemm_bias_kernel, apply_elu=apply_elu),
        out_shape=jax.ShapeDtypeStruct((Mp, Np), out_dtype),
        grid=(Mp // tm,),
        in_specs=[
            pl.BlockSpec((tm, Kp), lambda i: (i, 0)),   # A: streamed / pipelined over M
            pl.BlockSpec((Kp, Np), lambda i: (0, 0)),   # W: constant block, VMEM-resident
            pl.BlockSpec((1, Np), lambda i: (0, 0)),    # bias: VMEM-resident
        ],
        out_specs=pl.BlockSpec((tm, Np), lambda i: (i, 0)),
        compiler_params=pltpu.CompilerParams(dimension_semantics=("parallel",)),
        cost_estimate=cost,
    )(a_p, w_p, b_p)
    return out[:M]


# ---------------------------------------------------------------------------
# Pallas kernel 2: fused FC head (fc1 -> fc2 -> fc3 -> fc4), weights in VMEM
# ---------------------------------------------------------------------------
def _mlp_kernel(x_ref, *refs, elu_flags):
    o_ref = refs[-1]
    wb_refs = refs[:-1]
    h = x_ref[...]                                   # bf16
    n_layers = len(elu_flags)
    for li, elu in enumerate(elu_flags):
        w_ref = wb_refs[2 * li]
        b_ref = wb_refs[2 * li + 1]
        acc = jnp.dot(h, w_ref[...], preferred_element_type=jnp.float32)
        acc = acc + b_ref[...]
        if elu:
            acc = _elu(acc)
        h = acc.astype(jnp.bfloat16) if li + 1 < n_layers else acc
    o_ref[...] = h.astype(o_ref.dtype)


def mlp_head(x, fc_params):
    """x: (M, K0p) bf16 (K0p multiple of 128); fc_params: [(w_p bf16, b_p f32), ...]."""
    M, K0p = x.shape
    assert K0p == fc_params[0][0].shape[0]
    tm = _choose_tm(M)
    Mp = _round_up(M, tm)
    x_p = jnp.pad(x.astype(jnp.bfloat16), ((0, Mp - M), (0, 0)))

    n_out = fc_params[-1][0].shape[1]
    elu_flags = tuple(e for (_, _, _, e) in FC_DEFS)

    in_specs = [pl.BlockSpec((tm, K0p), lambda i: (i, 0))]
    args = [x_p]
    flops = 0
    trans = 0
    bytes_accessed = x_p.size * 2 + Mp * n_out * 4
    for (w, b), elu in zip(fc_params, elu_flags):
        in_specs.append(pl.BlockSpec(w.shape, lambda i: (0, 0)))
        in_specs.append(pl.BlockSpec(b.shape, lambda i: (0, 0)))
        args.extend([w, b])
        flops += 2 * Mp * w.shape[0] * w.shape[1]
        bytes_accessed += w.size * 2 + b.size * 4
        if elu:
            trans += Mp * w.shape[1]

    out = pl.pallas_call(
        functools.partial(_mlp_kernel, elu_flags=elu_flags),
        out_shape=jax.ShapeDtypeStruct((Mp, n_out), jnp.float32),
        grid=(Mp // tm,),
        in_specs=in_specs,
        out_specs=pl.BlockSpec((tm, n_out), lambda i: (i, 0)),
        compiler_params=pltpu.CompilerParams(dimension_semantics=("parallel",)),
        cost_estimate=pl.CostEstimate(flops=int(flops), transcendentals=int(trans),
                                      bytes_accessed=int(bytes_accessed)),
    )(*args)
    return out[:M, :1]


# ---------------------------------------------------------------------------
# Conv2d (valid padding) = im2col (XLA glue) + Pallas tiled GEMM (hot path)
# ---------------------------------------------------------------------------
def _im2col(x, kh, kw, stride, cin):
    # x: (N, H, W, Cstored) NHWC (possibly with zero-padded channels); only the
    # first `cin` channels are real — the slice fuses into the gather below.
    x = x[..., :cin]
    n, h, w, _ = x.shape
    oh = (h - kh) // stride + 1
    ow = (w - kw) // stride + 1
    cols = []
    for i in range(kh):
        for j in range(kw):
            cols.append(x[:, i:i + stride * (oh - 1) + 1:stride,
                             j:j + stride * (ow - 1) + 1:stride, :])  # (N, OH, OW, Cin)
    a = jnp.stack(cols, axis=3)                     # (N, OH, OW, kh*kw, Cin)
    a = a.reshape(n * oh * ow, kh * kw * cin)       # rows flatten (kh, kw, cin)
    return a, oh, ow


def conv2d(x, w_p, b_p, *, k, cin, stride, apply_elu):
    n = x.shape[0]
    a, oh, ow = _im2col(x, k, k, stride, cin)
    y = gemm_bias(a, w_p, b_p, apply_elu=apply_elu, out_dtype=jnp.bfloat16)
    return y.reshape(n, oh, ow, w_p.shape[1])       # channels kept padded (zeros)


# ---------------------------------------------------------------------------
# NvidiaNet parameters / forward
# ---------------------------------------------------------------------------
def feature_spatial(h, w):
    for (_, k, s, _, _, _) in CONV_DEFS:
        h = (h - k) // s + 1
        w = (w - k) // s + 1
    return h, w


def init_params(key):
    c_in, H, W = IMG_SHAPE
    assert c_in == CONV_DEFS[0][3]
    fh, fw = feature_spatial(H, W)
    c_last = CONV_DEFS[-1][4]                # 64
    cp_last = _round_up(c_last, LANE)        # 128 (padded channels of stored conv5 out)
    flatsize = c_last * fh * fw              # torch flatsize
    flatsize_p = fh * fw * cp_last           # padded flatten width fed to fc1

    keys = jax.random.split(key, len(CONV_DEFS) + len(FC_DEFS))
    params = {"conv": [], "fc": []}
    ki = 0

    # Conv weights: stored pre-reshaped to (Kp, Np) = (pad(kh*kw*cin), pad(cout)), bf16.
    for (_, k, _, cin, cout, _) in CONV_DEFS:
        fan_in = k * k * cin
        w = (jax.random.normal(keys[ki], (k, k, cin, cout), jnp.float32)
             / np.sqrt(fan_in))
        ki += 1
        kp = _round_up(fan_in, LANE)
        np_out = _round_up(cout, LANE)
        w_p = (jnp.zeros((kp, np_out), jnp.float32)
               .at[:fan_in, :cout].set(w.reshape(fan_in, cout))
               .astype(jnp.bfloat16))
        b_p = jnp.zeros((1, np_out), jnp.float32)
        params["conv"].append((w_p, b_p))

    # fc1: fold torch's NCHW flatten order (C, fh, fw) into the row order of the
    # padded weight, matching the stored NHWC activation flatten (fh, fw, Cp).
    np1 = _round_up(FC_DEFS[0][2], LANE)
    w1 = (jax.random.normal(keys[ki], (flatsize, FC_DEFS[0][2]), jnp.float32)
          / np.sqrt(flatsize))
    ki += 1
    w1_hwc = jnp.transpose(w1.reshape(c_last, fh, fw, FC_DEFS[0][2]), (1, 2, 0, 3))
    w1_p = (jnp.zeros((fh, fw, cp_last, np1), jnp.float32)
            .at[:, :, :c_last, :FC_DEFS[0][2]].set(w1_hwc)
            .reshape(flatsize_p, np1)
            .astype(jnp.bfloat16))
    params["fc"].append((w1_p, jnp.zeros((1, np1), jnp.float32)))

    for (_, fin, fout, _) in FC_DEFS[1:]:
        w = jax.random.normal(keys[ki], (fin, fout), jnp.float32) / np.sqrt(fin)
        ki += 1
        kp = _round_up(fin, LANE)
        np_out = _round_up(fout, LANE)
        w_p = (jnp.zeros((kp, np_out), jnp.float32)
               .at[:fin, :fout].set(w)
               .astype(jnp.bfloat16))
        params["fc"].append((w_p, jnp.zeros((1, np_out), jnp.float32)))

    return params, flatsize


def nvidia_net_forward(params, x_nchw):
    # x_nchw: (N, C, H, W) float32 (PyTorch layout); convert to NHWC internally.
    x = jnp.transpose(x_nchw, (0, 2, 3, 1)).astype(jnp.bfloat16)
    for (w_p, b_p), (_, k, stride, cin, _, elu) in zip(params["conv"], CONV_DEFS):
        x = conv2d(x, w_p, b_p, k=k, cin=cin, stride=stride, apply_elu=elu)
    # Dropout(0.05) is identity at inference time.
    n = x.shape[0]
    # Flatten the padded NHWC feature map; torch's NCHW view order is folded
    # into fc1's (permuted, zero-padded) row order at init.
    x = x.reshape(n, -1)
    return mlp_head(x, params["fc"])   # (N, 1) float32


if __name__ == "__main__":
    key = jax.random.PRNGKey(0)
    pkey, xkey = jax.random.split(key)
    params, flatsize = init_params(pkey)

    batch = 2
    c, h, w = IMG_SHAPE
    x = jax.random.normal(xkey, (batch, c, h, w), jnp.float32)

    fwd = jax.jit(nvidia_net_forward)
    out = jax.block_until_ready(fwd(params, x))

    assert out.shape == (batch, 1), out.shape
    assert bool(jnp.all(jnp.isfinite(out)))
    print("KERNEL_OK")
</pallas_src>

<mosaic_0001>
module attributes {stable_mosaic.version = 11 : i64} {
  func.func @_gemm_bias_kernel(%arg0: i32, %arg1: memref<512x128xbf16, #tpu.memory_space<vmem>>, %arg2: memref<128x128xbf16, #tpu.memory_space<vmem>>, %arg3: memref<1x128xf32, #tpu.memory_space<vmem>>, %arg4: memref<512x128xbf16, #tpu.memory_space<vmem>>) attributes {dimension_semantics = [#tpu.dimension_semantics<parallel>], iteration_bounds = array<i64: 4>, scalar_prefetch = 0 : i64, scratch_operands = 0 : i64, tpu.core_type = #tpu.core_type<tc>, window_params = [{transform_indices = @transform_0, window_bounds = array<i64: 512, 128>}, {pipeline_mode = #tpu.pipeline_mode<synchronous>, transform_indices = @transform_1, window_bounds = array<i64: 128, 128>}, {pipeline_mode = #tpu.pipeline_mode<synchronous>, transform_indices = @transform_2, window_bounds = array<i64: 1, 128>}, {transform_indices = @transform_3, window_bounds = array<i64: 512, 128>}]} {
    %c0 = arith.constant 0 : index
    %c0_0 = arith.constant 0 : index
    %0 = vector.load %arg1[%c0, %c0_0] : memref<512x128xbf16, #tpu.memory_space<vmem>>, vector<512x128xbf16>
    %c0_1 = arith.constant 0 : index
    %c0_2 = arith.constant 0 : index
    %1 = vector.load %arg2[%c0_1, %c0_2] : memref<128x128xbf16, #tpu.memory_space<vmem>>, vector<128x128xbf16>
    %cst = arith.constant dense<0.000000e+00> : vector<512x128xf32>
    %2 = tpu.matmul %0, %1, %cst {dimension_numbers = #tpu.dot_dimension_numbers<[1], [0], [0], [1], [0, 0, 1, 1], [], []>} : vector<512x128xbf16>, vector<128x128xbf16>, vector<512x128xf32> -> vector<512x128xf32>
    %c0_3 = arith.constant 0 : index
    %c0_4 = arith.constant 0 : index
    %3 = vector.load %arg3[%c0_3, %c0_4] : memref<1x128xf32, #tpu.memory_space<vmem>>, vector<1x128xf32>
    %4 = vector.broadcast %3 : vector<1x128xf32> to vector<512x128xf32>
    %5 = arith.addf %2, %4 : vector<512x128xf32>
    %cst_5 = arith.constant 0.000000e+00 : f32
    %6 = vector.broadcast %cst_5 : f32 to vector<512x128xf32>
    %7 = arith.cmpf ogt, %5, %6 : vector<512x128xf32>
    %cst_6 = arith.constant 0.000000e+00 : f32
    %8 = vector.broadcast %cst_6 : f32 to vector<512x128xf32>
    %9 = arith.minimumf %5, %8 : vector<512x128xf32>
    %10 = math.exp %9 : vector<512x128xf32>
    %cst_7 = arith.constant 1.000000e+00 : f32
    %11 = vector.broadcast %cst_7 : f32 to vector<512x128xf32>
    %12 = arith.subf %10, %11 : vector<512x128xf32>
    %13 = arith.select %7, %5, %12 : vector<512x128xi1>, vector<512x128xf32>
    %14 = arith.truncf %13 : vector<512x128xf32> to vector<512x128xbf16>
    %c0_8 = arith.constant 0 : index
    %c0_9 = arith.constant 0 : index
    %15 = vector.load %arg4[%c0_8, %c0_9] : memref<512x128xbf16, #tpu.memory_space<vmem>>, vector<512x128xbf16>
    tpu.vector_store %arg4[%c0_8, %c0_9], %14 {strides = array<i32>} : memref<512x128xbf16, #tpu.memory_space<vmem>>, vector<512x128xbf16>,
    return
  }
  func.func @transform_0(%arg0: i32) -> (i32, i32) {
    %c0_i32 = arith.constant 0 : i32
    %c0_i32_0 = arith.constant 0 : i32
    return %arg0, %c0_i32 : i32, i32
  }
  func.func @transform_1(%arg0: i32) -> (i32, i32) {
    %c0_i32 = arith.constant 0 : i32
    %c0_i32_0 = arith.constant 0 : i32
    %c0_i32_1 = arith.constant 0 : i32
    return %c0_i32, %c0_i32_0 : i32, i32
  }
  func.func @transform_2(%arg0: i32) -> (i32, i32) {
    %c0_i32 = arith.constant 0 : i32
    %c0_i32_0 = arith.constant 0 : i32
    %c0_i32_1 = arith.constant 0 : i32
    return %c0_i32, %c0_i32_0 : i32, i32
  }
  func.func @transform_3(%arg0: i32) -> (i32, i32) {
    %c0_i32 = arith.constant 0 : i32
    %c0_i32_0 = arith.constant 0 : i32
    return %arg0, %c0_i32 : i32, i32
  }
}

module attributes {stable_mosaic.version = 11 : i64} {
  func.func @_gemm_bias_kernel(%arg0: i32, %arg1: memref<256x640xbf16, #tpu.memory_space<vmem>>, %arg2: memref<640x128xbf16, #tpu.memory_space<vmem>>, %arg3: memref<1x128xf32, #tpu.memory_space<vmem>>, %arg4: memref<256x128xbf16, #tpu.memory_space<vmem>>) attributes {dimension_semantics = [#tpu.dimension_semantics<parallel>], iteration_bounds = array<i64: 2>, scalar_prefetch = 0 : i64, scratch_operands = 0 : i64, tpu.core_type = #tpu.core_type<tc>, window_params = [{transform_indices = @transform_0, window_bounds = array<i64: 256, 640>}, {pipeline_mode = #tpu.pipeline_mode<synchronous>, transform_indices = @transform_1, window_bounds = array<i64: 640, 128>}, {pipeline_mode = #tpu.pipeline_mode<synchronous>, transform_indices = @transform_2, window_bounds = array<i64: 1, 128>}, {transform_indices = @transform_3, window_bounds = array<i64: 256, 128>}]} {
    %c0 = arith.constant 0 : index
    %c0_0 = arith.constant 0 : index
    %0 = vector.load %arg1[%c0, %c0_0] : memref<256x640xbf16, #tpu.memory_space<vmem>>, vector<256x640xbf16>
    %c0_1 = arith.constant 0 : index
    %c0_2 = arith.constant 0 : index
    %1 = vector.load %arg2[%c0_1, %c0_2] : memref<640x128xbf16, #tpu.memory_space<vmem>>, vector<640x128xbf16>
    %cst = arith.constant dense<0.000000e+00> : vector<256x128xf32>
    %2 = tpu.matmul %0, %1, %cst {dimension_numbers = #tpu.dot_dimension_numbers<[1], [0], [0], [1], [0, 0, 1, 1], [], []>} : vector<256x640xbf16>, vector<640x128xbf16>, vector<256x128xf32> -> vector<256x128xf32>
    %c0_3 = arith.constant 0 : index
    %c0_4 = arith.constant 0 : index
    %3 = vector.load %arg3[%c0_3, %c0_4] : memref<1x128xf32, #tpu.memory_space<vmem>>, vector<1x128xf32>
    %4 = vector.broadcast %3 : vector<1x128xf32> to vector<256x128xf32>
    %5 = arith.addf %2, %4 : vector<256x128xf32>
    %cst_5 = arith.constant 0.000000e+00 : f32
    %6 = vector.broadcast %cst_5 : f32 to vector<256x128xf32>
    %7 = arith.cmpf ogt, %5, %6 : vector<256x128xf32>
    %cst_6 = arith.constant 0.000000e+00 : f32
    %8 = vector.broadcast %cst_6 : f32 to vector<256x128xf32>
    %9 = arith.minimumf %5, %8 : vector<256x128xf32>
    %10 = math.exp %9 : vector<256x128xf32>
    %cst_7 = arith.constant 1.000000e+00 : f32
    %11 = vector.broadcast %cst_7 : f32 to vector<256x128xf32>
    %12 = arith.subf %10, %11 : vector<256x128xf32>
    %13 = arith.select %7, %5, %12 : vector<256x128xi1>, vector<256x128xf32>
    %14 = arith.truncf %13 : vector<256x128xf32> to vector<256x128xbf16>
    %c0_8 = arith.constant 0 : index
    %c0_9 = arith.constant 0 : index
    %15 = vector.load %arg4[%c0_8, %c0_9] : memref<256x128xbf16, #tpu.memory_space<vmem>>, vector<256x128xbf16>
    tpu.vector_store %arg4[%c0_8, %c0_9], %14 {strides = array<i32>} : memref<256x128xbf16, #tpu.memory_space<vmem>>, vector<256x128xbf16>,
    return
  }
  func.func @transform_0(%arg0: i32) -> (i32, i32) {
    %c0_i32 = arith.constant 0 : i32
    %c0_i32_0 = arith.constant 0 : i32
    return %arg0, %c0_i32 : i32, i32
  }
  func.func @transform_1(%arg0: i32) -> (i32, i32) {
    %c0_i32 = arith.constant 0 : i32
    %c0_i32_0 = arith.constant 0 : i32
    %c0_i32_1 = arith.constant 0 : i32
    return %c0_i32, %c0_i32_0 : i32, i32
  }
  func.func @transform_2(%arg0: i32) -> (i32, i32) {
    %c0_i32 = arith.constant 0 : i32
    %c0_i32_0 = arith.constant 0 : i32
    %c0_i32_1 = arith.constant 0 : i32
    return %c0_i32, %c0_i32_0 : i32, i32
  }
  func.func @transform_3(%arg0: i32) -> (i32, i32) {
    %c0_i32 = arith.constant 0 : i32
    %c0_i32_0 = arith.constant 0 : i32
    return %arg0, %c0_i32 : i32, i32
  }
}

module attributes {stable_mosaic.version = 11 : i64} {
  func.func @_gemm_bias_kernel(%arg0: i32, %arg1: memref<56x1024xbf16, #tpu.memory_space<vmem>>, %arg2: memref<1024x128xbf16, #tpu.memory_space<vmem>>, %arg3: memref<1x128xf32, #tpu.memory_space<vmem>>, %arg4: memref<56x128xbf16, #tpu.memory_space<vmem>>) attributes {dimension_semantics = [#tpu.dimension_semantics<parallel>], iteration_bounds = array<i64: 1>, scalar_prefetch = 0 : i64, scratch_operands = 0 : i64, tpu.core_type = #tpu.core_type<tc>, window_params = [{transform_indices = @transform_0, window_bounds = array<i64: 56, 1024>}, {pipeline_mode = #tpu.pipeline_mode<synchronous>, transform_indices = @transform_1, window_bounds = array<i64: 1024, 128>}, {pipeline_mode = #tpu.pipeline_mode<synchronous>, transform_indices = @transform_2, window_bounds = array<i64: 1, 128>}, {transform_indices = @transform_3, window_bounds = array<i64: 56, 128>}]} {
    %c0 = arith.constant 0 : index
    %c0_0 = arith.constant 0 : index
    %0 = vector.load %arg1[%c0, %c0_0] : memref<56x1024xbf16, #tpu.memory_space<vmem>>, vector<56x1024xbf16>
    %c0_1 = arith.constant 0 : index
    %c0_2 = arith.constant 0 : index
    %1 = vector.load %arg2[%c0_1, %c0_2] : memref<1024x128xbf16, #tpu.memory_space<vmem>>, vector<1024x128xbf16>
    %cst = arith.constant dense<0.000000e+00> : vector<56x128xf32>
    %2 = tpu.matmul %0, %1, %cst {dimension_numbers = #tpu.dot_dimension_numbers<[1], [0], [0], [1], [0, 0, 1, 1], [], []>} : vector<56x1024xbf16>, vector<1024x128xbf16>, vector<56x128xf32> -> vector<56x128xf32>
    %c0_3 = arith.constant 0 : index
    %c0_4 = arith.constant 0 : index
    %3 = vector.load %arg3[%c0_3, %c0_4] : memref<1x128xf32, #tpu.memory_space<vmem>>, vector<1x128xf32>
    %4 = vector.broadcast %3 : vector<1x128xf32> to vector<56x128xf32>
    %5 = arith.addf %2, %4 : vector<56x128xf32>
    %cst_5 = arith.constant 0.000000e+00 : f32
    %6 = vector.broadcast %cst_5 : f32 to vector<56x128xf32>
    %7 = arith.cmpf ogt, %5, %6 : vector<56x128xf32>
    %cst_6 = arith.constant 0.000000e+00 : f32
    %8 = vector.broadcast %cst_6 : f32 to vector<56x128xf32>
    %9 = arith.minimumf %5, %8 : vector<56x128xf32>
    %10 = math.exp %9 : vector<56x128xf32>
    %cst_7 = arith.constant 1.000000e+00 : f32
    %11 = vector.broadcast %cst_7 : f32 to vector<56x128xf32>
    %12 = arith.subf %10, %11 : vector<56x128xf32>
    %13 = arith.select %7, %5, %12 : vector<56x128xi1>, vector<56x128xf32>
    %14 = arith.truncf %13 : vector<56x128xf32> to vector<56x128xbf16>
    %c0_8 = arith.constant 0 : index
    %c0_9 = arith.constant 0 : index
    %15 = vector.load %arg4[%c0_8, %c0_9] : memref<56x128xbf16, #tpu.memory_space<vmem>>, vector<56x128xbf16>
    tpu.vector_store %arg4[%c0_8, %c0_9], %14 {strides = array<i32>} : memref<56x128xbf16, #tpu.memory_space<vmem>>, vector<56x128xbf16>,
    return
  }
  func.func @transform_0(%arg0: i32) -> (i32, i32) {
    %c0_i32 = arith.constant 0 : i32
    %c0_i32_0 = arith.constant 0 : i32
    return %arg0, %c0_i32 : i32, i32
  }
  func.func @transform_1(%arg0: i32) -> (i32, i32) {
    %c0_i32 = arith.constant 0 : i32
    %c0_i32_0 = arith.constant 0 : i32
    %c0_i32_1 = arith.constant 0 : i32
    return %c0_i32, %c0_i32_0 : i32, i32
  }
  func.func @transform_2(%arg0: i32) -> (i32, i32) {
    %c0_i32 = arith.constant 0 : i32
    %c0_i32_0 = arith.constant 0 : i32
    %c0_i32_1 = arith.constant 0 : i32
    return %c0_i32, %c0_i32_0 : i32, i32
  }
  func.func @transform_3(%arg0: i32) -> (i32, i32) {
    %c0_i32 = arith.constant 0 : i32
    %c0_i32_0 = arith.constant 0 : i32
    return %arg0, %c0_i32 : i32, i32
  }
}

module attributes {stable_mosaic.version = 11 : i64} {
  func.func @_gemm_bias_kernel(%arg0: i32, %arg1: memref<24x512xbf16, #tpu.memory_space<vmem>>, %arg2: memref<512x128xbf16, #tpu.memory_space<vmem>>, %arg3: memref<1x128xf32, #tpu.memory_space<vmem>>, %arg4: memref<24x128xbf16, #tpu.memory_space<vmem>>) attributes {dimension_semantics = [#tpu.dimension_semantics<parallel>], iteration_bounds = array<i64: 1>, scalar_prefetch = 0 : i64, scratch_operands = 0 : i64, tpu.core_type = #tpu.core_type<tc>, window_params = [{transform_indices = @transform_0, window_bounds = array<i64: 24, 512>}, {pipeline_mode = #tpu.pipeline_mode<synchronous>, transform_indices = @transform_1, window_bounds = array<i64: 512, 128>}, {pipeline_mode = #tpu.pipeline_mode<synchronous>, transform_indices = @transform_2, window_bounds = array<i64: 1, 128>}, {transform_indices = @transform_3, window_bounds = array<i64: 24, 128>}]} {
    %c0 = arith.constant 0 : index
    %c0_0 = arith.constant 0 : index
    %0 = vector.load %arg1[%c0, %c0_0] : memref<24x512xbf16, #tpu.memory_space<vmem>>, vector<24x512xbf16>
    %c0_1 = arith.constant 0 : index
    %c0_2 = arith.constant 0 : index
    %1 = vector.load %arg2[%c0_1, %c0_2] : memref<512x128xbf16, #tpu.memory_space<vmem>>, vector<512x128xbf16>
    %cst = arith.constant dense<0.000000e+00> : vector<24x128xf32>
    %2 = tpu.matmul %0, %1, %cst {dimension_numbers = #tpu.dot_dimension_numbers<[1], [0], [0], [1], [0, 0, 1, 1], [], []>} : vector<24x512xbf16>, vector<512x128xbf16>, vector<24x128xf32> -> vector<24x128xf32>
    %c0_3 = arith.constant 0 : index
    %c0_4 = arith.constant 0 : index
    %3 = vector.load %arg3[%c0_3, %c0_4] : memref<1x128xf32, #tpu.memory_space<vmem>>, vector<1x128xf32>
    %4 = vector.broadcast %3 : vector<1x128xf32> to vector<24x128xf32>
    %5 = arith.addf %2, %4 : vector<24x128xf32>
    %cst_5 = arith.constant 0.000000e+00 : f32
    %6 = vector.broadcast %cst_5 : f32 to vector<24x128xf32>
    %7 = arith.cmpf ogt, %5, %6 : vector<24x128xf32>
    %cst_6 = arith.constant 0.000000e+00 : f32
    %8 = vector.broadcast %cst_6 : f32 to vector<24x128xf32>
    %9 = arith.minimumf %5, %8 : vector<24x128xf32>
    %10 = math.exp %9 : vector<24x128xf32>
    %cst_7 = arith.constant 1.000000e+00 : f32
    %11 = vector.broadcast %cst_7 : f32 to vector<24x128xf32>
    %12 = arith.subf %10, %11 : vector<24x128xf32>
    %13 = arith.select %7, %5, %12 : vector<24x128xi1>, vector<24x128xf32>
    %14 = arith.truncf %13 : vector<24x128xf32> to vector<24x128xbf16>
    %c0_8 = arith.constant 0 : index
    %c0_9 = arith.constant 0 : index
    %15 = vector.load %arg4[%c0_8, %c0_9] : memref<24x128xbf16, #tpu.memory_space<vmem>>, vector<24x128xbf16>
    tpu.vector_store %arg4[%c0_8, %c0_9], %14 {strides = array<i32>} : memref<24x128xbf16, #tpu.memory_space<vmem>>, vector<24x128xbf16>,
    return
  }
  func.func @transform_0(%arg0: i32) -> (i32, i32) {
    %c0_i32 = arith.constant 0 : i32
    %c0_i32_0 = arith.constant 0 : i32
    return %arg0, %c0_i32 : i32, i32
  }
  func.func @transform_1(%arg0: i32) -> (i32, i32) {
    %c0_i32 = arith.constant 0 : i32
    %c0_i32_0 = arith.constant 0 : i32
    %c0_i32_1 = arith.constant 0 : i32
    return %c0_i32, %c0_i32_0 : i32, i32
  }
  func.func @transform_2(%arg0: i32) -> (i32, i32) {
    %c0_i32 = arith.constant 0 : i32
    %c0_i32_0 = arith.constant 0 : i32
    %c0_i32_1 = arith.constant 0 : i32
    return %c0_i32, %c0_i32_0 : i32, i32
  }
  func.func @transform_3(%arg0: i32) -> (i32, i32) {
    %c0_i32 = arith.constant 0 : i32
    %c0_i32_0 = arith.constant 0 : i32
    return %arg0, %c0_i32 : i32, i32
  }
}

module attributes {stable_mosaic.version = 11 : i64} {
  func.func @_gemm_bias_kernel(%arg0: i32, %arg1: memref<8x640xbf16, #tpu.memory_space<vmem>>, %arg2: memref<640x128xbf16, #tpu.memory_space<vmem>>, %arg3: memref<1x128xf32, #tpu.memory_space<vmem>>, %arg4: memref<8x128xbf16, #tpu.memory_space<vmem>>) attributes {dimension_semantics = [#tpu.dimension_semantics<parallel>], iteration_bounds = array<i64: 1>, scalar_prefetch = 0 : i64, scratch_operands = 0 : i64, tpu.core_type = #tpu.core_type<tc>, window_params = [{transform_indices = @transform_0, window_bounds = array<i64: 8, 640>}, {pipeline_mode = #tpu.pipeline_mode<synchronous>, transform_indices = @transform_1, window_bounds = array<i64: 640, 128>}, {pipeline_mode = #tpu.pipeline_mode<synchronous>, transform_indices = @transform_2, window_bounds = array<i64: 1, 128>}, {transform_indices = @transform_3, window_bounds = array<i64: 8, 128>}]} {
    %c0 = arith.constant 0 : index
    %c0_0 = arith.constant 0 : index
    %0 = vector.load %arg1[%c0, %c0_0] : memref<8x640xbf16, #tpu.memory_space<vmem>>, vector<8x640xbf16>
    %c0_1 = arith.constant 0 : index
    %c0_2 = arith.constant 0 : index
    %1 = vector.load %arg2[%c0_1, %c0_2] : memref<640x128xbf16, #tpu.memory_space<vmem>>, vector<640x128xbf16>
    %cst = arith.constant dense<0.000000e+00> : vector<8x128xf32>
    %2 = tpu.matmul %0, %1, %cst {dimension_numbers = #tpu.dot_dimension_numbers<[1], [0], [0], [1], [0, 0, 1, 1], [], []>} : vector<8x640xbf16>, vector<640x128xbf16>, vector<8x128xf32> -> vector<8x128xf32>
    %c0_3 = arith.constant 0 : index
    %c0_4 = arith.constant 0 : index
    %3 = vector.load %arg3[%c0_3, %c0_4] : memref<1x128xf32, #tpu.memory_space<vmem>>, vector<1x128xf32>
    %4 = vector.broadcast %3 : vector<1x128xf32> to vector<8x128xf32>
    %5 = arith.addf %2, %4 : vector<8x128xf32>
    %6 = arith.truncf %5 : vector<8x128xf32> to vector<8x128xbf16>
    %c0_5 = arith.constant 0 : index
    %c0_6 = arith.constant 0 : index
    %7 = vector.load %arg4[%c0_5, %c0_6] : memref<8x128xbf16, #tpu.memory_space<vmem>>, vector<8x128xbf16>
    tpu.vector_store %arg4[%c0_5, %c0_6], %6 {strides = array<i32>} : memref<8x128xbf16, #tpu.memory_space<vmem>>, vector<8x128xbf16>,
    return
  }
  func.func @transform_0(%arg0: i32) -> (i32, i32) {
    %c0_i32 = arith.constant 0 : i32
    %c0_i32_0 = arith.constant 0 : i32
    return %arg0, %c0_i32 : i32, i32
  }
  func.func @transform_1(%arg0: i32) -> (i32, i32) {
    %c0_i32 = arith.constant 0 : i32
    %c0_i32_0 = arith.constant 0 : i32
    %c0_i32_1 = arith.constant 0 : i32
    return %c0_i32, %c0_i32_0 : i32, i32
  }
  func.func @transform_2(%arg0: i32) -> (i32, i32) {
    %c0_i32 = arith.constant 0 : i32
    %c0_i32_0 = arith.constant 0 : i32
    %c0_i32_1 = arith.constant 0 : i32
    return %c0_i32, %c0_i32_0 : i32, i32
  }
  func.func @transform_3(%arg0: i32) -> (i32, i32) {
    %c0_i32 = arith.constant 0 : i32
    %c0_i32_0 = arith.constant 0 : i32
    return %arg0, %c0_i32 : i32, i32
  }
}

module attributes {stable_mosaic.version = 11 : i64} {
  func.func @_mlp_kernel(%arg0: i32, %arg1: memref<8x128xbf16, #tpu.memory_space<vmem>>, %arg2: memref<128x128xbf16, #tpu.memory_space<vmem>>, %arg3: memref<1x128xf32, #tpu.memory_space<vmem>>, %arg4: memref<128x128xbf16, #tpu.memory_space<vmem>>, %arg5: memref<1x128xf32, #tpu.memory_space<vmem>>, %arg6: memref<128x128xbf16, #tpu.memory_space<vmem>>, %arg7: memref<1x128xf32, #tpu.memory_space<vmem>>, %arg8: memref<128x128xbf16, #tpu.memory_space<vmem>>, %arg9: memref<1x128xf32, #tpu.memory_space<vmem>>, %arg10: memref<8x128xf32, #tpu.memory_space<vmem>>) attributes {dimension_semantics = [#tpu.dimension_semantics<parallel>], iteration_bounds = array<i64: 1>, scalar_prefetch = 0 : i64, scratch_operands = 0 : i64, tpu.core_type = #tpu.core_type<tc>, window_params = [{transform_indices = @transform_0, window_bounds = array<i64: 8, 128>}, {pipeline_mode = #tpu.pipeline_mode<synchronous>, transform_indices = @transform_1, window_bounds = array<i64: 128, 128>}, {pipeline_mode = #tpu.pipeline_mode<synchronous>, transform_indices = @transform_2, window_bounds = array<i64: 1, 128>}, {pipeline_mode = #tpu.pipeline_mode<synchronous>, transform_indices = @transform_3, window_bounds = array<i64: 128, 128>}, {pipeline_mode = #tpu.pipeline_mode<synchronous>, transform_indices = @transform_4, window_bounds = array<i64: 1, 128>}, {pipeline_mode = #tpu.pipeline_mode<synchronous>, transform_indices = @transform_5, window_bounds = array<i64: 128, 128>}, {pipeline_mode = #tpu.pipeline_mode<synchronous>, transform_indices = @transform_6, window_bounds = array<i64: 1, 128>}, {pipeline_mode = #tpu.pipeline_mode<synchronous>, transform_indices = @transform_7, window_bounds = array<i64: 128, 128>}, {pipeline_mode = #tpu.pipeline_mode<synchronous>, transform_indices = @transform_8, window_bounds = array<i64: 1, 128>}, {transform_indices = @transform_9, window_bounds = array<i64: 8, 128>}]} {
    %c0 = arith.constant 0 : index
    %c0_0 = arith.constant 0 : index
    %0 = vector.load %arg1[%c0, %c0_0] : memref<8x128xbf16, #tpu.memory_space<vmem>>, vector<8x128xbf16>
    %c0_1 = arith.constant 0 : index
    %c0_2 = arith.constant 0 : index
    %1 = vector.load %arg2[%c0_1, %c0_2] : memref<128x128xbf16, #tpu.memory_space<vmem>>, vector<128x128xbf16>
    %cst = arith.constant dense<0.000000e+00> : vector<8x128xf32>
    %2 = tpu.matmul %0, %1, %cst {dimension_numbers = #tpu.dot_dimension_numbers<[1], [0], [0], [1], [0, 0, 1, 1], [], []>} : vector<8x128xbf16>, vector<128x128xbf16>, vector<8x128xf32> -> vector<8x128xf32>
    %c0_3 = arith.constant 0 : index
    %c0_4 = arith.constant 0 : index
    %3 = vector.load %arg3[%c0_3, %c0_4] : memref<1x128xf32, #tpu.memory_space<vmem>>, vector<1x128xf32>
    %4 = vector.broadcast %3 : vector<1x128xf32> to vector<8x128xf32>
    %5 = arith.addf %2, %4 : vector<8x128xf32>
    %cst_5 = arith.constant 0.000000e+00 : f32
    %6 = vector.broadcast %cst_5 : f32 to vector<8x128xf32>
    %7 = arith.cmpf ogt, %5, %6 : vector<8x128xf32>
    %cst_6 = arith.constant 0.000000e+00 : f32
    %8 = vector.broadcast %cst_6 : f32 to vector<8x128xf32>
    %9 = arith.minimumf %5, %8 : vector<8x128xf32>
    %10 = math.exp %9 : vector<8x128xf32>
    %cst_7 = arith.constant 1.000000e+00 : f32
    %11 = vector.broadcast %cst_7 : f32 to vector<8x128xf32>
    %12 = arith.subf %10, %11 : vector<8x128xf32>
    %13 = arith.select %7, %5, %12 : vector<8x128xi1>, vector<8x128xf32>
    %14 = arith.truncf %13 : vector<8x128xf32> to vector<8x128xbf16>
    %c0_8 = arith.constant 0 : index
    %c0_9 = arith.constant 0 : index
    %15 = vector.load %arg4[%c0_8, %c0_9] : memref<128x128xbf16, #tpu.memory_space<vmem>>, vector<128x128xbf16>
    %cst_10 = arith.constant dense<0.000000e+00> : vector<8x128xf32>
    %16 = tpu.matmul %14, %15, %cst_10 {dimension_numbers = #tpu.dot_dimension_numbers<[1], [0], [0], [1], [0, 0, 1, 1], [], []>} : vector<8x128xbf16>, vector<128x128xbf16>, vector<8x128xf32> -> vector<8x128xf32>
    %c0_11 = arith.constant 0 : index
    %c0_12 = arith.constant 0 : index
    %17 = vector.load %arg5[%c0_11, %c0_12] : memref<1x128xf32, #tpu.memory_space<vmem>>, vector<1x128xf32>
    %18 = vector.broadcast %17 : vector<1x128xf32> to vector<8x128xf32>
    %19 = arith.addf %16, %18 : vector<8x128xf32>
    %cst_13 = arith.constant 0.000000e+00 : f32
    %20 = vector.broadcast %cst_13 : f32 to vector<8x128xf32>
    %21 = arith.cmpf ogt, %19, %20 : vector<8x128xf32>
    %cst_14 = arith.constant 0.000000e+00 : f32
    %22 = vector.broadcast %cst_14 : f32 to vector<8x128xf32>
    %23 = arith.minimumf %19, %22 : vector<8x128xf32>
    %24 = math.exp %23 : vector<8x128xf32>
    %cst_15 = arith.constant 1.000000e+00 : f32
    %25 = vector.broadcast %cst_15 : f32 to vector<8x128xf32>
    %26 = arith.subf %24, %25 : vector<8x128xf32>
    %27 = arith.select %21, %19, %26 : vector<8x128xi1>, vector<8x128xf32>
    %28 = arith.truncf %27 : vector<8x128xf32> to vector<8x128xbf16>
    %c0_16 = arith.constant 0 : index
    %c0_17 = arith.constant 0 : index
    %29 = vector.load %arg6[%c0_16, %c0_17] : memref<128x128xbf16, #tpu.memory_space<vmem>>, vector<128x128xbf16>
    %cst_18 = arith.constant dense<0.000000e+00> : vector<8x128xf32>
    %30 = tpu.matmul %28, %29, %cst_18 {dimension_numbers = #tpu.dot_dimension_numbers<[1], [0], [0], [1], [0, 0, 1, 1], [], []>} : vector<8x128xbf16>, vector<128x128xbf16>, vector<8x128xf32> -> vector<8x128xf32>
    %c0_19 = arith.constant 0 : index
    %c0_20 = arith.constant 0 : index
    %31 = vector.load %arg7[%c0_19, %c0_20] : memref<1x128xf32, #tpu.memory_space<vmem>>, vector<1x128xf32>
    %32 = vector.broadcast %31 : vector<1x128xf32> to vector<8x128xf32>
    %33 = arith.addf %30, %32 : vector<8x128xf32>
    %34 = arith.truncf %33 : vector<8x128xf32> to vector<8x128xbf16>
    %c0_21 = arith.constant 0 : index
    %c0_22 = arith.constant 0 : index
    %35 = vector.load %arg8[%c0_21, %c0_22] : memref<128x128xbf16, #tpu.memory_space<vmem>>, vector<128x128xbf16>
    %cst_23 = arith.constant dense<0.000000e+00> : vector<8x128xf32>
    %36 = tpu.matmul %34, %35, %cst_23 {dimension_numbers = #tpu.dot_dimension_numbers<[1], [0], [0], [1], [0, 0, 1, 1], [], []>} : vector<8x128xbf16>, vector<128x128xbf16>, vector<8x128xf32> -> vector<8x128xf32>
    %c0_24 = arith.constant 0 : index
    %c0_25 = arith.constant 0 : index
    %37 = vector.load %arg9[%c0_24, %c0_25] : memref<1x128xf32, #tpu.memory_space<vmem>>, vector<1x128xf32>
    %38 = vector.broadcast %37 : vector<1x128xf32> to vector<8x128xf32>
    %39 = arith.addf %36, %38 : vector<8x128xf32>
    %c0_26 = arith.constant 0 : index
    %c0_27 = arith.constant 0 : index
    %40 = vector.load %arg10[%c0_26, %c0_27] : memref<8x128xf32, #tpu.memory_space<vmem>>, vector<8x128xf32>
    tpu.vector_store %arg10[%c0_26, %c0_27], %39 {strides = array<i32>} : memref<8x128xf32, #tpu.memory_space<vmem>>, vector<8x128xf32>,
    return
  }
  func.func @transform_0(%arg0: i32) -> (i32, i32) {
    %c0_i32 = arith.constant 0 : i32
    %c0_i32_0 = arith.constant 0 : i32
    return %arg0, %c0_i32 : i32, i32
  }
  func.func @transform_1(%arg0: i32) -> (i32, i32) {
    %c0_i32 = arith.constant 0 : i32
    %c0_i32_0 = arith.constant 0 : i32
    %c0_i32_1 = arith.constant 0 : i32
    return %c0_i32, %c0_i32_0 : i32, i32
  }
  func.func @transform_2(%arg0: i32) -> (i32, i32) {
    %c0_i32 = arith.constant 0 : i32
    %c0_i32_0 = arith.constant 0 : i32
    %c0_i32_1 = arith.constant 0 : i32
    return %c0_i32, %c0_i32_0 : i32, i32
  }
  func.func @transform_3(%arg0: i32) -> (i32, i32) {
    %c0_i32 = arith.constant 0 : i32
    %c0_i32_0 = arith.constant 0 : i32
    %c0_i32_1 = arith.constant 0 : i32
    return %c0_i32, %c0_i32_0 : i32, i32
  }
  func.func @transform_4(%arg0: i32) -> (i32, i32) {
    %c0_i32 = arith.constant 0 : i32
    %c0_i32_0 = arith.constant 0 : i32
    %c0_i32_1 = arith.constant 0 : i32
    return %c0_i32, %c0_i32_0 : i32, i32
  }
  func.func @transform_5(%arg0: i32) -> (i32, i32) {
    %c0_i32 = arith.constant 0 : i32
    %c0_i32_0 = arith.constant 0 : i32
    %c0_i32_1 = arith.constant 0 : i32
    return %c0_i32, %c0_i32_0 : i32, i32
  }
  func.func @transform_6(%arg0: i32) -> (i32, i32) {
    %c0_i32 = arith.constant 0 : i32
    %c0_i32_0 = arith.constant 0 : i32
    %c0_i32_1 = arith.constant 0 : i32
    return %c0_i32, %c0_i32_0 : i32, i32
  }
  func.func @transform_7(%arg0: i32) -> (i32, i32) {
    %c0_i32 = arith.constant 0 : i32
    %c0_i32_0 = arith.constant 0 : i32
    %c0_i32_1 = arith.constant 0 : i32
    return %c0_i32, %c0_i32_0 : i32, i32
  }
  func.func @transform_8(%arg0: i32) -> (i32, i32) {
    %c0_i32 = arith.constant 0 : i32
    %c0_i32_0 = arith.constant 0 : i32
    %c0_i32_1 = arith.constant 0 : i32
    return %c0_i32, %c0_i32_0 : i32, i32
  }
  func.func @transform_9(%arg0: i32) -> (i32, i32) {
    %c0_i32 = arith.constant 0 : i32
    %c0_i32_0 = arith.constant 0 : i32
    return %arg0, %c0_i32 : i32, i32
  }
}

</mosaic_0001>

<llo_original>
// kernel: nvidia_net_forward.6
$region0: #{nvidia_net_forward.6}
  #allocation0 [shape = 'u32[]', space=smem, size = 0x4, offset = 0x4, fixed_abs, tag = 'smem constant byte address 0x4 - core index']
  #allocation1 [shape = 'u32[144,128]{1,0:T(1,128)}', space=vmem, size = 0x12000, scoped, tag = 'internal scratch']
  %s0 = inlined_call_operand.vmem [shape: bf16[2048,128], index: 0, kind: input, shape index: {}]
  %s1 = inlined_call_operand.vmem [shape: bf16[128,128], index: 1, kind: input, shape index: {}]
  %s2 = inlined_call_operand.vmem [shape: f32[1,128], index: 2, kind: input, shape index: {}]
  %s3 = inlined_call_operand.vmem [shape: bf16[2048,128], index: 3, kind: output, shape index: {}]
  %s4 = sld [smem:[#allocation0]]
  $region45: #{nvidia_net_forward.6} parent=0
    _
  %s6 = ssub.s32 1, %s4
  %s7 = scalar_select 0, %s6, %s4
  loop: start=0, step=1, limit=6
  $region2: #{nvidia_net_forward.6} parent=0 // loop_pre_header
    _
  $region3: #{nvidia_net_forward.6} parent=0 // loop_header
    %s9 = sphi 0, %s13
    %p10 = scmp.ge.s32.totalorder %s9, 6
    %s19 = sphi 0, %s21
    %s22 = sphi 0, %s19
    %s23 = sphi 0, %s22
    %s39 = sphi 0, %s23
    %s43 = sphi 0, %s43
    %s45 = sphi 0, %s43
    %s46 = sphi 0, %s45
    %s60 = sphi 0, %s46
    %s64 = sphi 0, %s64
    %s66 = sphi 0, %s64
    %s67 = sphi 0, %s66
    %s81 = sphi 0, %s67
    %s87 = sphi 0, %s89
    %s90 = sphi 0, %s87
    %s91 = sphi 0, %s90
    %s107 = sphi 0, %s91
  $region4: #{nvidia_net_forward.6} parent=0 // loop_header_branch
    %12 = sbr.rel (%p10) target = $region8
  $region5: #{nvidia_net_forward.6} parent=0 // loop_body
    %s14 = ssub.s32 %s9, 1
    %s15 = ssub.s32 %s9, 2
    %s16 = sadd.s32 %s9, 1
    %s17 = ssub.s32 %s9, %s16
    %p18 = scmp.eq.s32.totalorder %s17, 0
    %s20 = sadd.s32 %s19, 1
    %s21 = scalar_select %p18, %s19, %s20
    %p24 = pneg %p18
    %p25 = scmp.eq.s32.totalorder %s9, 3
    %p26 = por %p24, %p25
    %p27 = scmp.ne.s32.totalorder %s19, %s22
    %p28 = scmp.eq.s32.totalorder %s9, 0
    %p29 = por %p27, %p28
    %p30 = scmp.ne.s32.totalorder %s19, %s22
    %p31 = scmp.eq.s32.totalorder %s14, 3
    %p32 = por %p30, %p31
    %p33 = scmp.ne.s32.totalorder %s22, %s23
    %p34 = scmp.eq.s32.totalorder %s14, 0
    %p35 = por %p33, %p34
    %p36 = scmp.ne.s32.totalorder %s22, %s23
    %p37 = scmp.eq.s32.totalorder %s15, 3
    %p38 = por %p36, %p37
    %p40 = scmp.ne.s32.totalorder %s23, %s39
    %p41 = scmp.eq.s32.totalorder %s15, 0
    %p42 = por %p40, %p41
    %s44 = sadd.s32 %s43, 1
    %p47 = scmp.eq.s32.totalorder %s9, 3
    %p48 = scmp.ne.s32.totalorder %s43, %s45
    %p49 = scmp.eq.s32.totalorder %s9, 0
    %p50 = por %p48, %p49
    %p51 = scmp.ne.s32.totalorder %s43, %s45
    %p52 = scmp.eq.s32.totalorder %s14, 3
    %p53 = por %p51, %p52
    %p54 = scmp.ne.s32.totalorder %s45, %s46
    %p55 = scmp.eq.s32.totalorder %s14, 0
    %p56 = por %p54, %p55
    %p57 = scmp.ne.s32.totalorder %s45, %s46
    %p58 = scmp.eq.s32.totalorder %s15, 3
    %p59 = por %p57, %p58
    %p61 = scmp.ne.s32.totalorder %s46, %s60
    %p62 = scmp.eq.s32.totalorder %s15, 0
    %p63 = por %p61, %p62
    %s65 = sadd.s32 %s64, 1
    %p68 = scmp.eq.s32.totalorder %s9, 3
    %p69 = scmp.ne.s32.totalorder %s64, %s66
    %p70 = scmp.eq.s32.totalorder %s9, 0
    %p71 = por %p69, %p70
    %p72 = scmp.ne.s32.totalorder %s64, %s66
    %p73 = scmp.eq.s32.totalorder %s14, 3
    %p74 = por %p72, %p73
    %p75 = scmp.ne.s32.totalorder %s66, %s67
    %p76 = scmp.eq.s32.totalorder %s14, 0
    %p77 = por %p75, %p76
    %p78 = scmp.ne.s32.totalorder %s66, %s67
    %p79 = scmp.eq.s32.totalorder %s15, 3
    %p80 = por %p78, %p79
    %p82 = scmp.ne.s32.totalorder %s67, %s81
    %p83 = scmp.eq.s32.totalorder %s15, 0
    %p84 = por %p82, %p83
    %s85 = ssub.s32 %s9, %s16
    %p86 = scmp.eq.s32.totalorder %s85, 0
    %s88 = sadd.s32 %s87, 1
    %s89 = scalar_select %p86, %s87, %s88
    %p92 = pneg %p86
    %p93 = scmp.eq.s32.totalorder %s9, 3
    %p94 = por %p92, %p93
    %p95 = scmp.ne.s32.totalorder %s87, %s90
    %p96 = scmp.eq.s32.totalorder %s9, 0
    %p97 = por %p95, %p96
    %p98 = scmp.ne.s32.totalorder %s87, %s90
    %p99 = scmp.eq.s32.totalorder %s14, 3
    %p100 = por %p98, %p99
    %p101 = scmp.ne.s32.totalorder %s90, %s91
    %p102 = scmp.eq.s32.totalorder %s14, 0
    %p103 = por %p101, %p102
    %p104 = scmp.ne.s32.totalorder %s90, %s91
    %p105 = scmp.eq.s32.totalorder %s15, 3
    %p106 = por %p104, %p105
    %p108 = scmp.ne.s32.totalorder %s91, %s107
    %p109 = scmp.eq.s32.totalorder %s15, 0
    %p110 = por %p108, %p109
    %p111 = scmp.le.s32.totalorder 1, %s9
    %p112 = scmp.lt.s32.totalorder %s9, 5
    %p113 = pnand %p111, %p112
    %p114 = pneg %p113
    // Predicated region
    $region9: #{nvidia_net_forward.6} parent=5 // pred_check
      _
    $region10: #{nvidia_net_forward.6} parent=5 // pred_check_branch
      %116 = sbr.rel (%p113) target = $region12
    $region11: #{nvidia_net_forward.6} parent=5 // pred_region
      %s117 = ssub.s32 %s9, 1
      // Predicated region
      $region13: #{nvidia_net_forward.6} parent=11 // pred_check
        %p118 = pneg %p56
      $region14: #{nvidia_net_forward.6} parent=11 // pred_check_branch
        %120 = sbr.rel (%p118) target = $region16
      $region15: #{nvidia_net_forward.6} parent=11 // pred_region
        _
      $region16: #{nvidia_net_forward.6} parent=11 // pred_fallthru
        _
      // Predicated region
      $region17: #{nvidia_net_forward.6} parent=11 // pred_check
        %p121 = pneg %p77
      $region18: #{nvidia_net_forward.6} parent=11 // pred_check_branch
        %123 = sbr.rel (%p121) target = $region20
      $region19: #{nvidia_net_forward.6} parent=11 // pred_region
        _
      $region20: #{nvidia_net_forward.6} parent=11 // pred_fallthru
        _
    $region12: #{nvidia_net_forward.6} parent=5 // pred_fallthru
      _
    %p124 = scmp.lt.s32.totalorder %s9, 4
    // Predicated region
    $region21: #{nvidia_net_forward.6} parent=5 // pred_check
      %p125 = pneg %p124
    $region22: #{nvidia_net_forward.6} parent=5 // pred_check_branch
      %127 = sbr.rel (%p125) target = $region24
    $region23: #{nvidia_net_forward.6} parent=5 // pred_region
      // Predicated region
      $region25: #{nvidia_net_forward.6} parent=23 // pred_check
        %p128 = pneg %p29
      $region26: #{nvidia_net_forward.6} parent=23 // pred_check_branch
        %130 = sbr.rel (%p128) target = $region28
      $region27: #{nvidia_net_forward.6} parent=23 // pred_region
        %s131 = smul.u32 64, %s9
        %p132 = scmp.lt.s32.totalorder %s131, 255
        %s133 = scalar_select %p132, %s131, 255
        %s134 = smul.addr %s133, 4
        %s135 = scalar_lea.vmem %s0, %s134
        %s136 = smul.u32 64, %s9
      $region28: #{nvidia_net_forward.6} parent=23 // pred_fallthru
        _
    $region24: #{nvidia_net_forward.6} parent=5 // pred_fallthru
      _
    %p137 = scmp.le.s32.totalorder 1, %s9
    %p138 = scmp.lt.s32.totalorder %s9, 5
    %p139 = pnand %p137, %p138
    %p140 = pneg %p139
    // Predicated region
    $region29: #{nvidia_net_forward.6} parent=5 // pred_check
      _
    $region30: #{nvidia_net_forward.6} parent=5 // pred_check_branch
      %142 = sbr.rel (%p139) target = $region32
    $region31: #{nvidia_net_forward.6} parent=5 // pred_region
      %s143 = ssub.s32 %s9, 1
      %s144 = smul.u32 64, %s14
      %p145 = scmp.lt.s32.totalorder %s144, 255
      %s146 = scalar_select %p145, %s144, 255
      %s147 = smul.addr %s146, 4
      %s148 = scalar_lea.vmem %s0, %s147
      %p149 = pneg %p35
      %p150 = pneg %p32
      %p151 = pneg %p56
      %p152 = pneg %p53
      %p153 = pneg %p77
      %p154 = pneg %p74
      %p155 = pneg %p103
      %p156 = pneg %p100
      %s157 = smul.u32 64, %s14
      %p158 = scmp.lt.s32.totalorder %s157, 255
      %s159 = scalar_select %p158, %s157, 255
      %s160 = smul.addr %s159, 4
      %s161 = scalar_lea.vmem %s3, %s160
      %s162 = smul.u32 64, %s14
      %p163 = scmp.lt.s32.totalorder %s162, 255
      %s164 = scalar_select %p163, %s162, 255
      %s165 = smul.addr %s164, 4
      %s166 = scalar_lea.vmem %s0, %s165
      %s167 = smul.u32 64, %s14
      %s168 = smul.u32 64, %s14
      %p169 = scmp.lt.s32.totalorder %s168, 255
      %s170 = scalar_select %p169, %s168, 255
      %s171 = smul.addr %s170, 4
      %s172 = scalar_lea.vmem %s3, %s171
      %s173 = smul.u32 64, %s14
      %v175 = vld [vmem:[%s166] sm:$0xf]
      %v176 = vld [vmem:[%s166 + $0x4] sm:$0xf]
      %v177 = vld [vmem:[%s166 + $0x8] sm:$0xf]
      %v178 = vld [vmem:[%s166 + $0xc] sm:$0xf]
      %v179 = vld [vmem:[%s166 + $0x10] sm:$0xf]
      %v180 = vld [vmem:[%s166 + $0x14] sm:$0xf]
      %v181 = vld [vmem:[%s166 + $0x18] sm:$0xf]
      %v182 = vld [vmem:[%s166 + $0x1c] sm:$0xf]
      %v183 = vld [vmem:[%s166 + $0x20] sm:$0xf]
      %v184 = vld [vmem:[%s166 + $0x24] sm:$0xf]
      %v185 = vld [vmem:[%s166 + $0x28] sm:$0xf]
      %v186 = vld [vmem:[%s166 + $0x2c] sm:$0xf]
      %v187 = vld [vmem:[%s166 + $0x30] sm:$0xf]
      %v188 = vld [vmem:[%s166 + $0x34] sm:$0xf]
      %v189 = vld [vmem:[%s166 + $0x38] sm:$0xf]
      %v190 = vld [vmem:[%s166 + $0x3c] sm:$0xf]
      %v191 = vld [vmem:[%s166 + $0x40] sm:$0xf]
      %v192 = vld [vmem:[%s166 + $0x44] sm:$0xf]
      %v193 = vld [vmem:[%s166 + $0x48] sm:$0xf]
      %v194 = vld [vmem:[%s166 + $0x4c] sm:$0xf]
      %v195 = vld [vmem:[%s166 + $0x50] sm:$0xf]
      %v196 = vld [vmem:[%s166 + $0x54] sm:$0xf]
      %v197 = vld [vmem:[%s166 + $0x58] sm:$0xf]
      %v198 = vld [vmem:[%s166 + $0x5c] sm:$0xf]
      %v199 = vld [vmem:[%s166 + $0x60] sm:$0xf]
      %v200 = vld [vmem:[%s166 + $0x64] sm:$0xf]
      %v201 = vld [vmem:[%s166 + $0x68] sm:$0xf]
      %v202 = vld [vmem:[%s166 + $0x6c] sm:$0xf]
      %v203 = vld [vmem:[%s166 + $0x70] sm:$0xf]
      %v204 = vld [vmem:[%s166 + $0x74] sm:$0xf]
      %v205 = vld [vmem:[%s166 + $0x78] sm:$0xf]
      %v206 = vld [vmem:[%s166 + $0x7c] sm:$0xf]
      %v207 = vld [vmem:[%s166 + $0x80] sm:$0xf]
      %v208 = vld [vmem:[%s166 + $0x84] sm:$0xf]
      %v209 = vld [vmem:[%s166 + $0x88] sm:$0xf]
      %v210 = vld [vmem:[%s166 + $0x8c] sm:$0xf]
      %v211 = vld [vmem:[%s166 + $0x90] sm:$0xf]
      %v212 = vld [vmem:[%s166 + $0x94] sm:$0xf]
      %v213 = vld [vmem:[%s166 + $0x98] sm:$0xf]
      %v214 = vld [vmem:[%s166 + $0x9c] sm:$0xf]
      %v215 = vld [vmem:[%s166 + $0xa0] sm:$0xf]
      %v216 = vld [vmem:[%s166 + $0xa4] sm:$0xf]
      %v217 = vld [vmem:[%s166 + $0xa8] sm:$0xf]
      %v218 = vld [vmem:[%s166 + $0xac] sm:$0xf]
      %v219 = vld [vmem:[%s166 + $0xb0] sm:$0xf]
      %v220 = vld [vmem:[%s166 + $0xb4] sm:$0xf]
      %v221 = vld [vmem:[%s166 + $0xb8] sm:$0xf]
      %v222 = vld [vmem:[%s166 + $0xbc] sm:$0xf]
      %v223 = vld [vmem:[%s166 + $0xc0] sm:$0xf]
      %v224 = vld [vmem:[%s166 + $0xc4] sm:$0xf]
      %v225 = vld [vmem:[%s166 + $0xc8] sm:$0xf]
      %v226 = vld [vmem:[%s166 + $0xcc] sm:$0xf]
      %v227 = vld [vmem:[%s166 + $0xd0] sm:$0xf]
      %v228 = vld [vmem:[%s166 + $0xd4] sm:$0xf]
      %v229 = vld [vmem:[%s166 + $0xd8] sm:$0xf]
      %v230 = vld [vmem:[%s166 + $0xdc] sm:$0xf]
      %v231 = vld [vmem:[%s166 + $0xe0] sm:$0xf]
      %v232 = vld [vmem:[%s166 + $0xe4] sm:$0xf]
      %v233 = vld [vmem:[%s166 + $0xe8] sm:$0xf]
      %v234 = vld [vmem:[%s166 + $0xec] sm:$0xf]
      %v235 = vld [vmem:[%s166 + $0xf0] sm:$0xf]
      %v236 = vld [vmem:[%s166 + $0xf4] sm:$0xf]
      %v237 = vld [vmem:[%s166 + $0xf8] sm:$0xf]
      %v238 = vld [vmem:[%s166 + $0xfc] sm:$0xf]
      %v239 = vld [vmem:[%s1] sm:$0xf]
      %v240 = vld [vmem:[%s1 + $0x4] sm:$0xf]
      %v241 = vld [vmem:[%s1 + $0x8] sm:$0xf]
      %v242 = vld [vmem:[%s1 + $0xc] sm:$0xf]
      %v243 = vld [vmem:[%s1 + $0x10] sm:$0xf]
      %v244 = vld [vmem:[%s1 + $0x14] sm:$0xf]
      %v245 = vld [vmem:[%s1 + $0x18] sm:$0xf]
      %v246 = vld [vmem:[%s1 + $0x1c] sm:$0xf]
      %v247 = vld [vmem:[%s1 + $0x20] sm:$0xf]
      %v248 = vld [vmem:[%s1 + $0x24] sm:$0xf]
      %v249 = vld [vmem:[%s1 + $0x28] sm:$0xf]
      %v250 = vld [vmem:[%s1 + $0x2c] sm:$0xf]
      %v251 = vld [vmem:[%s1 + $0x30] sm:$0xf]
      %v252 = vld [vmem:[%s1 + $0x34] sm:$0xf]
      %v253 = vld [vmem:[%s1 + $0x38] sm:$0xf]
      %v254 = vld [vmem:[%s1 + $0x3c] sm:$0xf]
      %v255 = vld [vmem:[%s2] sm:$0x1]
      %v257 = vlaneseq
      %v258 = vshrl.u32 %v257, 7
      %v259 = vsub.s32 0, %v258
      %v260 = vrot.slane %v255, %v259
      %v326 = vunpack.c.l.b16 %v175
      %v327 = vunpack.c.l.b16 %v176
      %v328 = vunpack.c.l.b16 %v177
      %v329 = vunpack.c.l.b16 %v178
      %v330 = vunpack.c.l.b16 %v179
      %v331 = vunpack.c.l.b16 %v180
      %v332 = vunpack.c.l.b16 %v181
      %v333 = vunpack.c.l.b16 %v182
      %v334 = vunpack.c.l.b16 %v183
      %v335 = vunpack.c.l.b16 %v184
      %v336 = vunpack.c.l.b16 %v185
      %v337 = vunpack.c.l.b16 %v186
      %v338 = vunpack.c.l.b16 %v187
      %v339 = vunpack.c.l.b16 %v188
      %v340 = vunpack.c.l.b16 %v189
      %v341 = vunpack.c.l.b16 %v190
      %v342 = vunpack.c.l.b16 %v191
      %v343 = vunpack.c.l.b16 %v192
      %v344 = vunpack.c.l.b16 %v193
      %v345 = vunpack.c.l.b16 %v194
      %v346 = vunpack.c.l.b16 %v195
      %v347 = vunpack.c.l.b16 %v196
      %v348 = vunpack.c.l.b16 %v197
      %v349 = vunpack.c.l.b16 %v198
      %v350 = vunpack.c.l.b16 %v199
      %v351 = vunpack.c.l.b16 %v200
      %v352 = vunpack.c.l.b16 %v201
      %v353 = vunpack.c.l.b16 %v202
      %v354 = vunpack.c.l.b16 %v203
      %v355 = vunpack.c.l.b16 %v204
      %v356 = vunpack.c.l.b16 %v205
      %v357 = vunpack.c.l.b16 %v206
      %v358 = vunpack.c.l.b16 %v207
      %v359 = vunpack.c.l.b16 %v208
      %v360 = vunpack.c.l.b16 %v209
      %v361 = vunpack.c.l.b16 %v210
      %v362 = vunpack.c.l.b16 %v211
      %v363 = vunpack.c.l.b16 %v212
      %v364 = vunpack.c.l.b16 %v213
      %v365 = vunpack.c.l.b16 %v214
      %v366 = vunpack.c.l.b16 %v215
      %v367 = vunpack.c.l.b16 %v216
      %v368 = vunpack.c.l.b16 %v217
      %v369 = vunpack.c.l.b16 %v218
      %v370 = vunpack.c.l.b16 %v219
      %v371 = vunpack.c.l.b16 %v220
      %v372 = vunpack.c.l.b16 %v221
      %v373 = vunpack.c.l.b16 %v222
      %v374 = vunpack.c.l.b16 %v223
      %v375 = vunpack.c.l.b16 %v224
      %v376 = vunpack.c.l.b16 %v225
      %v377 = vunpack.c.l.b16 %v226
      %v378 = vunpack.c.l.b16 %v227
      %v379 = vunpack.c.l.b16 %v228
      %v380 = vunpack.c.l.b16 %v229
      %v381 = vunpack.c.l.b16 %v230
      %v382 = vunpack.c.l.b16 %v231
      %v383 = vunpack.c.l.b16 %v232
      %v384 = vunpack.c.l.b16 %v233
      %v385 = vunpack.c.l.b16 %v234
      %v386 = vunpack.c.l.b16 %v235
      %v387 = vunpack.c.l.b16 %v236
      %v388 = vunpack.c.l.b16 %v237
      %v389 = vunpack.c.l.b16 %v238
      %v390 = vpack.c.b16 %v327, %v326
      %v391 = vpack.c.b16 %v329, %v328
      %v392 = vpack.c.b16 %v331, %v330
      %v393 = vpack.c.b16 %v333, %v332
      %v394 = vpack.c.b16 %v335, %v334
      %v395 = vpack.c.b16 %v337, %v336
      %v396 = vpack.c.b16 %v339, %v338
      %v397 = vpack.c.b16 %v341, %v340
      %v398 = vpack.c.b16 %v343, %v342
      %v399 = vpack.c.b16 %v345, %v344
      %v400 = vpack.c.b16 %v347, %v346
      %v401 = vpack.c.b16 %v349, %v348
      %v402 = vpack.c.b16 %v351, %v350
      %v403 = vpack.c.b16 %v353, %v352
      %v404 = vpack.c.b16 %v355, %v354
      %v405 = vpack.c.b16 %v357, %v356
      %v406 = vpack.c.b16 %v359, %v358
      %v407 = vpack.c.b16 %v361, %v360
      %v408 = vpack.c.b16 %v363, %v362
      %v409 = vpack.c.b16 %v365, %v364
      %v410 = vpack.c.b16 %v367, %v366
      %v411 = vpack.c.b16 %v369, %v368
      %v412 = vpack.c.b16 %v371, %v370
      %v413 = vpack.c.b16 %v373, %v372
      %v414 = vpack.c.b16 %v375, %v374
      %v415 = vpack.c.b16 %v377, %v376
      %v416 = vpack.c.b16 %v379, %v378
      %v417 = vpack.c.b16 %v381, %v380
      %v418 = vpack.c.b16 %v383, %v382
      %v419 = vpack.c.b16 %v385, %v384
      %v420 = vpack.c.b16 %v387, %v386
      %v421 = vpack.c.b16 %v389, %v388
      %v470 = vunpack.c.l.b16 %v239
      %v471 = vunpack.c.l.b16 %v240
      %v472 = vunpack.c.l.b16 %v241
      %v473 = vunpack.c.l.b16 %v242
      %v474 = vunpack.c.l.b16 %v243
      %v475 = vunpack.c.l.b16 %v244
      %v476 = vunpack.c.l.b16 %v245
      %v477 = vunpack.c.l.b16 %v246
      %v478 = vunpack.c.l.b16 %v247
      %v479 = vunpack.c.l.b16 %v248
      %v480 = vunpack.c.l.b16 %v249
      %v481 = vunpack.c.l.b16 %v250
      %v482 = vunpack.c.l.b16 %v251
      %v483 = vunpack.c.l.b16 %v252
      %v484 = vunpack.c.l.b16 %v253
      %v485 = vunpack.c.l.b16 %v254
      %v486 = vpack.c.b16 %v471, %v470
      %v487 = vpack.c.b16 %v473, %v472
      %v488 = vpack.c.b16 %v475, %v474
      %v489 = vpack.c.b16 %v477, %v476
      %v490 = vpack.c.b16 %v479, %v478
      %v491 = vpack.c.b16 %v481, %v480
      %v492 = vpack.c.b16 %v483, %v482
      %v493 = vpack.c.b16 %v485, %v484
      %502 = vmatprep.subr.bf16.mxu0 0
      %503 = vmatpush1.bf16.msra.mxu0 %v493
      %504 = vmatprep.subr.bf16.mxu0 0
      %505 = vmatpush1.bf16.msra.mxu0 %v492
      %506 = vmatprep.subr.bf16.mxu0 0
      %507 = vmatpush1.bf16.msra.mxu0 %v491
      %508 = vmatprep.subr.bf16.mxu0 0
      %509 = vmatpush1.bf16.msra.mxu0 %v490
      %510 = vmatprep.subr.bf16.mxu0 0
      %511 = vmatpush1.bf16.msra.mxu0 %v489
      %512 = vmatprep.subr.bf16.mxu0 0
      %513 = vmatpush1.bf16.msra.mxu0 %v488
      %514 = vmatprep.subr.bf16.mxu0 0
      %515 = vmatpush1.bf16.msra.mxu0 %v487
      %516 = vmatprep.subr.bf16.mxu0 0
      %517 = vmatpush1.bf16.msra.mxu0 %v486
      %518 = vmatprep.subr.bf16.mxu0 0
      %519 = vmatpush2.bf16.msra.mxu0 0
      %520 = vmatprep.subr.bf16.mxu0 0
      %521 = vmatpush2.bf16.msra.mxu0 0
      %522 = vmatprep.subr.bf16.mxu0 0
      %523 = vmatpush2.bf16.msra.mxu0 0
      %524 = vmatprep.subr.bf16.mxu0 0
      %525 = vmatpush2.bf16.msra.mxu0 0
      %526 = vmatprep.subr.bf16.mxu0 0
      %527 = vmatpush2.bf16.msra.mxu0 0
      %528 = vmatprep.subr.bf16.mxu0 0
      %529 = vmatpush2.bf16.msra.mxu0 0
      %530 = vmatprep.subr.bf16.mxu0 0
      %531 = vmatpush2.bf16.msra.mxu0 0
      %532 = vmatprep.subr.bf16.mxu0 0
      %533 = vmatpush2.bf16.msra.mxu0 0
      %534 = vmatprep.mubr.bf16.mxu0 0
      %535 = vmatmul.mubr.bf16.gmra.mxu0 %v390
      %v536 = vpop.f32.mrf.mxu0
      %v537 = vadd.f32 %v260, %v536
      %v538 = vpop.f32.mrf.mxu0
      %v539 = vpop.f32.mrf.mxu0
      %v540 = vadd.f32 %v260, %v539
      %v541 = vpop.f32.mrf.mxu0
      %542 = vmatprep.mubr.bf16.mxu0 0
      %543 = vmatmul.mubr.bf16.gmra.mxu0 %v391
      %v544 = vpop.f32.mrf.mxu0
      %v545 = vadd.f32 %v260, %v544
      %v546 = vpop.f32.mrf.mxu0
      %v547 = vpop.f32.mrf.mxu0
      %v548 = vadd.f32 %v260, %v547
      %v549 = vpop.f32.mrf.mxu0
      %550 = vmatprep.mubr.bf16.mxu0 0
      %551 = vmatmul.mubr.bf16.gmra.mxu0 %v392
      %v552 = vpop.f32.mrf.mxu0
      %v553 = vadd.f32 %v260, %v552
      %v554 = vpop.f32.mrf.mxu0
      %v555 = vpop.f32.mrf.mxu0
      %v556 = vadd.f32 %v260, %v555
      %v557 = vpop.f32.mrf.mxu0
      %558 = vmatprep.mubr.bf16.mxu0 0
      %559 = vmatmul.mubr.bf16.gmra.mxu0 %v393
      %v560 = vpop.f32.mrf.mxu0
      %v561 = vadd.f32 %v260, %v560
      %v562 = vpop.f32.mrf.mxu0
      %v563 = vpop.f32.mrf.mxu0
      %v564 = vadd.f32 %v260, %v563
      %v565 = vpop.f32.mrf.mxu0
      %566 = vmatprep.mubr.bf16.mxu0 0
      %567 = vmatmul.mubr.bf16.gmra.mxu0 %v394
      %v568 = vpop.f32.mrf.mxu0
      %v569 = vadd.f32 %v260, %v568
      %v570 = vpop.f32.mrf.mxu0
      %v571 = vpop.f32.mrf.mxu0
      %v572 = vadd.f32 %v260, %v571
      %v573 = vpop.f32.mrf.mxu0
      %574 = vmatprep.mubr.bf16.mxu0 0
      %575 = vmatmul.mubr.bf16.gmra.mxu0 %v395
      %v576 = vpop.f32.mrf.mxu0
      %v577 = vadd.f32 %v260, %v576
      %v578 = vpop.f32.mrf.mxu0
      %v579 = vpop.f32.mrf.mxu0
      %v580 = vadd.f32 %v260, %v579
      %v581 = vpop.f32.mrf.mxu0
      %582 = vmatprep.mubr.bf16.mxu0 0
      %583 = vmatmul.mubr.bf16.gmra.mxu0 %v396
      %v584 = vpop.f32.mrf.mxu0
      %v585 = vadd.f32 %v260, %v584
      %v586 = vpop.f32.mrf.mxu0
      %v587 = vpop.f32.mrf.mxu0
      %v588 = vadd.f32 %v260, %v587
      %v589 = vpop.f32.mrf.mxu0
      %590 = vmatprep.mubr.bf16.mxu0 0
      %591 = vmatmul.mubr.bf16.gmra.mxu0 %v397
      %v592 = vpop.f32.mrf.mxu0
      %v593 = vadd.f32 %v260, %v592
      %v594 = vpop.f32.mrf.mxu0
      %v595 = vpop.f32.mrf.mxu0
      %v596 = vadd.f32 %v260, %v595
      %v597 = vpop.f32.mrf.mxu0
      %598 = vmatprep.mubr.bf16.mxu0 0
      %599 = vmatmul.mubr.bf16.gmra.mxu0 %v398
      %v600 = vpop.f32.mrf.mxu0
      %v601 = vadd.f32 %v260, %v600
      %v602 = vpop.f32.mrf.mxu0
      %v603 = vpop.f32.mrf.mxu0
      %v604 = vadd.f32 %v260, %v603
      %v605 = vpop.f32.mrf.mxu0
      %606 = vmatprep.mubr.bf16.mxu0 0
      %607 = vmatmul.mubr.bf16.gmra.mxu0 %v399
      %v608 = vpop.f32.mrf.mxu0
      %v609 = vadd.f32 %v260, %v608
      %v610 = vpop.f32.mrf.mxu0
      %v611 = vpop.f32.mrf.mxu0
      %v612 = vadd.f32 %v260, %v611
      %v613 = vpop.f32.mrf.mxu0
      %614 = vmatprep.mubr.bf16.mxu0 0
      %615 = vmatmul.mubr.bf16.gmra.mxu0 %v400
      %v616 = vpop.f32.mrf.mxu0
      %v617 = vadd.f32 %v260, %v616
      %v618 = vpop.f32.mrf.mxu0
      %v619 = vpop.f32.mrf.mxu0
      %v620 = vadd.f32 %v260, %v619
      %v621 = vpop.f32.mrf.mxu0
      %622 = vmatprep.mubr.bf16.mxu0 0
      %623 = vmatmul.mubr.bf16.gmra.mxu0 %v401
      %v624 = vpop.f32.mrf.mxu0
      %v625 = vadd.f32 %v260, %v624
      %v626 = vpop.f32.mrf.mxu0
      %v627 = vpop.f32.mrf.mxu0
      %v628 = vadd.f32 %v260, %v627
      %v629 = vpop.f32.mrf.mxu0
      %630 = vmatprep.mubr.bf16.mxu0 0
      %631 = vmatmul.mubr.bf16.gmra.mxu0 %v402
      %v632 = vpop.f32.mrf.mxu0
      %v633 = vadd.f32 %v260, %v632
      %v634 = vpop.f32.mrf.mxu0
      %v635 = vpop.f32.mrf.mxu0
      %v636 = vadd.f32 %v260, %v635
      %v637 = vpop.f32.mrf.mxu0
      %638 = vmatprep.mubr.bf16.mxu0 0
      %639 = vmatmul.mubr.bf16.gmra.mxu0 %v403
      %v640 = vpop.f32.mrf.mxu0
      %v641 = vadd.f32 %v260, %v640
      %v642 = vpop.f32.mrf.mxu0
      %v643 = vpop.f32.mrf.mxu0
      %v644 = vadd.f32 %v260, %v643
      %v645 = vpop.f32.mrf.mxu0
      %646 = vmatprep.mubr.bf16.mxu0 0
      %647 = vmatmul.mubr.bf16.gmra.mxu0 %v404
      %v648 = vpop.f32.mrf.mxu0
      %v649 = vadd.f32 %v260, %v648
      %v650 = vpop.f32.mrf.mxu0
      %v651 = vpop.f32.mrf.mxu0
      %v652 = vadd.f32 %v260, %v651
      %v653 = vpop.f32.mrf.mxu0
      %654 = vmatprep.mubr.bf16.mxu0 0
      %655 = vmatmul.mubr.bf16.gmra.mxu0 %v405
      %v656 = vpop.f32.mrf.mxu0
      %v657 = vadd.f32 %v260, %v656
      %v658 = vpop.f32.mrf.mxu0
      %v659 = vpop.f32.mrf.mxu0
      %v660 = vadd.f32 %v260, %v659
      %v661 = vpop.f32.mrf.mxu0
      %662 = vmatprep.mubr.bf16.mxu0 0
      %663 = vmatmul.mubr.bf16.gmra.mxu0 %v406
      %v664 = vpop.f32.mrf.mxu0
      %v665 = vadd.f32 %v260, %v664
      %v666 = vpop.f32.mrf.mxu0
      %v667 = vpop.f32.mrf.mxu0
      %v668 = vadd.f32 %v260, %v667
      %v669 = vpop.f32.mrf.mxu0
      %670 = vmatprep.mubr.bf16.mxu0 0
      %671 = vmatmul.mubr.bf16.gmra.mxu0 %v407
      %v672 = vpop.f32.mrf.mxu0
      %v673 = vadd.f32 %v260, %v672
      %v674 = vpop.f32.mrf.mxu0
      %v675 = vpop.f32.mrf.mxu0
      %v676 = vadd.f32 %v260, %v675
      %v677 = vpop.f32.mrf.mxu0
      %678 = vmatprep.mubr.bf16.mxu0 0
      %679 = vmatmul.mubr.bf16.gmra.mxu0 %v408
      %v680 = vpop.f32.mrf.mxu0
      %v681 = vadd.f32 %v260, %v680
      %v682 = vpop.f32.mrf.mxu0
      %v683 = vpop.f32.mrf.mxu0
      %v684 = vadd.f32 %v260, %v683
      %v685 = vpop.f32.mrf.mxu0
      %686 = vmatprep.mubr.bf16.mxu0 0
      %687 = vmatmul.mubr.bf16.gmra.mxu0 %v409
      %v688 = vpop.f32.mrf.mxu0
      %v689 = vadd.f32 %v260, %v688
      %v690 = vpop.f32.mrf.mxu0
      %v691 = vpop.f32.mrf.mxu0
      %v692 = vadd.f32 %v260, %v691
      %v693 = vpop.f32.mrf.mxu0
      %694 = vmatprep.mubr.bf16.mxu0 0
      %695 = vmatmul.mubr.bf16.gmra.mxu0 %v410
      %v696 = vpop.f32.mrf.mxu0
      %v697 = vadd.f32 %v260, %v696
      %v698 = vpop.f32.mrf.mxu0
      %v699 = vpop.f32.mrf.mxu0
      %v700 = vadd.f32 %v260, %v699
      %v701 = vpop.f32.mrf.mxu0
      %702 = vmatprep.mubr.bf16.mxu0 0
      %703 = vmatmul.mubr.bf16.gmra.mxu0 %v411
      %v704 = vpop.f32.mrf.mxu0
      %v705 = vadd.f32 %v260, %v704
      %v706 = vpop.f32.mrf.mxu0
      %v707 = vpop.f32.mrf.mxu0
      %v708 = vadd.f32 %v260, %v707
      %v709 = vpop.f32.mrf.mxu0
      %710 = vmatprep.mubr.bf16.mxu0 0
      %711 = vmatmul.mubr.bf16.gmra.mxu0 %v412
      %v712 = vpop.f32.mrf.mxu0
      %v713 = vadd.f32 %v260, %v712
      %v714 = vpop.f32.mrf.mxu0
      %v715 = vpop.f32.mrf.mxu0
      %v716 = vadd.f32 %v260, %v715
      %v717 = vpop.f32.mrf.mxu0
      %718 = vmatprep.mubr.bf16.mxu0 0
      %719 = vmatmul.mubr.bf16.gmra.mxu0 %v413
      %v720 = vpop.f32.mrf.mxu0
      %v721 = vadd.f32 %v260, %v720
      %v722 = vpop.f32.mrf.mxu0
      %v723 = vpop.f32.mrf.mxu0
      %v724 = vadd.f32 %v260, %v723
      %v725 = vpop.f32.mrf.mxu0
      %726 = vmatprep.mubr.bf16.mxu0 0
      %727 = vmatmul.mubr.bf16.gmra.mxu0 %v414
      %v728 = vpop.f32.mrf.mxu0
      %v729 = vadd.f32 %v260, %v728
      %v730 = vpop.f32.mrf.mxu0
      %v731 = vpop.f32.mrf.mxu0
      %v732 = vadd.f32 %v260, %v731
      %v733 = vpop.f32.mrf.mxu0
      %734 = vmatprep.mubr.bf16.mxu0 0
      %735 = vmatmul.mubr.bf16.gmra.mxu0 %v415
      %v736 = vpop.f32.mrf.mxu0
      %v737 = vadd.f32 %v260, %v736
      %v738 = vpop.f32.mrf.mxu0
      %v739 = vpop.f32.mrf.mxu0
      %v740 = vadd.f32 %v260, %v739
      %v741 = vpop.f32.mrf.mxu0
      %742 = vmatprep.mubr.bf16.mxu0 0
      %743 = vmatmul.mubr.bf16.gmra.mxu0 %v416
      %v744 = vpop.f32.mrf.mxu0
      %v745 = vadd.f32 %v260, %v744
      %v746 = vpop.f32.mrf.mxu0
      %v747 = vpop.f32.mrf.mxu0
      %v748 = vadd.f32 %v260, %v747
      %v749 = vpop.f32.mrf.mxu0
      %750 = vmatprep.mubr.bf16.mxu0 0
      %751 = vmatmul.mubr.bf16.gmra.mxu0 %v417
      %v752 = vpop.f32.mrf.mxu0
      %v753 = vadd.f32 %v260, %v752
      %v754 = vpop.f32.mrf.mxu0
      %v755 = vpop.f32.mrf.mxu0
      %v756 = vadd.f32 %v260, %v755
      %v757 = vpop.f32.mrf.mxu0
      %758 = vmatprep.mubr.bf16.mxu0 0
      %759 = vmatmul.mubr.bf16.gmra.mxu0 %v418
      %v760 = vpop.f32.mrf.mxu0
      %v761 = vadd.f32 %v260, %v760
      %v762 = vpop.f32.mrf.mxu0
      %v763 = vpop.f32.mrf.mxu0
      %v764 = vadd.f32 %v260, %v763
      %v765 = vpop.f32.mrf.mxu0
      %766 = vmatprep.mubr.bf16.mxu0 0
      %767 = vmatmul.mubr.bf16.gmra.mxu0 %v419
      %v768 = vpop.f32.mrf.mxu0
      %v769 = vadd.f32 %v260, %v768
      %v770 = vpop.f32.mrf.mxu0
      %v771 = vpop.f32.mrf.mxu0
      %v772 = vadd.f32 %v260, %v771
      %v773 = vpop.f32.mrf.mxu0
      %774 = vmatprep.mubr.bf16.mxu0 0
      %775 = vmatmul.mubr.bf16.gmra.mxu0 %v420
      %v776 = vpop.f32.mrf.mxu0
      %v777 = vadd.f32 %v260, %v776
      %v778 = vpop.f32.mrf.mxu0
      %v779 = vpop.f32.mrf.mxu0
      %v780 = vadd.f32 %v260, %v779
      %v781 = vpop.f32.mrf.mxu0
      %782 = vmatprep.mubr.bf16.mxu0 0
      %783 = vmatmul.mubr.bf16.gmra.mxu0 %v421
      %v784 = vpop.f32.mrf.mxu0
      %v785 = vadd.f32 %v260, %v784
      %v786 = vpop.f32.mrf.mxu0
      %v787 = vpop.f32.mrf.mxu0
      %v788 = vadd.f32 %v260, %v787
      %v789 = vpop.f32.mrf.mxu0
      %790 = vdwg.mxu0
      %vm791 = vcmp.gt.f32.partialorder %v537, 0.0
      %vm792 = vcmp.gt.f32.partialorder %v540, 0.0
      %vm793 = vcmp.gt.f32.partialorder %v545, 0.0
      %vm794 = vcmp.gt.f32.partialorder %v548, 0.0
      %vm795 = vcmp.gt.f32.partialorder %v553, 0.0
      %vm796 = vcmp.gt.f32.partialorder %v556, 0.0
      %vm797 = vcmp.gt.f32.partialorder %v561, 0.0
      %vm798 = vcmp.gt.f32.partialorder %v564, 0.0
      %vm799 = vcmp.gt.f32.partialorder %v569, 0.0
      %vm800 = vcmp.gt.f32.partialorder %v572, 0.0
      %vm801 = vcmp.gt.f32.partialorder %v577, 0.0
      %vm802 = vcmp.gt.f32.partialorder %v580, 0.0
      %vm803 = vcmp.gt.f32.partialorder %v585, 0.0
      %vm804 = vcmp.gt.f32.partialorder %v588, 0.0
      %vm805 = vcmp.gt.f32.partialorder %v593, 0.0
      %vm806 = vcmp.gt.f32.partialorder %v596, 0.0
      %vm807 = vcmp.gt.f32.partialorder %v601, 0.0
      %vm808 = vcmp.gt.f32.partialorder %v604, 0.0
      %vm809 = vcmp.gt.f32.partialorder %v609, 0.0
      %vm810 = vcmp.gt.f32.partialorder %v612, 0.0
      %vm811 = vcmp.gt.f32.partialorder %v617, 0.0
      %vm812 = vcmp.gt.f32.partialorder %v620, 0.0
      %vm813 = vcmp.gt.f32.partialorder %v625, 0.0
      %vm814 = vcmp.gt.f32.partialorder %v628, 0.0
      %vm815 = vcmp.gt.f32.partialorder %v633, 0.0
      %vm816 = vcmp.gt.f32.partialorder %v636, 0.0
      %vm817 = vcmp.gt.f32.partialorder %v641, 0.0
      %vm818 = vcmp.gt.f32.partialorder %v644, 0.0
      %vm819 = vcmp.gt.f32.partialorder %v649, 0.0
      %vm820 = vcmp.gt.f32.partialorder %v652, 0.0
      %vm821 = vcmp.gt.f32.partialorder %v657, 0.0
      %vm822 = vcmp.gt.f32.partialorder %v660, 0.0
      %vm823 = vcmp.gt.f32.partialorder %v665, 0.0
      %vm824 = vcmp.gt.f32.partialorder %v668, 0.0
      %vm825 = vcmp.gt.f32.partialorder %v673, 0.0
      %vm826 = vcmp.gt.f32.partialorder %v676, 0.0
      %vm827 = vcmp.gt.f32.partialorder %v681, 0.0
      %vm828 = vcmp.gt.f32.partialorder %v684, 0.0
      %vm829 = vcmp.gt.f32.partialorder %v689, 0.0
      %vm830 = vcmp.gt.f32.partialorder %v692, 0.0
      %vm831 = vcmp.gt.f32.partialorder %v697, 0.0
      %vm832 = vcmp.gt.f32.partialorder %v700, 0.0
      %vm833 = vcmp.gt.f32.partialorder %v705, 0.0
      %vm834 = vcmp.gt.f32.partialorder %v708, 0.0
      %vm835 = vcmp.gt.f32.partialorder %v713, 0.0
      %vm836 = vcmp.gt.f32.partialorder %v716, 0.0
      %vm837 = vcmp.gt.f32.partialorder %v721, 0.0
      %vm838 = vcmp.gt.f32.partialorder %v724, 0.0
      %vm839 = vcmp.gt.f32.partialorder %v729, 0.0
      %vm840 = vcmp.gt.f32.partialorder %v732, 0.0
      %vm841 = vcmp.gt.f32.partialorder %v737, 0.0
      %vm842 = vcmp.gt.f32.partialorder %v740, 0.0
      %vm843 = vcmp.gt.f32.partialorder %v745, 0.0
      %vm844 = vcmp.gt.f32.partialorder %v748, 0.0
      %vm845 = vcmp.gt.f32.partialorder %v753, 0.0
      %vm846 = vcmp.gt.f32.partialorder %v756, 0.0
      %vm847 = vcmp.gt.f32.partialorder %v761, 0.0
      %vm848 = vcmp.gt.f32.partialorder %v764, 0.0
      %vm849 = vcmp.gt.f32.partialorder %v769, 0.0
      %vm850 = vcmp.gt.f32.partialorder %v772, 0.0
      %vm851 = vcmp.gt.f32.partialorder %v777, 0.0
      %vm852 = vcmp.gt.f32.partialorder %v780, 0.0
      %vm853 = vcmp.gt.f32.partialorder %v785, 0.0
      %vm854 = vcmp.gt.f32.partialorder %v788, 0.0
      %v855 = vmin.f32 %v537, 0.0
      %v856 = vmin.f32 %v540, 0.0
      %v857 = vmin.f32 %v545, 0.0
      %v858 = vmin.f32 %v548, 0.0
      %v859 = vmin.f32 %v553, 0.0
      %v860 = vmin.f32 %v556, 0.0
      %v861 = vmin.f32 %v561, 0.0
      %v862 = vmin.f32 %v564, 0.0
      %v863 = vmin.f32 %v569, 0.0
      %v864 = vmin.f32 %v572, 0.0
      %v865 = vmin.f32 %v577, 0.0
      %v866 = vmin.f32 %v580, 0.0
      %v867 = vmin.f32 %v585, 0.0
      %v868 = vmin.f32 %v588, 0.0
      %v869 = vmin.f32 %v593, 0.0
      %v870 = vmin.f32 %v596, 0.0
      %v871 = vmin.f32 %v601, 0.0
      %v872 = vmin.f32 %v604, 0.0
      %v873 = vmin.f32 %v609, 0.0
      %v874 = vmin.f32 %v612, 0.0
      %v875 = vmin.f32 %v617, 0.0
      %v876 = vmin.f32 %v620, 0.0
      %v877 = vmin.f32 %v625, 0.0
      %v878 = vmin.f32 %v628, 0.0
      %v879 = vmin.f32 %v633, 0.0
      %v880 = vmin.f32 %v636, 0.0
      %v881 = vmin.f32 %v641, 0.0
      %v882 = vmin.f32 %v644, 0.0
      %v883 = vmin.f32 %v649, 0.0
      %v884 = vmin.f32 %v652, 0.0
      %v885 = vmin.f32 %v657, 0.0
      %v886 = vmin.f32 %v660, 0.0
      %v887 = vmin.f32 %v665, 0.0
      %v888 = vmin.f32 %v668, 0.0
      %v889 = vmin.f32 %v673, 0.0
      %v890 = vmin.f32 %v676, 0.0
      %v891 = vmin.f32 %v681, 0.0
      %v892 = vmin.f32 %v684, 0.0
      %v893 = vmin.f32 %v689, 0.0
      %v894 = vmin.f32 %v692, 0.0
      %v895 = vmin.f32 %v697, 0.0
      %v896 = vmin.f32 %v700, 0.0
      %v897 = vmin.f32 %v705, 0.0
      %v898 = vmin.f32 %v708, 0.0
      %v899 = vmin.f32 %v713, 0.0
      %v900 = vmin.f32 %v716, 0.0
      %v901 = vmin.f32 %v721, 0.0
      %v902 = vmin.f32 %v724, 0.0
      %v903 = vmin.f32 %v729, 0.0
      %v904 = vmin.f32 %v732, 0.0
      %v905 = vmin.f32 %v737, 0.0
      %v906 = vmin.f32 %v740, 0.0
      %v907 = vmin.f32 %v745, 0.0
      %v908 = vmin.f32 %v748, 0.0
      %v909 = vmin.f32 %v753, 0.0
      %v910 = vmin.f32 %v756, 0.0
      %v911 = vmin.f32 %v761, 0.0
      %v912 = vmin.f32 %v764, 0.0
      %v913 = vmin.f32 %v769, 0.0
      %v914 = vmin.f32 %v772, 0.0
      %v915 = vmin.f32 %v777, 0.0
      %v916 = vmin.f32 %v780, 0.0
      %v917 = vmin.f32 %v785, 0.0
      %v918 = vmin.f32 %v788, 0.0
      %v919 = vmul.f32 %v855, 1.442695
      %v920 = vpow.pop %v919
      %v921 = vmul.f32 %v856, 1.442695
      %v922 = vpow.pop %v921
      %v923 = vmul.f32 %v857, 1.442695
      %v924 = vpow.pop %v923
      %v925 = vmul.f32 %v858, 1.442695
      %v926 = vpow.pop %v925
      %v927 = vmul.f32 %v859, 1.442695
      %v928 = vpow.pop %v927
      %v929 = vmul.f32 %v860, 1.442695
      %v930 = vpow.pop %v929
      %v931 = vmul.f32 %v861, 1.442695
      %v932 = vpow.pop %v931
      %v933 = vmul.f32 %v862, 1.442695
      %v934 = vpow.pop %v933
      %v935 = vmul.f32 %v863, 1.442695
      %v936 = vpow.pop %v935
      %v937 = vmul.f32 %v864, 1.442695
      %v938 = vpow.pop %v937
      %v939 = vmul.f32 %v865, 1.442695
      %v940 = vpow.pop %v939
      %v941 = vmul.f32 %v866, 1.442695
      %v942 = vpow.pop %v941
      %v943 = vmul.f32 %v867, 1.442695
      %v944 = vpow.pop %v943
      %v945 = vmul.f32 %v868, 1.442695
      %v946 = vpow.pop %v945
      %v947 = vmul.f32 %v869, 1.442695
      %v948 = vpow.pop %v947
      %v949 = vmul.f32 %v870, 1.442695
      %v950 = vpow.pop %v949
      %v951 = vmul.f32 %v871, 1.442695
      %v952 = vpow.pop %v951
      %v953 = vmul.f32 %v872, 1.442695
      %v954 = vpow.pop %v953
      %v955 = vmul.f32 %v873, 1.442695
      %v956 = vpow.pop %v955
      %v957 = vmul.f32 %v874, 1.442695
      %v958 = vpow.pop %v957
      %v959 = vmul.f32 %v875, 1.442695
      %v960 = vpow.pop %v959
      %v961 = vmul.f32 %v876, 1.442695
      %v962 = vpow.pop %v961
      %v963 = vmul.f32 %v877, 1.442695
      %v964 = vpow.pop %v963
      %v965 = vmul.f32 %v878, 1.442695
      %v966 = vpow.pop %v965
      %v967 = vmul.f32 %v879, 1.442695
      %v968 = vpow.pop %v967
      %v969 = vmul.f32 %v880, 1.442695
      %v970 = vpow.pop %v969
      %v971 = vmul.f32 %v881, 1.442695
      %v972 = vpow.pop %v971
      %v973 = vmul.f32 %v882, 1.442695
      %v974 = vpow.pop %v973
      %v975 = vmul.f32 %v883, 1.442695
      %v976 = vpow.pop %v975
      %v977 = vmul.f32 %v884, 1.442695
      %v978 = vpow.pop %v977
      %v979 = vmul.f32 %v885, 1.442695
      %v980 = vpow.pop %v979
      %v981 = vmul.f32 %v886, 1.442695
      %v982 = vpow.pop %v981
      %v983 = vmul.f32 %v887, 1.442695
      %v984 = vpow.pop %v983
      %v985 = vmul.f32 %v888, 1.442695
      %v986 = vpow.pop %v985
      %v987 = vmul.f32 %v889, 1.442695
      %v988 = vpow.pop %v987
      %v989 = vmul.f32 %v890, 1.442695
      %v990 = vpow.pop %v989
      %v991 = vmul.f32 %v891, 1.442695
      %v992 = vpow.pop %v991
      %v993 = vmul.f32 %v892, 1.442695
      %v994 = vpow.pop %v993
      %v995 = vmul.f32 %v893, 1.442695
      %v996 = vpow.pop %v995
      %v997 = vmul.f32 %v894, 1.442695
      %v998 = vpow.pop %v997
      %v999 = vmul.f32 %v895, 1.442695
      %v1000 = vpow.pop %v999
      %v1001 = vmul.f32 %v896, 1.442695
      %v1002 = vpow.pop %v1001
      %v1003 = vmul.f32 %v897, 1.442695
      %v1004 = vpow.pop %v1003
      %v1005 = vmul.f32 %v898, 1.442695
      %v1006 = vpow.pop %v1005
      %v1007 = vmul.f32 %v899, 1.442695
      %v1008 = vpow.pop %v1007
      %v1009 = vmul.f32 %v900, 1.442695
      %v1010 = vpow.pop %v1009
      %v1011 = vmul.f32 %v901, 1.442695
      %v1012 = vpow.pop %v1011
      %v1013 = vmul.f32 %v902, 1.442695
      %v1014 = vpow.pop %v1013
      %v1015 = vmul.f32 %v903, 1.442695
      %v1016 = vpow.pop %v1015
      %v1017 = vmul.f32 %v904, 1.442695
      %v1018 = vpow.pop %v1017
      %v1019 = vmul.f32 %v905, 1.442695
      %v1020 = vpow.pop %v1019
      %v1021 = vmul.f32 %v906, 1.442695
      %v1022 = vpow.pop %v1021
      %v1023 = vmul.f32 %v907, 1.442695
      %v1024 = vpow.pop %v1023
      %v1025 = vmul.f32 %v908, 1.442695
      %v1026 = vpow.pop %v1025
      %v1027 = vmul.f32 %v909, 1.442695
      %v1028 = vpow.pop %v1027
      %v1029 = vmul.f32 %v910, 1.442695
      %v1030 = vpow.pop %v1029
      %v1031 = vmul.f32 %v911, 1.442695
      %v1032 = vpow.pop %v1031
      %v1033 = vmul.f32 %v912, 1.442695
      %v1034 = vpow.pop %v1033
      %v1035 = vmul.f32 %v913, 1.442695
      %v1036 = vpow.pop %v1035
      %v1037 = vmul.f32 %v914, 1.442695
      %v1038 = vpow.pop %v1037
      %v1039 = vmul.f32 %v915, 1.442695
      %v1040 = vpow.pop %v1039
      %v1041 = vmul.f32 %v916, 1.442695
      %v1042 = vpow.pop %v1041
      %v1043 = vmul.f32 %v917, 1.442695
      %v1044 = vpow.pop %v1043
      %v1045 = vmul.f32 %v918, 1.442695
      %v1046 = vpow.pop %v1045
      %v1047 = vsub.f32 %v920, 1.0
      %v1048 = vsub.f32 %v922, 1.0
      %v1049 = vsub.f32 %v924, 1.0
      %v1050 = vsub.f32 %v926, 1.0
      %v1051 = vsub.f32 %v928, 1.0
      %v1052 = vsub.f32 %v930, 1.0
      %v1053 = vsub.f32 %v932, 1.0
      %v1054 = vsub.f32 %v934, 1.0
      %v1055 = vsub.f32 %v936, 1.0
      %v1056 = vsub.f32 %v938, 1.0
      %v1057 = vsub.f32 %v940, 1.0
      %v1058 = vsub.f32 %v942, 1.0
      %v1059 = vsub.f32 %v944, 1.0
      %v1060 = vsub.f32 %v946, 1.0
      %v1061 = vsub.f32 %v948, 1.0
      %v1062 = vsub.f32 %v950, 1.0
      %v1063 = vsub.f32 %v952, 1.0
      %v1064 = vsub.f32 %v954, 1.0
      %v1065 = vsub.f32 %v956, 1.0
      %v1066 = vsub.f32 %v958, 1.0
      %v1067 = vsub.f32 %v960, 1.0
      %v1068 = vsub.f32 %v962, 1.0
      %v1069 = vsub.f32 %v964, 1.0
      %v1070 = vsub.f32 %v966, 1.0
      %v1071 = vsub.f32 %v968, 1.0
      %v1072 = vsub.f32 %v970, 1.0
      %v1073 = vsub.f32 %v972, 1.0
      %v1074 = vsub.f32 %v974, 1.0
      %v1075 = vsub.f32 %v976, 1.0
      %v1076 = vsub.f32 %v978, 1.0
      %v1077 = vsub.f32 %v980, 1.0
      %v1078 = vsub.f32 %v982, 1.0
      %v1079 = vsub.f32 %v984, 1.0
      %v1080 = vsub.f32 %v986, 1.0
      %v1081 = vsub.f32 %v988, 1.0
      %v1082 = vsub.f32 %v990, 1.0
      %v1083 = vsub.f32 %v992, 1.0
      %v1084 = vsub.f32 %v994, 1.0
      %v1085 = vsub.f32 %v996, 1.0
      %v1086 = vsub.f32 %v998, 1.0
      %v1087 = vsub.f32 %v1000, 1.0
      %v1088 = vsub.f32 %v1002, 1.0
      %v1089 = vsub.f32 %v1004, 1.0
      %v1090 = vsub.f32 %v1006, 1.0
      %v1091 = vsub.f32 %v1008, 1.0
      %v1092 = vsub.f32 %v1010, 1.0
      %v1093 = vsub.f32 %v1012, 1.0
      %v1094 = vsub.f32 %v1014, 1.0
      %v1095 = vsub.f32 %v1016, 1.0
      %v1096 = vsub.f32 %v1018, 1.0
      %v1097 = vsub.f32 %v1020, 1.0
      %v1098 = vsub.f32 %v1022, 1.0
      %v1099 = vsub.f32 %v1024, 1.0
      %v1100 = vsub.f32 %v1026, 1.0
      %v1101 = vsub.f32 %v1028, 1.0
      %v1102 = vsub.f32 %v1030, 1.0
      %v1103 = vsub.f32 %v1032, 1.0
      %v1104 = vsub.f32 %v1034, 1.0
      %v1105 = vsub.f32 %v1036, 1.0
      %v1106 = vsub.f32 %v1038, 1.0
      %v1107 = vsub.f32 %v1040, 1.0
      %v1108 = vsub.f32 %v1042, 1.0
      %v1109 = vsub.f32 %v1044, 1.0
      %v1110 = vsub.f32 %v1046, 1.0
      %v1111 = vsel %vm791, %v537, %v1047
      %v1112 = vsel %vm792, %v540, %v1048
      %v1113 = vsel %vm793, %v545, %v1049
      %v1114 = vsel %vm794, %v548, %v1050
      %v1115 = vsel %vm795, %v553, %v1051
      %v1116 = vsel %vm796, %v556, %v1052
      %v1117 = vsel %vm797, %v561, %v1053
      %v1118 = vsel %vm798, %v564, %v1054
      %v1119 = vsel %vm799, %v569, %v1055
      %v1120 = vsel %vm800, %v572, %v1056
      %v1121 = vsel %vm801, %v577, %v1057
      %v1122 = vsel %vm802, %v580, %v1058
      %v1123 = vsel %vm803, %v585, %v1059
      %v1124 = vsel %vm804, %v588, %v1060
      %v1125 = vsel %vm805, %v593, %v1061
      %v1126 = vsel %vm806, %v596, %v1062
      %v1127 = vsel %vm807, %v601, %v1063
      %v1128 = vsel %vm808, %v604, %v1064
      %v1129 = vsel %vm809, %v609, %v1065
      %v1130 = vsel %vm810, %v612, %v1066
      %v1131 = vsel %vm811, %v617, %v1067
      %v1132 = vsel %vm812, %v620, %v1068
      %v1133 = vsel %vm813, %v625, %v1069
      %v1134 = vsel %vm814, %v628, %v1070
      %v1135 = vsel %vm815, %v633, %v1071
      %v1136 = vsel %vm816, %v636, %v1072
      %v1137 = vsel %vm817, %v641, %v1073
      %v1138 = vsel %vm818, %v644, %v1074
      %v1139 = vsel %vm819, %v649, %v1075
      %v1140 = vsel %vm820, %v652, %v1076
      %v1141 = vsel %vm821, %v657, %v1077
      %v1142 = vsel %vm822, %v660, %v1078
      %v1143 = vsel %vm823, %v665, %v1079
      %v1144 = vsel %vm824, %v668, %v1080
      %v1145 = vsel %vm825, %v673, %v1081
      %v1146 = vsel %vm826, %v676, %v1082
      %v1147 = vsel %vm827, %v681, %v1083
      %v1148 = vsel %vm828, %v684, %v1084
      %v1149 = vsel %vm829, %v689, %v1085
      %v1150 = vsel %vm830, %v692, %v1086
      %v1151 = vsel %vm831, %v697, %v1087
      %v1152 = vsel %vm832, %v700, %v1088
      %v1153 = vsel %vm833, %v705, %v1089
      %v1154 = vsel %vm834, %v708, %v1090
      %v1155 = vsel %vm835, %v713, %v1091
      %v1156 = vsel %vm836, %v716, %v1092
      %v1157 = vsel %vm837, %v721, %v1093
      %v1158 = vsel %vm838, %v724, %v1094
      %v1159 = vsel %vm839, %v729, %v1095
      %v1160 = vsel %vm840, %v732, %v1096
      %v1161 = vsel %vm841, %v737, %v1097
      %v1162 = vsel %vm842, %v740, %v1098
      %v1163 = vsel %vm843, %v745, %v1099
      %v1164 = vsel %vm844, %v748, %v1100
      %v1165 = vsel %vm845, %v753, %v1101
      %v1166 = vsel %vm846, %v756, %v1102
      %v1167 = vsel %vm847, %v761, %v1103
      %v1168 = vsel %vm848, %v764, %v1104
      %v1169 = vsel %vm849, %v769, %v1105
      %v1170 = vsel %vm850, %v772, %v1106
      %v1171 = vsel %vm851, %v777, %v1107
      %v1172 = vsel %vm852, %v780, %v1108
      %v1173 = vsel %vm853, %v785, %v1109
      %v1174 = vsel %vm854, %v788, %v1110
      %v1175 = vpack.c.bf16 %v1112, %v1111
      %v1176 = vpack.c.bf16 %v1114, %v1113
      %v1177 = vpack.c.bf16 %v1116, %v1115
      %v1178 = vpack.c.bf16 %v1118, %v1117
      %v1179 = vpack.c.bf16 %v1120, %v1119
      %v1180 = vpack.c.bf16 %v1122, %v1121
      %v1181 = vpack.c.bf16 %v1124, %v1123
      %v1182 = vpack.c.bf16 %v1126, %v1125
      %v1183 = vpack.c.bf16 %v1128, %v1127
      %v1184 = vpack.c.bf16 %v1130, %v1129
      %v1185 = vpack.c.bf16 %v1132, %v1131
      %v1186 = vpack.c.bf16 %v1134, %v1133
      %v1187 = vpack.c.bf16 %v1136, %v1135
      %v1188 = vpack.c.bf16 %v1138, %v1137
      %v1189 = vpack.c.bf16 %v1140, %v1139
      %v1190 = vpack.c.bf16 %v1142, %v1141
      %v1191 = vpack.c.bf16 %v1144, %v1143
      %v1192 = vpack.c.bf16 %v1146, %v1145
      %v1193 = vpack.c.bf16 %v1148, %v1147
      %v1194 = vpack.c.bf16 %v1150, %v1149
      %v1195 = vpack.c.bf16 %v1152, %v1151
      %v1196 = vpack.c.bf16 %v1154, %v1153
      %v1197 = vpack.c.bf16 %v1156, %v1155
      %v1198 = vpack.c.bf16 %v1158, %v1157
      %v1199 = vpack.c.bf16 %v1160, %v1159
      %v1200 = vpack.c.bf16 %v1162, %v1161
      %v1201 = vpack.c.bf16 %v1164, %v1163
      %v1202 = vpack.c.bf16 %v1166, %v1165
      %v1203 = vpack.c.bf16 %v1168, %v1167
      %v1204 = vpack.c.bf16 %v1170, %v1169
      %v1205 = vpack.c.bf16 %v1172, %v1171
      %v1206 = vpack.c.bf16 %v1174, %v1173
      %v1239 = vunpack.c.l.b16 %v1175
      %v1240 = vunpack.c.h.b16 %v1175
      %v1241 = vunpack.c.l.b16 %v1176
      %v1242 = vunpack.c.h.b16 %v1176
      %v1243 = vunpack.c.l.b16 %v1177
      %v1244 = vunpack.c.h.b16 %v1177
      %v1245 = vunpack.c.l.b16 %v1178
      %v1246 = vunpack.c.h.b16 %v1178
      %v1247 = vunpack.c.l.b16 %v1179
      %v1248 = vunpack.c.h.b16 %v1179
      %v1249 = vunpack.c.l.b16 %v1180
      %v1250 = vunpack.c.h.b16 %v1180
      %v1251 = vunpack.c.l.b16 %v1181
      %v1252 = vunpack.c.h.b16 %v1181
      %v1253 = vunpack.c.l.b16 %v1182
      %v1254 = vunpack.c.h.b16 %v1182
      %v1255 = vunpack.c.l.b16 %v1183
      %v1256 = vunpack.c.h.b16 %v1183
      %v1257 = vunpack.c.l.b16 %v1184
      %v1258 = vunpack.c.h.b16 %v1184
      %v1259 = vunpack.c.l.b16 %v1185
      %v1260 = vunpack.c.h.b16 %v1185
      %v1261 = vunpack.c.l.b16 %v1186
      %v1262 = vunpack.c.h.b16 %v1186
      %v1263 = vunpack.c.l.b16 %v1187
      %v1264 = vunpack.c.h.b16 %v1187
      %v1265 = vunpack.c.l.b16 %v1188
      %v1266 = vunpack.c.h.b16 %v1188
      %v1267 = vunpack.c.l.b16 %v1189
      %v1268 = vunpack.c.h.b16 %v1189
      %v1269 = vunpack.c.l.b16 %v1190
      %v1270 = vunpack.c.h.b16 %v1190
      %v1271 = vunpack.c.l.b16 %v1191
      %v1272 = vunpack.c.h.b16 %v1191
      %v1273 = vunpack.c.l.b16 %v1192
      %v1274 = vunpack.c.h.b16 %v1192
      %v1275 = vunpack.c.l.b16 %v1193
      %v1276 = vunpack.c.h.b16 %v1193
      %v1277 = vunpack.c.l.b16 %v1194
      %v1278 = vunpack.c.h.b16 %v1194
      %v1279 = vunpack.c.l.b16 %v1195
      %v1280 = vunpack.c.h.b16 %v1195
      %v1281 = vunpack.c.l.b16 %v1196
      %v1282 = vunpack.c.h.b16 %v1196
      %v1283 = vunpack.c.l.b16 %v1197
      %v1284 = vunpack.c.h.b16 %v1197
      %v1285 = vunpack.c.l.b16 %v1198
      %v1286 = vunpack.c.h.b16 %v1198
      %v1287 = vunpack.c.l.b16 %v1199
      %v1288 = vunpack.c.h.b16 %v1199
      %v1289 = vunpack.c.l.b16 %v1200
      %v1290 = vunpack.c.h.b16 %v1200
      %v1291 = vunpack.c.l.b16 %v1201
      %v1292 = vunpack.c.h.b16 %v1201
      %v1293 = vunpack.c.l.b16 %v1202
      %v1294 = vunpack.c.h.b16 %v1202
      %v1295 = vunpack.c.l.b16 %v1203
      %v1296 = vunpack.c.h.b16 %v1203
      %v1297 = vunpack.c.l.b16 %v1204
      %v1298 = vunpack.c.h.b16 %v1204
      %v1299 = vunpack.c.l.b16 %v1205
      %v1300 = vunpack.c.h.b16 %v1205
      %v1301 = vunpack.c.l.b16 %v1206
      %v1302 = vunpack.c.h.b16 %v1206
      %v1303 = vpack.c.b16 %v1239, %v1239
      %v1304 = vpack.c.b16 %v1240, %v1240
      %v1305 = vpack.c.b16 %v1241, %v1241
      %v1306 = vpack.c.b16 %v1242, %v1242
      %v1307 = vpack.c.b16 %v1243, %v1243
      %v1308 = vpack.c.b16 %v1244, %v1244
      %v1309 = vpack.c.b16 %v1245, %v1245
      %v1310 = vpack.c.b16 %v1246, %v1246
      %v1311 = vpack.c.b16 %v1247, %v1247
      %v1312 = vpack.c.b16 %v1248, %v1248
      %v1313 = vpack.c.b16 %v1249, %v1249
      %v1314 = vpack.c.b16 %v1250, %v1250
      %v1315 = vpack.c.b16 %v1251, %v1251
      %v1316 = vpack.c.b16 %v1252, %v1252
      %v1317 = vpack.c.b16 %v1253, %v1253
      %v1318 = vpack.c.b16 %v1254, %v1254
      %v1319 = vpack.c.b16 %v1255, %v1255
      %v1320 = vpack.c.b16 %v1256, %v1256
      %v1321 = vpack.c.b16 %v1257, %v1257
      %v1322 = vpack.c.b16 %v1258, %v1258
      %v1323 = vpack.c.b16 %v1259, %v1259
      %v1324 = vpack.c.b16 %v1260, %v1260
      %v1325 = vpack.c.b16 %v1261, %v1261
      %v1326 = vpack.c.b16 %v1262, %v1262
      %v1327 = vpack.c.b16 %v1263, %v1263
      %v1328 = vpack.c.b16 %v1264, %v1264
      %v1329 = vpack.c.b16 %v1265, %v1265
      %v1330 = vpack.c.b16 %v1266, %v1266
      %v1331 = vpack.c.b16 %v1267, %v1267
      %v1332 = vpack.c.b16 %v1268, %v1268
      %v1333 = vpack.c.b16 %v1269, %v1269
      %v1334 = vpack.c.b16 %v1270, %v1270
      %v1335 = vpack.c.b16 %v1271, %v1271
      %v1336 = vpack.c.b16 %v1272, %v1272
      %v1337 = vpack.c.b16 %v1273, %v1273
      %v1338 = vpack.c.b16 %v1274, %v1274
      %v1339 = vpack.c.b16 %v1275, %v1275
      %v1340 = vpack.c.b16 %v1276, %v1276
      %v1341 = vpack.c.b16 %v1277, %v1277
      %v1342 = vpack.c.b16 %v1278, %v1278
      %v1343 = vpack.c.b16 %v1279, %v1279
      %v1344 = vpack.c.b16 %v1280, %v1280
      %v1345 = vpack.c.b16 %v1281, %v1281
      %v1346 = vpack.c.b16 %v1282, %v1282
      %v1347 = vpack.c.b16 %v1283, %v1283
      %v1348 = vpack.c.b16 %v1284, %v1284
      %v1349 = vpack.c.b16 %v1285, %v1285
      %v1350 = vpack.c.b16 %v1286, %v1286
      %v1351 = vpack.c.b16 %v1287, %v1287
      %v1352 = vpack.c.b16 %v1288, %v1288
      %v1353 = vpack.c.b16 %v1289, %v1289
      %v1354 = vpack.c.b16 %v1290, %v1290
      %v1355 = vpack.c.b16 %v1291, %v1291
      %v1356 = vpack.c.b16 %v1292, %v1292
      %v1357 = vpack.c.b16 %v1293, %v1293
      %v1358 = vpack.c.b16 %v1294, %v1294
      %v1359 = vpack.c.b16 %v1295, %v1295
      %v1360 = vpack.c.b16 %v1296, %v1296
      %v1361 = vpack.c.b16 %v1297, %v1297
      %v1362 = vpack.c.b16 %v1298, %v1298
      %v1363 = vpack.c.b16 %v1299, %v1299
      %v1364 = vpack.c.b16 %v1300, %v1300
      %v1365 = vpack.c.b16 %v1301, %v1301
      %v1366 = vpack.c.b16 %v1302, %v1302
      %1431 = vst [vmem:[%s172] sm:$0xf] %v1303
      %1432 = vst [vmem:[%s172 + $0x4] sm:$0xf] %v1304
      %1433 = vst [vmem:[%s172 + $0x8] sm:$0xf] %v1305
      %1434 = vst [vmem:[%s172 + $0xc] sm:$0xf] %v1306
      %1435 = vst [vmem:[%s172 + $0x10] sm:$0xf] %v1307
      %1436 = vst [vmem:[%s172 + $0x14] sm:$0xf] %v1308
      %1437 = vst [vmem:[%s172 + $0x18] sm:$0xf] %v1309
      %1438 = vst [vmem:[%s172 + $0x1c] sm:$0xf] %v1310
      %1439 = vst [vmem:[%s172 + $0x20] sm:$0xf] %v1311
      %1440 = vst [vmem:[%s172 + $0x24] sm:$0xf] %v1312
      %1441 = vst [vmem:[%s172 + $0x28] sm:$0xf] %v1313
      %1442 = vst [vmem:[%s172 + $0x2c] sm:$0xf] %v1314
      %1443 = vst [vmem:[%s172 + $0x30] sm:$0xf] %v1315
      %1444 = vst [vmem:[%s172 + $0x34] sm:$0xf] %v1316
      %1445 = vst [vmem:[%s172 + $0x38] sm:$0xf] %v1317
      %1446 = vst [vmem:[%s172 + $0x3c] sm:$0xf] %v1318
      %1447 = vst [vmem:[%s172 + $0x40] sm:$0xf] %v1319
      %1448 = vst [vmem:[%s172 + $0x44] sm:$0xf] %v1320
      %1449 = vst [vmem:[%s172 + $0x48] sm:$0xf] %v1321
      %1450 = vst [vmem:[%s172 + $0x4c] sm:$0xf] %v1322
      %1451 = vst [vmem:[%s172 + $0x50] sm:$0xf] %v1323
      %1452 = vst [vmem:[%s172 + $0x54] sm:$0xf] %v1324
      %1453 = vst [vmem:[%s172 + $0x58] sm:$0xf] %v1325
      %1454 = vst [vmem:[%s172 + $0x5c] sm:$0xf] %v1326
      %1455 = vst [vmem:[%s172 + $0x60] sm:$0xf] %v1327
      %1456 = vst [vmem:[%s172 + $0x64] sm:$0xf] %v1328
      %1457 = vst [vmem:[%s172 + $0x68] sm:$0xf] %v1329
      %1458 = vst [vmem:[%s172 + $0x6c] sm:$0xf] %v1330
      %1459 = vst [vmem:[%s172 + $0x70] sm:$0xf] %v1331
      %1460 = vst [vmem:[%s172 + $0x74] sm:$0xf] %v1332
      %1461 = vst [vmem:[%s172 + $0x78] sm:$0xf] %v1333
      %1462 = vst [vmem:[%s172 + $0x7c] sm:$0xf] %v1334
      %1463 = vst [vmem:[%s172 + $0x80] sm:$0xf] %v1335
      %1464 = vst [vmem:[%s172 + $0x84] sm:$0xf] %v1336
      %1465 = vst [vmem:[%s172 + $0x88] sm:$0xf] %v1337
      %1466 = vst [vmem:[%s172 + $0x8c] sm:$0xf] %v1338
      %1467 = vst [vmem:[%s172 + $0x90] sm:$0xf] %v1339
      %1468 = vst [vmem:[%s172 + $0x94] sm:$0xf] %v1340
      %1469 = vst [vmem:[%s172 + $0x98] sm:$0xf] %v1341
      %1470 = vst [vmem:[%s172 + $0x9c] sm:$0xf] %v1342
      %1471 = vst [vmem:[%s172 + $0xa0] sm:$0xf] %v1343
      %1472 = vst [vmem:[%s172 + $0xa4] sm:$0xf] %v1344
      %1473 = vst [vmem:[%s172 + $0xa8] sm:$0xf] %v1345
      %1474 = vst [vmem:[%s172 + $0xac] sm:$0xf] %v1346
      %1475 = vst [vmem:[%s172 + $0xb0] sm:$0xf] %v1347
      %1476 = vst [vmem:[%s172 + $0xb4] sm:$0xf] %v1348
      %1477 = vst [vmem:[%s172 + $0xb8] sm:$0xf] %v1349
      %1478 = vst [vmem:[%s172 + $0xbc] sm:$0xf] %v1350
      %1479 = vst [vmem:[%s172 + $0xc0] sm:$0xf] %v1351
      %1480 = vst [vmem:[%s172 + $0xc4] sm:$0xf] %v1352
      %1481 = vst [vmem:[%s172 + $0xc8] sm:$0xf] %v1353
      %1482 = vst [vmem:[%s172 + $0xcc] sm:$0xf] %v1354
      %1483 = vst [vmem:[%s172 + $0xd0] sm:$0xf] %v1355
      %1484 = vst [vmem:[%s172 + $0xd4] sm:$0xf] %v1356
      %1485 = vst [vmem:[%s172 + $0xd8] sm:$0xf] %v1357
      %1486 = vst [vmem:[%s172 + $0xdc] sm:$0xf] %v1358
      %1487 = vst [vmem:[%s172 + $0xe0] sm:$0xf] %v1359
      %1488 = vst [vmem:[%s172 + $0xe4] sm:$0xf] %v1360
      %1489 = vst [vmem:[%s172 + $0xe8] sm:$0xf] %v1361
      %1490 = vst [vmem:[%s172 + $0xec] sm:$0xf] %v1362
      %1491 = vst [vmem:[%s172 + $0xf0] sm:$0xf] %v1363
      %1492 = vst [vmem:[%s172 + $0xf4] sm:$0xf] %v1364
      %1493 = vst [vmem:[%s172 + $0xf8] sm:$0xf] %v1365
      %1494 = vst [vmem:[%s172 + $0xfc] sm:$0xf] %v1366
      %s1495 = smul.u32 64, %s14
      %p1496 = scmp.lt.s32.totalorder %s1495, 255
      %s1497 = scalar_select %p1496, %s1495, 255
      %s1498 = smul.addr %s1497, 4
      %s1499 = scalar_lea.vmem %s3, %s1498
      // Predicated region
      $region33: #{nvidia_net_forward.6} parent=31 // pred_check
        %p1500 = pneg %p100
      $region34: #{nvidia_net_forward.6} parent=31 // pred_check_branch
        %1502 = sbr.rel (%p1500) target = $region36
      $region35: #{nvidia_net_forward.6} parent=31 // pred_region
        %s1503 = smul.u32 64, %s14
      $region36: #{nvidia_net_forward.6} parent=31 // pred_fallthru
        _
    $region32: #{nvidia_net_forward.6} parent=5 // pred_fallthru
      _
    %p1504 = scmp.le.s32.totalorder 2, %s9
    // Predicated region
    $region37: #{nvidia_net_forward.6} parent=5 // pred_check
      %p1505 = pneg %p1504
    $region38: #{nvidia_net_forward.6} parent=5 // pred_check_branch
      %1507 = sbr.rel (%p1505) target = $region40
    $region39: #{nvidia_net_forward.6} parent=5 // pred_region
      %s1508 = ssub.s32 %s9, 2
      // Predicated region
      $region41: #{nvidia_net_forward.6} parent=39 // pred_check
        %p1509 = pneg %p106
      $region42: #{nvidia_net_forward.6} parent=39 // pred_check_branch
        %1511 = sbr.rel (%p1509) target = $region44
      $region43: #{nvidia_net_forward.6} parent=39 // pred_region
        %s1512 = smul.u32 64, %s15
        %p1513 = scmp.lt.s32.totalorder %s1512, 255
        %s1514 = scalar_select %p1513, %s1512, 255
        %s1515 = smul.addr %s1514, 4
        %s1516 = scalar_lea.vmem %s3, %s1515
      $region44: #{nvidia_net_forward.6} parent=39 // pred_fallthru
        _
    $region40: #{nvidia_net_forward.6} parent=5 // pred_fallthru
      _
  $region6: #{nvidia_net_forward.6} parent=0 // loop_footer
    %s13 = sadd.s32 1, %s9
  $region7: #{nvidia_net_forward.6} parent=0 // loop_footer_branch
    %8 = sbr.rel target = $region3
  $region8: #{nvidia_net_forward.6} parent=0 // loop_exit
    _

// kernel: nvidia_net_forward.7
$region0: #{nvidia_net_forward.7}
  #allocation0 [shape = 'u32[]', space=smem, size = 0x4, offset = 0x4, fixed_abs, tag = 'smem constant byte address 0x4 - core index']
  #allocation1 [shape = 'u32[144,128]{1,0:T(1,128)}', space=vmem, size = 0x12000, scoped, tag = 'internal scratch']
  %s0 = inlined_call_operand.vmem [shape: bf16[512,640], index: 0, kind: input, shape index: {}]
  %s1 = inlined_call_operand.vmem [shape: bf16[640,128], index: 1, kind: input, shape index: {}]
  %s2 = inlined_call_operand.vmem [shape: f32[1,128], index: 2, kind: input, shape index: {}]
  %s3 = inlined_call_operand.vmem [shape: bf16[512,128], index: 3, kind: output, shape index: {}]
  %s4 = sld [smem:[#allocation0]]
  $region45: #{nvidia_net_forward.7} parent=0
    _
  %s6 = ssub.s32 1, %s4
  %s7 = scalar_select 0, %s6, %s4
  loop: start=0, step=1, limit=4
  $region2: #{nvidia_net_forward.7} parent=0 // loop_pre_header
    _
  $region3: #{nvidia_net_forward.7} parent=0 // loop_header
    %s9 = sphi 0, %s13
    %p10 = scmp.ge.s32.totalorder %s9, 4
    %s19 = sphi 0, %s21
    %s22 = sphi 0, %s19
    %s23 = sphi 0, %s22
    %s39 = sphi 0, %s23
    %s43 = sphi 0, %s43
    %s45 = sphi 0, %s43
    %s46 = sphi 0, %s45
    %s60 = sphi 0, %s46
    %s64 = sphi 0, %s64
    %s66 = sphi 0, %s64
    %s67 = sphi 0, %s66
    %s81 = sphi 0, %s67
    %s87 = sphi 0, %s89
    %s90 = sphi 0, %s87
    %s91 = sphi 0, %s90
    %s107 = sphi 0, %s91
  $region4: #{nvidia_net_forward.7} parent=0 // loop_header_branch
    %12 = sbr.rel (%p10) target = $region8
  $region5: #{nvidia_net_forward.7} parent=0 // loop_body
    %s14 = ssub.s32 %s9, 1
    %s15 = ssub.s32 %s9, 2
    %s16 = sadd.s32 %s9, 1
    %s17 = ssub.s32 %s9, %s16
    %p18 = scmp.eq.s32.totalorder %s17, 0
    %s20 = sadd.s32 %s19, 1
    %s21 = scalar_select %p18, %s19, %s20
    %p24 = pneg %p18
    %p25 = scmp.eq.s32.totalorder %s9, 1
    %p26 = por %p24, %p25
    %p27 = scmp.ne.s32.totalorder %s19, %s22
    %p28 = scmp.eq.s32.totalorder %s9, 0
    %p29 = por %p27, %p28
    %p30 = scmp.ne.s32.totalorder %s19, %s22
    %p31 = scmp.eq.s32.totalorder %s14, 1
    %p32 = por %p30, %p31
    %p33 = scmp.ne.s32.totalorder %s22, %s23
    %p34 = scmp.eq.s32.totalorder %s14, 0
    %p35 = por %p33, %p34
    %p36 = scmp.ne.s32.totalorder %s22, %s23
    %p37 = scmp.eq.s32.totalorder %s15, 1
    %p38 = por %p36, %p37
    %p40 = scmp.ne.s32.totalorder %s23, %s39
    %p41 = scmp.eq.s32.totalorder %s15, 0
    %p42 = por %p40, %p41
    %s44 = sadd.s32 %s43, 1
    %p47 = scmp.eq.s32.totalorder %s9, 1
    %p48 = scmp.ne.s32.totalorder %s43, %s45
    %p49 = scmp.eq.s32.totalorder %s9, 0
    %p50 = por %p48, %p49
    %p51 = scmp.ne.s32.totalorder %s43, %s45
    %p52 = scmp.eq.s32.totalorder %s14, 1
    %p53 = por %p51, %p52
    %p54 = scmp.ne.s32.totalorder %s45, %s46
    %p55 = scmp.eq.s32.totalorder %s14, 0
    %p56 = por %p54, %p55
    %p57 = scmp.ne.s32.totalorder %s45, %s46
    %p58 = scmp.eq.s32.totalorder %s15, 1
    %p59 = por %p57, %p58
    %p61 = scmp.ne.s32.totalorder %s46, %s60
    %p62 = scmp.eq.s32.totalorder %s15, 0
    %p63 = por %p61, %p62
    %s65 = sadd.s32 %s64, 1
    %p68 = scmp.eq.s32.totalorder %s9, 1
    %p69 = scmp.ne.s32.totalorder %s64, %s66
    %p70 = scmp.eq.s32.totalorder %s9, 0
    %p71 = por %p69, %p70
    %p72 = scmp.ne.s32.totalorder %s64, %s66
    %p73 = scmp.eq.s32.totalorder %s14, 1
    %p74 = por %p72, %p73
    %p75 = scmp.ne.s32.totalorder %s66, %s67
    %p76 = scmp.eq.s32.totalorder %s14, 0
    %p77 = por %p75, %p76
    %p78 = scmp.ne.s32.totalorder %s66, %s67
    %p79 = scmp.eq.s32.totalorder %s15, 1
    %p80 = por %p78, %p79
    %p82 = scmp.ne.s32.totalorder %s67, %s81
    %p83 = scmp.eq.s32.totalorder %s15, 0
    %p84 = por %p82, %p83
    %s85 = ssub.s32 %s9, %s16
    %p86 = scmp.eq.s32.totalorder %s85, 0
    %s88 = sadd.s32 %s87, 1
    %s89 = scalar_select %p86, %s87, %s88
    %p92 = pneg %p86
    %p93 = scmp.eq.s32.totalorder %s9, 1
    %p94 = por %p92, %p93
    %p95 = scmp.ne.s32.totalorder %s87, %s90
    %p96 = scmp.eq.s32.totalorder %s9, 0
    %p97 = por %p95, %p96
    %p98 = scmp.ne.s32.totalorder %s87, %s90
    %p99 = scmp.eq.s32.totalorder %s14, 1
    %p100 = por %p98, %p99
    %p101 = scmp.ne.s32.totalorder %s90, %s91
    %p102 = scmp.eq.s32.totalorder %s14, 0
    %p103 = por %p101, %p102
    %p104 = scmp.ne.s32.totalorder %s90, %s91
    %p105 = scmp.eq.s32.totalorder %s15, 1
    %p106 = por %p104, %p105
    %p108 = scmp.ne.s32.totalorder %s91, %s107
    %p109 = scmp.eq.s32.totalorder %s15, 0
    %p110 = por %p108, %p109
    %p111 = scmp.le.s32.totalorder 1, %s9
    %p112 = scmp.lt.s32.totalorder %s9, 3
    %p113 = pnand %p111, %p112
    %p114 = pneg %p113
    // Predicated region
    $region9: #{nvidia_net_forward.7} parent=5 // pred_check
      _
    $region10: #{nvidia_net_forward.7} parent=5 // pred_check_branch
      %116 = sbr.rel (%p113) target = $region12
    $region11: #{nvidia_net_forward.7} parent=5 // pred_region
      %s117 = ssub.s32 %s9, 1
      // Predicated region
      $region13: #{nvidia_net_forward.7} parent=11 // pred_check
        %p118 = pneg %p56
      $region14: #{nvidia_net_forward.7} parent=11 // pred_check_branch
        %120 = sbr.rel (%p118) target = $region16
      $region15: #{nvidia_net_forward.7} parent=11 // pred_region
        _
      $region16: #{nvidia_net_forward.7} parent=11 // pred_fallthru
        _
      // Predicated region
      $region17: #{nvidia_net_forward.7} parent=11 // pred_check
        %p121 = pneg %p77
      $region18: #{nvidia_net_forward.7} parent=11 // pred_check_branch
        %123 = sbr.rel (%p121) target = $region20
      $region19: #{nvidia_net_forward.7} parent=11 // pred_region
        _
      $region20: #{nvidia_net_forward.7} parent=11 // pred_fallthru
        _
    $region12: #{nvidia_net_forward.7} parent=5 // pred_fallthru
      _
    %p124 = scmp.lt.s32.totalorder %s9, 2
    // Predicated region
    $region21: #{nvidia_net_forward.7} parent=5 // pred_check
      %p125 = pneg %p124
    $region22: #{nvidia_net_forward.7} parent=5 // pred_check_branch
      %127 = sbr.rel (%p125) target = $region24
    $region23: #{nvidia_net_forward.7} parent=5 // pred_region
      // Predicated region
      $region25: #{nvidia_net_forward.7} parent=23 // pred_check
        %p128 = pneg %p29
      $region26: #{nvidia_net_forward.7} parent=23 // pred_check_branch
        %130 = sbr.rel (%p128) target = $region28
      $region27: #{nvidia_net_forward.7} parent=23 // pred_region
        %s131 = smul.u32 32, %s9
        %p132 = scmp.lt.s32.totalorder %s131, 63
        %s133 = scalar_select %p132, %s131, 63
        %s134 = smul.addr %s133, 5
        %s135 = smul.addr %s134, 4
        %s136 = scalar_lea.vmem %s0, %s135
        %s137 = smul.u32 32, %s9
      $region28: #{nvidia_net_forward.7} parent=23 // pred_fallthru
        _
    $region24: #{nvidia_net_forward.7} parent=5 // pred_fallthru
      _
    %p138 = scmp.le.s32.totalorder 1, %s9
    %p139 = scmp.lt.s32.totalorder %s9, 3
    %p140 = pnand %p138, %p139
    %p141 = pneg %p140
    // Predicated region
    $region29: #{nvidia_net_forward.7} parent=5 // pred_check
      _
    $region30: #{nvidia_net_forward.7} parent=5 // pred_check_branch
      %143 = sbr.rel (%p140) target = $region32
    $region31: #{nvidia_net_forward.7} parent=5 // pred_region
      %s144 = ssub.s32 %s9, 1
      %s145 = smul.u32 32, %s14
      %p146 = scmp.lt.s32.totalorder %s145, 63
      %s147 = scalar_select %p146, %s145, 63
      %s148 = smul.addr %s147, 5
      %s149 = smul.addr %s148, 4
      %s150 = scalar_lea.vmem %s0, %s149
      %p151 = pneg %p35
      %p152 = pneg %p32
      %p153 = pneg %p56
      %p154 = pneg %p53
      %p155 = pneg %p77
      %p156 = pneg %p74
      %p157 = pneg %p103
      %p158 = pneg %p100
      %s159 = smul.u32 32, %s14
      %p160 = scmp.lt.s32.totalorder %s159, 63
      %s161 = scalar_select %p160, %s159, 63
      %s162 = smul.addr %s161, 4
      %s163 = scalar_lea.vmem %s3, %s162
      %s164 = smul.u32 32, %s14
      %p165 = scmp.lt.s32.totalorder %s164, 63
      %s166 = scalar_select %p165, %s164, 63
      %s167 = smul.addr %s166, 5
      %s168 = smul.addr %s167, 4
      %s169 = scalar_lea.vmem %s0, %s168
      %s170 = smul.u32 32, %s14
      %s171 = smul.u32 32, %s14
      %p172 = scmp.lt.s32.totalorder %s171, 63
      %s173 = scalar_select %p172, %s171, 63
      %s174 = smul.addr %s173, 4
      %s175 = scalar_lea.vmem %s3, %s174
      %s176 = smul.u32 32, %s14
      %v178 = vld [vmem:[%s169] sm:$0xff]
      %v179 = vld [vmem:[%s169 + $0x8] sm:$0xff]
      %v180 = vld [vmem:[%s169 + $0x10] sm:$0xf]
      %v181 = vld [vmem:[%s169 + $0x14] sm:$0xff]
      %v182 = vld [vmem:[%s169 + $0x1c] sm:$0xff]
      %v183 = vld [vmem:[%s169 + $0x24] sm:$0xf]
      %v184 = vld [vmem:[%s169 + $0x28] sm:$0xff]
      %v185 = vld [vmem:[%s169 + $0x30] sm:$0xff]
      %v186 = vld [vmem:[%s169 + $0x38] sm:$0xf]
      %v187 = vld [vmem:[%s169 + $0x3c] sm:$0xff]
      %v188 = vld [vmem:[%s169 + $0x44] sm:$0xff]
      %v189 = vld [vmem:[%s169 + $0x4c] sm:$0xf]
      %v190 = vld [vmem:[%s169 + $0x50] sm:$0xff]
      %v191 = vld [vmem:[%s169 + $0x58] sm:$0xff]
      %v192 = vld [vmem:[%s169 + $0x60] sm:$0xf]
      %v193 = vld [vmem:[%s169 + $0x64] sm:$0xff]
      %v194 = vld [vmem:[%s169 + $0x6c] sm:$0xff]
      %v195 = vld [vmem:[%s169 + $0x74] sm:$0xf]
      %v196 = vld [vmem:[%s169 + $0x78] sm:$0xff]
      %v197 = vld [vmem:[%s169 + $0x80] sm:$0xff]
      %v198 = vld [vmem:[%s169 + $0x88] sm:$0xf]
      %v199 = vld [vmem:[%s169 + $0x8c] sm:$0xff]
      %v200 = vld [vmem:[%s169 + $0x94] sm:$0xff]
      %v201 = vld [vmem:[%s169 + $0x9c] sm:$0xf]
      %v202 = vld [vmem:[%s169 + $0xa0] sm:$0xff]
      %v203 = vld [vmem:[%s169 + $0xa8] sm:$0xff]
      %v204 = vld [vmem:[%s169 + $0xb0] sm:$0xf]
      %v205 = vld [vmem:[%s169 + $0xb4] sm:$0xff]
      %v206 = vld [vmem:[%s169 + $0xbc] sm:$0xff]
      %v207 = vld [vmem:[%s169 + $0xc4] sm:$0xf]
      %v208 = vld [vmem:[%s169 + $0xc8] sm:$0xff]
      %v209 = vld [vmem:[%s169 + $0xd0] sm:$0xff]
      %v210 = vld [vmem:[%s169 + $0xd8] sm:$0xf]
      %v211 = vld [vmem:[%s169 + $0xdc] sm:$0xff]
      %v212 = vld [vmem:[%s169 + $0xe4] sm:$0xff]
      %v213 = vld [vmem:[%s169 + $0xec] sm:$0xf]
      %v214 = vld [vmem:[%s169 + $0xf0] sm:$0xff]
      %v215 = vld [vmem:[%s169 + $0xf8] sm:$0xff]
      %v216 = vld [vmem:[%s169 + $0x100] sm:$0xf]
      %v217 = vld [vmem:[%s169 + $0x104] sm:$0xff]
      %v218 = vld [vmem:[%s169 + $0x10c] sm:$0xff]
      %v219 = vld [vmem:[%s169 + $0x114] sm:$0xf]
      %v220 = vld [vmem:[%s169 + $0x118] sm:$0xff]
      %v221 = vld [vmem:[%s169 + $0x120] sm:$0xff]
      %v222 = vld [vmem:[%s169 + $0x128] sm:$0xf]
      %v223 = vld [vmem:[%s169 + $0x12c] sm:$0xff]
      %v224 = vld [vmem:[%s169 + $0x134] sm:$0xff]
      %v225 = vld [vmem:[%s169 + $0x13c] sm:$0xf]
      %v226 = vld [vmem:[%s169 + $0x140] sm:$0xff]
      %v227 = vld [vmem:[%s169 + $0x148] sm:$0xff]
      %v228 = vld [vmem:[%s169 + $0x150] sm:$0xf]
      %v229 = vld [vmem:[%s169 + $0x154] sm:$0xff]
      %v230 = vld [vmem:[%s169 + $0x15c] sm:$0xff]
      %v231 = vld [vmem:[%s169 + $0x164] sm:$0xf]
      %v232 = vld [vmem:[%s169 + $0x168] sm:$0xff]
      %v233 = vld [vmem:[%s169 + $0x170] sm:$0xff]
      %v234 = vld [vmem:[%s169 + $0x178] sm:$0xf]
      %v235 = vld [vmem:[%s169 + $0x17c] sm:$0xff]
      %v236 = vld [vmem:[%s169 + $0x184] sm:$0xff]
      %v237 = vld [vmem:[%s169 + $0x18c] sm:$0xf]
      %v238 = vld [vmem:[%s169 + $0x190] sm:$0xff]
      %v239 = vld [vmem:[%s169 + $0x198] sm:$0xff]
      %v240 = vld [vmem:[%s169 + $0x1a0] sm:$0xf]
      %v241 = vld [vmem:[%s169 + $0x1a4] sm:$0xff]
      %v242 = vld [vmem:[%s169 + $0x1ac] sm:$0xff]
      %v243 = vld [vmem:[%s169 + $0x1b4] sm:$0xf]
      %v244 = vld [vmem:[%s169 + $0x1b8] sm:$0xff]
      %v245 = vld [vmem:[%s169 + $0x1c0] sm:$0xff]
      %v246 = vld [vmem:[%s169 + $0x1c8] sm:$0xf]
      %v247 = vld [vmem:[%s169 + $0x1cc] sm:$0xff]
      %v248 = vld [vmem:[%s169 + $0x1d4] sm:$0xff]
      %v249 = vld [vmem:[%s169 + $0x1dc] sm:$0xf]
      %v250 = vld [vmem:[%s169 + $0x1e0] sm:$0xff]
      %v251 = vld [vmem:[%s169 + $0x1e8] sm:$0xff]
      %v252 = vld [vmem:[%s169 + $0x1f0] sm:$0xf]
      %v253 = vld [vmem:[%s169 + $0x1f4] sm:$0xff]
      %v254 = vld [vmem:[%s169 + $0x1fc] sm:$0xff]
      %v255 = vld [vmem:[%s169 + $0x204] sm:$0xf]
      %v256 = vld [vmem:[%s169 + $0x208] sm:$0xff]
      %v257 = vld [vmem:[%s169 + $0x210] sm:$0xff]
      %v258 = vld [vmem:[%s169 + $0x218] sm:$0xf]
      %v259 = vld [vmem:[%s169 + $0x21c] sm:$0xff]
      %v260 = vld [vmem:[%s169 + $0x224] sm:$0xff]
      %v261 = vld [vmem:[%s169 + $0x22c] sm:$0xf]
      %v262 = vld [vmem:[%s169 + $0x230] sm:$0xff]
      %v263 = vld [vmem:[%s169 + $0x238] sm:$0xff]
      %v264 = vld [vmem:[%s169 + $0x240] sm:$0xf]
      %v265 = vld [vmem:[%s169 + $0x244] sm:$0xff]
      %v266 = vld [vmem:[%s169 + $0x24c] sm:$0xff]
      %v267 = vld [vmem:[%s169 + $0x254] sm:$0xf]
      %v268 = vld [vmem:[%s169 + $0x258] sm:$0xff]
      %v269 = vld [vmem:[%s169 + $0x260] sm:$0xff]
      %v270 = vld [vmem:[%s169 + $0x268] sm:$0xf]
      %v271 = vld [vmem:[%s169 + $0x26c] sm:$0xff]
      %v272 = vld [vmem:[%s169 + $0x274] sm:$0xff]
      %v273 = vld [vmem:[%s169 + $0x27c] sm:$0xf]
      %v274 = vld [vmem:[%s1] sm:$0xf]
      %v275 = vld [vmem:[%s1 + $0x4] sm:$0xf]
      %v276 = vld [vmem:[%s1 + $0x8] sm:$0xf]
      %v277 = vld [vmem:[%s1 + $0xc] sm:$0xf]
      %v278 = vld [vmem:[%s1 + $0x10] sm:$0xf]
      %v279 = vld [vmem:[%s1 + $0x14] sm:$0xf]
      %v280 = vld [vmem:[%s1 + $0x18] sm:$0xf]
      %v281 = vld [vmem:[%s1 + $0x1c] sm:$0xf]
      %v282 = vld [vmem:[%s1 + $0x20] sm:$0xf]
      %v283 = vld [vmem:[%s1 + $0x24] sm:$0xf]
      %v284 = vld [vmem:[%s1 + $0x28] sm:$0xf]
      %v285 = vld [vmem:[%s1 + $0x2c] sm:$0xf]
      %v286 = vld [vmem:[%s1 + $0x30] sm:$0xf]
      %v287 = vld [vmem:[%s1 + $0x34] sm:$0xf]
      %v288 = vld [vmem:[%s1 + $0x38] sm:$0xf]
      %v289 = vld [vmem:[%s1 + $0x3c] sm:$0xf]
      %v290 = vld [vmem:[%s1 + $0x40] sm:$0xf]
      %v291 = vld [vmem:[%s1 + $0x44] sm:$0xf]
      %v292 = vld [vmem:[%s1 + $0x48] sm:$0xf]
      %v293 = vld [vmem:[%s1 + $0x4c] sm:$0xf]
      %v294 = vld [vmem:[%s1 + $0x50] sm:$0xf]
      %v295 = vld [vmem:[%s1 + $0x54] sm:$0xf]
      %v296 = vld [vmem:[%s1 + $0x58] sm:$0xf]
      %v297 = vld [vmem:[%s1 + $0x5c] sm:$0xf]
      %v298 = vld [vmem:[%s1 + $0x60] sm:$0xf]
      %v299 = vld [vmem:[%s1 + $0x64] sm:$0xf]
      %v300 = vld [vmem:[%s1 + $0x68] sm:$0xf]
      %v301 = vld [vmem:[%s1 + $0x6c] sm:$0xf]
      %v302 = vld [vmem:[%s1 + $0x70] sm:$0xf]
      %v303 = vld [vmem:[%s1 + $0x74] sm:$0xf]
      %v304 = vld [vmem:[%s1 + $0x78] sm:$0xf]
      %v305 = vld [vmem:[%s1 + $0x7c] sm:$0xf]
      %v306 = vld [vmem:[%s1 + $0x80] sm:$0xf]
      %v307 = vld [vmem:[%s1 + $0x84] sm:$0xf]
      %v308 = vld [vmem:[%s1 + $0x88] sm:$0xf]
      %v309 = vld [vmem:[%s1 + $0x8c] sm:$0xf]
      %v310 = vld [vmem:[%s1 + $0x90] sm:$0xf]
      %v311 = vld [vmem:[%s1 + $0x94] sm:$0xf]
      %v312 = vld [vmem:[%s1 + $0x98] sm:$0xf]
      %v313 = vld [vmem:[%s1 + $0x9c] sm:$0xf]
      %v314 = vld [vmem:[%s1 + $0xa0] sm:$0xf]
      %v315 = vld [vmem:[%s1 + $0xa4] sm:$0xf]
      %v316 = vld [vmem:[%s1 + $0xa8] sm:$0xf]
      %v317 = vld [vmem:[%s1 + $0xac] sm:$0xf]
      %v318 = vld [vmem:[%s1 + $0xb0] sm:$0xf]
      %v319 = vld [vmem:[%s1 + $0xb4] sm:$0xf]
      %v320 = vld [vmem:[%s1 + $0xb8] sm:$0xf]
      %v321 = vld [vmem:[%s1 + $0xbc] sm:$0xf]
      %v322 = vld [vmem:[%s1 + $0xc0] sm:$0xf]
      %v323 = vld [vmem:[%s1 + $0xc4] sm:$0xf]
      %v324 = vld [vmem:[%s1 + $0xc8] sm:$0xf]
      %v325 = vld [vmem:[%s1 + $0xcc] sm:$0xf]
      %v326 = vld [vmem:[%s1 + $0xd0] sm:$0xf]
      %v327 = vld [vmem:[%s1 + $0xd4] sm:$0xf]
      %v328 = vld [vmem:[%s1 + $0xd8] sm:$0xf]
      %v329 = vld [vmem:[%s1 + $0xdc] sm:$0xf]
      %v330 = vld [vmem:[%s1 + $0xe0] sm:$0xf]
      %v331 = vld [vmem:[%s1 + $0xe4] sm:$0xf]
      %v332 = vld [vmem:[%s1 + $0xe8] sm:$0xf]
      %v333 = vld [vmem:[%s1 + $0xec] sm:$0xf]
      %v334 = vld [vmem:[%s1 + $0xf0] sm:$0xf]
      %v335 = vld [vmem:[%s1 + $0xf4] sm:$0xf]
      %v336 = vld [vmem:[%s1 + $0xf8] sm:$0xf]
      %v337 = vld [vmem:[%s1 + $0xfc] sm:$0xf]
      %v338 = vld [vmem:[%s1 + $0x100] sm:$0xf]
      %v339 = vld [vmem:[%s1 + $0x104] sm:$0xf]
      %v340 = vld [vmem:[%s1 + $0x108] sm:$0xf]
      %v341 = vld [vmem:[%s1 + $0x10c] sm:$0xf]
      %v342 = vld [vmem:[%s1 + $0x110] sm:$0xf]
      %v343 = vld [vmem:[%s1 + $0x114] sm:$0xf]
      %v344 = vld [vmem:[%s1 + $0x118] sm:$0xf]
      %v345 = vld [vmem:[%s1 + $0x11c] sm:$0xf]
      %v346 = vld [vmem:[%s1 + $0x120] sm:$0xf]
      %v347 = vld [vmem:[%s1 + $0x124] sm:$0xf]
      %v348 = vld [vmem:[%s1 + $0x128] sm:$0xf]
      %v349 = vld [vmem:[%s1 + $0x12c] sm:$0xf]
      %v350 = vld [vmem:[%s1 + $0x130] sm:$0xf]
      %v351 = vld [vmem:[%s1 + $0x134] sm:$0xf]
      %v352 = vld [vmem:[%s1 + $0x138] sm:$0xf]
      %v353 = vld [vmem:[%s1 + $0x13c] sm:$0xf]
      %v354 = vld [vmem:[%s2] sm:$0x1]
      %v356 = vlaneseq
      %v357 = vshrl.u32 %v356, 7
      %v358 = vsub.s32 0, %v357
      %v359 = vrot.slane %v354, %v358
      %v457 = vunpack.c.l.b16 %v178
      %v458 = vunpack.c.h.b16 %v178
      %v459 = vunpack.c.l.b16 %v179
      %v460 = vunpack.c.h.b16 %v179
      %v461 = vunpack.c.l.b16 %v180
      %v462 = vunpack.c.l.b16 %v181
      %v463 = vunpack.c.h.b16 %v181
      %v464 = vunpack.c.l.b16 %v182
      %v465 = vunpack.c.h.b16 %v182
      %v466 = vunpack.c.l.b16 %v183
      %v467 = vunpack.c.l.b16 %v184
      %v468 = vunpack.c.h.b16 %v184
      %v469 = vunpack.c.l.b16 %v185
      %v470 = vunpack.c.h.b16 %v185
      %v471 = vunpack.c.l.b16 %v186
      %v472 = vunpack.c.l.b16 %v187
      %v473 = vunpack.c.h.b16 %v187
      %v474 = vunpack.c.l.b16 %v188
      %v475 = vunpack.c.h.b16 %v188
      %v476 = vunpack.c.l.b16 %v189
      %v477 = vunpack.c.l.b16 %v190
      %v478 = vunpack.c.h.b16 %v190
      %v479 = vunpack.c.l.b16 %v191
      %v480 = vunpack.c.h.b16 %v191
      %v481 = vunpack.c.l.b16 %v192
      %v482 = vunpack.c.l.b16 %v193
      %v483 = vunpack.c.h.b16 %v193
      %v484 = vunpack.c.l.b16 %v194
      %v485 = vunpack.c.h.b16 %v194
      %v486 = vunpack.c.l.b16 %v195
      %v487 = vunpack.c.l.b16 %v196
      %v488 = vunpack.c.h.b16 %v196
      %v489 = vunpack.c.l.b16 %v197
      %v490 = vunpack.c.h.b16 %v197
      %v491 = vunpack.c.l.b16 %v198
      %v492 = vunpack.c.l.b16 %v199
      %v493 = vunpack.c.h.b16 %v199
      %v494 = vunpack.c.l.b16 %v200
      %v495 = vunpack.c.h.b16 %v200
      %v496 = vunpack.c.l.b16 %v201
      %v497 = vunpack.c.l.b16 %v202
      %v498 = vunpack.c.h.b16 %v202
      %v499 = vunpack.c.l.b16 %v203
      %v500 = vunpack.c.h.b16 %v203
      %v501 = vunpack.c.l.b16 %v204
      %v502 = vunpack.c.l.b16 %v205
      %v503 = vunpack.c.h.b16 %v205
      %v504 = vunpack.c.l.b16 %v206
      %v505 = vunpack.c.h.b16 %v206
      %v506 = vunpack.c.l.b16 %v207
      %v507 = vunpack.c.l.b16 %v208
      %v508 = vunpack.c.h.b16 %v208
      %v509 = vunpack.c.l.b16 %v209
      %v510 = vunpack.c.h.b16 %v209
      %v511 = vunpack.c.l.b16 %v210
      %v512 = vunpack.c.l.b16 %v211
      %v513 = vunpack.c.h.b16 %v211
      %v514 = vunpack.c.l.b16 %v212
      %v515 = vunpack.c.h.b16 %v212
      %v516 = vunpack.c.l.b16 %v213
      %v517 = vunpack.c.l.b16 %v214
      %v518 = vunpack.c.h.b16 %v214
      %v519 = vunpack.c.l.b16 %v215
      %v520 = vunpack.c.h.b16 %v215
      %v521 = vunpack.c.l.b16 %v216
      %v522 = vunpack.c.l.b16 %v217
      %v523 = vunpack.c.h.b16 %v217
      %v524 = vunpack.c.l.b16 %v218
      %v525 = vunpack.c.h.b16 %v218
      %v526 = vunpack.c.l.b16 %v219
      %v527 = vunpack.c.l.b16 %v220
      %v528 = vunpack.c.h.b16 %v220
      %v529 = vunpack.c.l.b16 %v221
      %v530 = vunpack.c.h.b16 %v221
      %v531 = vunpack.c.l.b16 %v222
      %v532 = vunpack.c.l.b16 %v223
      %v533 = vunpack.c.h.b16 %v223
      %v534 = vunpack.c.l.b16 %v224
      %v535 = vunpack.c.h.b16 %v224
      %v536 = vunpack.c.l.b16 %v225
      %v537 = vunpack.c.l.b16 %v226
      %v538 = vunpack.c.h.b16 %v226
      %v539 = vunpack.c.l.b16 %v227
      %v540 = vunpack.c.h.b16 %v227
      %v541 = vunpack.c.l.b16 %v228
      %v542 = vunpack.c.l.b16 %v229
      %v543 = vunpack.c.h.b16 %v229
      %v544 = vunpack.c.l.b16 %v230
      %v545 = vunpack.c.h.b16 %v230
      %v546 = vunpack.c.l.b16 %v231
      %v547 = vunpack.c.l.b16 %v232
      %v548 = vunpack.c.h.b16 %v232
      %v549 = vunpack.c.l.b16 %v233
      %v550 = vunpack.c.h.b16 %v233
      %v551 = vunpack.c.l.b16 %v234
      %v552 = vunpack.c.l.b16 %v235
      %v553 = vunpack.c.h.b16 %v235
      %v554 = vunpack.c.l.b16 %v236
      %v555 = vunpack.c.h.b16 %v236
      %v556 = vunpack.c.l.b16 %v237
      %v557 = vunpack.c.l.b16 %v238
      %v558 = vunpack.c.h.b16 %v238
      %v559 = vunpack.c.l.b16 %v239
      %v560 = vunpack.c.h.b16 %v239
      %v561 = vunpack.c.l.b16 %v240
      %v562 = vunpack.c.l.b16 %v241
      %v563 = vunpack.c.h.b16 %v241
      %v564 = vunpack.c.l.b16 %v242
      %v565 = vunpack.c.h.b16 %v242
      %v566 = vunpack.c.l.b16 %v243
      %v567 = vunpack.c.l.b16 %v244
      %v568 = vunpack.c.h.b16 %v244
      %v569 = vunpack.c.l.b16 %v245
      %v570 = vunpack.c.h.b16 %v245
      %v571 = vunpack.c.l.b16 %v246
      %v572 = vunpack.c.l.b16 %v247
      %v573 = vunpack.c.h.b16 %v247
      %v574 = vunpack.c.l.b16 %v248
      %v575 = vunpack.c.h.b16 %v248
      %v576 = vunpack.c.l.b16 %v249
      %v577 = vunpack.c.l.b16 %v250
      %v578 = vunpack.c.h.b16 %v250
      %v579 = vunpack.c.l.b16 %v251
      %v580 = vunpack.c.h.b16 %v251
      %v581 = vunpack.c.l.b16 %v252
      %v582 = vunpack.c.l.b16 %v253
      %v583 = vunpack.c.h.b16 %v253
      %v584 = vunpack.c.l.b16 %v254
      %v585 = vunpack.c.h.b16 %v254
      %v586 = vunpack.c.l.b16 %v255
      %v587 = vunpack.c.l.b16 %v256
      %v588 = vunpack.c.h.b16 %v256
      %v589 = vunpack.c.l.b16 %v257
      %v590 = vunpack.c.h.b16 %v257
      %v591 = vunpack.c.l.b16 %v258
      %v592 = vunpack.c.l.b16 %v259
      %v593 = vunpack.c.h.b16 %v259
      %v594 = vunpack.c.l.b16 %v260
      %v595 = vunpack.c.h.b16 %v260
      %v596 = vunpack.c.l.b16 %v261
      %v597 = vunpack.c.l.b16 %v262
      %v598 = vunpack.c.h.b16 %v262
      %v599 = vunpack.c.l.b16 %v263
      %v600 = vunpack.c.h.b16 %v263
      %v601 = vunpack.c.l.b16 %v264
      %v602 = vunpack.c.l.b16 %v265
      %v603 = vunpack.c.h.b16 %v265
      %v604 = vunpack.c.l.b16 %v266
      %v605 = vunpack.c.h.b16 %v266
      %v606 = vunpack.c.l.b16 %v267
      %v607 = vunpack.c.l.b16 %v268
      %v608 = vunpack.c.h.b16 %v268
      %v609 = vunpack.c.l.b16 %v269
      %v610 = vunpack.c.h.b16 %v269
      %v611 = vunpack.c.l.b16 %v270
      %v612 = vunpack.c.l.b16 %v271
      %v613 = vunpack.c.h.b16 %v271
      %v614 = vunpack.c.l.b16 %v272
      %v615 = vunpack.c.h.b16 %v272
      %v616 = vunpack.c.l.b16 %v273
      %v617 = vpack.c.b16 %v462, %v457
      %v618 = vpack.c.b16 %v463, %v458
      %v619 = vpack.c.b16 %v464, %v459
      %v620 = vpack.c.b16 %v465, %v460
      %v621 = vpack.c.b16 %v466, %v461
      %v622 = vpack.c.b16 %v472, %v467
      %v623 = vpack.c.b16 %v473, %v468
      %v624 = vpack.c.b16 %v474, %v469
      %v625 = vpack.c.b16 %v475, %v470
      %v626 = vpack.c.b16 %v476, %v471
      %v627 = vpack.c.b16 %v482, %v477
      %v628 = vpack.c.b16 %v483, %v478
      %v629 = vpack.c.b16 %v484, %v479
      %v630 = vpack.c.b16 %v485, %v480
      %v631 = vpack.c.b16 %v486, %v481
      %v632 = vpack.c.b16 %v492, %v487
      %v633 = vpack.c.b16 %v493, %v488
      %v634 = vpack.c.b16 %v494, %v489
      %v635 = vpack.c.b16 %v495, %v490
      %v636 = vpack.c.b16 %v496, %v491
      %v637 = vpack.c.b16 %v502, %v497
      %v638 = vpack.c.b16 %v503, %v498
      %v639 = vpack.c.b16 %v504, %v499
      %v640 = vpack.c.b16 %v505, %v500
      %v641 = vpack.c.b16 %v506, %v501
      %v642 = vpack.c.b16 %v512, %v507
      %v643 = vpack.c.b16 %v513, %v508
      %v644 = vpack.c.b16 %v514, %v509
      %v645 = vpack.c.b16 %v515, %v510
      %v646 = vpack.c.b16 %v516, %v511
      %v647 = vpack.c.b16 %v522, %v517
      %v648 = vpack.c.b16 %v523, %v518
      %v649 = vpack.c.b16 %v524, %v519
      %v650 = vpack.c.b16 %v525, %v520
      %v651 = vpack.c.b16 %v526, %v521
      %v652 = vpack.c.b16 %v532, %v527
      %v653 = vpack.c.b16 %v533, %v528
      %v654 = vpack.c.b16 %v534, %v529
      %v655 = vpack.c.b16 %v535, %v530
      %v656 = vpack.c.b16 %v536, %v531
      %v657 = vpack.c.b16 %v542, %v537
      %v658 = vpack.c.b16 %v543, %v538
      %v659 = vpack.c.b16 %v544, %v539
      %v660 = vpack.c.b16 %v545, %v540
      %v661 = vpack.c.b16 %v546, %v541
      %v662 = vpack.c.b16 %v552, %v547
      %v663 = vpack.c.b16 %v553, %v548
      %v664 = vpack.c.b16 %v554, %v549
      %v665 = vpack.c.b16 %v555, %v550
      %v666 = vpack.c.b16 %v556, %v551
      %v667 = vpack.c.b16 %v562, %v557
      %v668 = vpack.c.b16 %v563, %v558
      %v669 = vpack.c.b16 %v564, %v559
      %v670 = vpack.c.b16 %v565, %v560
      %v671 = vpack.c.b16 %v566, %v561
      %v672 = vpack.c.b16 %v572, %v567
      %v673 = vpack.c.b16 %v573, %v568
      %v674 = vpack.c.b16 %v574, %v569
      %v675 = vpack.c.b16 %v575, %v570
      %v676 = vpack.c.b16 %v576, %v571
      %v677 = vpack.c.b16 %v582, %v577
      %v678 = vpack.c.b16 %v583, %v578
      %v679 = vpack.c.b16 %v584, %v579
      %v680 = vpack.c.b16 %v585, %v580
      %v681 = vpack.c.b16 %v586, %v581
      %v682 = vpack.c.b16 %v592, %v587
      %v683 = vpack.c.b16 %v593, %v588
      %v684 = vpack.c.b16 %v594, %v589
      %v685 = vpack.c.b16 %v595, %v590
      %v686 = vpack.c.b16 %v596, %v591
      %v687 = vpack.c.b16 %v602, %v597
      %v688 = vpack.c.b16 %v603, %v598
      %v689 = vpack.c.b16 %v604, %v599
      %v690 = vpack.c.b16 %v605, %v600
      %v691 = vpack.c.b16 %v606, %v601
      %v692 = vpack.c.b16 %v612, %v607
      %v693 = vpack.c.b16 %v613, %v608
      %v694 = vpack.c.b16 %v614, %v609
      %v695 = vpack.c.b16 %v615, %v610
      %v696 = vpack.c.b16 %v616, %v611
      %v857 = vunpack.c.l.b16 %v274
      %v858 = vunpack.c.l.b16 %v275
      %v859 = vunpack.c.l.b16 %v276
      %v860 = vunpack.c.l.b16 %v277
      %v861 = vunpack.c.l.b16 %v278
      %v862 = vunpack.c.l.b16 %v279
      %v863 = vunpack.c.l.b16 %v280
      %v864 = vunpack.c.l.b16 %v281
      %v865 = vunpack.c.l.b16 %v282
      %v866 = vunpack.c.l.b16 %v283
      %v867 = vunpack.c.l.b16 %v284
      %v868 = vunpack.c.l.b16 %v285
      %v869 = vunpack.c.l.b16 %v286
      %v870 = vunpack.c.l.b16 %v287
      %v871 = vunpack.c.l.b16 %v288
      %v872 = vunpack.c.l.b16 %v289
      %v873 = vunpack.c.l.b16 %v290
      %v874 = vunpack.c.l.b16 %v291
      %v875 = vunpack.c.l.b16 %v292
      %v876 = vunpack.c.l.b16 %v293
      %v877 = vunpack.c.l.b16 %v294
      %v878 = vunpack.c.l.b16 %v295
      %v879 = vunpack.c.l.b16 %v296
      %v880 = vunpack.c.l.b16 %v297
      %v881 = vunpack.c.l.b16 %v298
      %v882 = vunpack.c.l.b16 %v299
      %v883 = vunpack.c.l.b16 %v300
      %v884 = vunpack.c.l.b16 %v301
      %v885 = vunpack.c.l.b16 %v302
      %v886 = vunpack.c.l.b16 %v303
      %v887 = vunpack.c.l.b16 %v304
      %v888 = vunpack.c.l.b16 %v305
      %v889 = vunpack.c.l.b16 %v306
      %v890 = vunpack.c.l.b16 %v307
      %v891 = vunpack.c.l.b16 %v308
      %v892 = vunpack.c.l.b16 %v309
      %v893 = vunpack.c.l.b16 %v310
      %v894 = vunpack.c.l.b16 %v311
      %v895 = vunpack.c.l.b16 %v312
      %v896 = vunpack.c.l.b16 %v313
      %v897 = vunpack.c.l.b16 %v314
      %v898 = vunpack.c.l.b16 %v315
      %v899 = vunpack.c.l.b16 %v316
      %v900 = vunpack.c.l.b16 %v317
      %v901 = vunpack.c.l.b16 %v318
      %v902 = vunpack.c.l.b16 %v319
      %v903 = vunpack.c.l.b16 %v320
      %v904 = vunpack.c.l.b16 %v321
      %v905 = vunpack.c.l.b16 %v322
      %v906 = vunpack.c.l.b16 %v323
      %v907 = vunpack.c.l.b16 %v324
      %v908 = vunpack.c.l.b16 %v325
      %v909 = vunpack.c.l.b16 %v326
      %v910 = vunpack.c.l.b16 %v327
      %v911 = vunpack.c.l.b16 %v328
      %v912 = vunpack.c.l.b16 %v329
      %v913 = vunpack.c.l.b16 %v330
      %v914 = vunpack.c.l.b16 %v331
      %v915 = vunpack.c.l.b16 %v332
      %v916 = vunpack.c.l.b16 %v333
      %v917 = vunpack.c.l.b16 %v334
      %v918 = vunpack.c.l.b16 %v335
      %v919 = vunpack.c.l.b16 %v336
      %v920 = vunpack.c.l.b16 %v337
      %v921 = vunpack.c.l.b16 %v338
      %v922 = vunpack.c.l.b16 %v339
      %v923 = vunpack.c.l.b16 %v340
      %v924 = vunpack.c.l.b16 %v341
      %v925 = vunpack.c.l.b16 %v342
      %v926 = vunpack.c.l.b16 %v343
      %v927 = vunpack.c.l.b16 %v344
      %v928 = vunpack.c.l.b16 %v345
      %v929 = vunpack.c.l.b16 %v346
      %v930 = vunpack.c.l.b16 %v347
      %v931 = vunpack.c.l.b16 %v348
      %v932 = vunpack.c.l.b16 %v349
      %v933 = vunpack.c.l.b16 %v350
      %v934 = vunpack.c.l.b16 %v351
      %v935 = vunpack.c.l.b16 %v352
      %v936 = vunpack.c.l.b16 %v353
      %v937 = vpack.c.b16 %v858, %v857
      %v938 = vpack.c.b16 %v860, %v859
      %v939 = vpack.c.b16 %v862, %v861
      %v940 = vpack.c.b16 %v864, %v863
      %v941 = vpack.c.b16 %v866, %v865
      %v942 = vpack.c.b16 %v868, %v867
      %v943 = vpack.c.b16 %v870, %v869
      %v944 = vpack.c.b16 %v872, %v871
      %v945 = vpack.c.b16 %v874, %v873
      %v946 = vpack.c.b16 %v876, %v875
      %v947 = vpack.c.b16 %v878, %v877
      %v948 = vpack.c.b16 %v880, %v879
      %v949 = vpack.c.b16 %v882, %v881
      %v950 = vpack.c.b16 %v884, %v883
      %v951 = vpack.c.b16 %v886, %v885
      %v952 = vpack.c.b16 %v888, %v887
      %v953 = vpack.c.b16 %v890, %v889
      %v954 = vpack.c.b16 %v892, %v891
      %v955 = vpack.c.b16 %v894, %v893
      %v956 = vpack.c.b16 %v896, %v895
      %v957 = vpack.c.b16 %v898, %v897
      %v958 = vpack.c.b16 %v900, %v899
      %v959 = vpack.c.b16 %v902, %v901
      %v960 = vpack.c.b16 %v904, %v903
      %v961 = vpack.c.b16 %v906, %v905
      %v962 = vpack.c.b16 %v908, %v907
      %v963 = vpack.c.b16 %v910, %v909
      %v964 = vpack.c.b16 %v912, %v911
      %v965 = vpack.c.b16 %v914, %v913
      %v966 = vpack.c.b16 %v916, %v915
      %v967 = vpack.c.b16 %v918, %v917
      %v968 = vpack.c.b16 %v920, %v919
      %v969 = vpack.c.b16 %v922, %v921
      %v970 = vpack.c.b16 %v924, %v923
      %v971 = vpack.c.b16 %v926, %v925
      %v972 = vpack.c.b16 %v928, %v927
      %v973 = vpack.c.b16 %v930, %v929
      %v974 = vpack.c.b16 %v932, %v931
      %v975 = vpack.c.b16 %v934, %v933
      %v976 = vpack.c.b16 %v936, %v935
      %1017 = vmatprep.subr.bf16.mxu0 0
      %1018 = vmatpush1.bf16.msra.mxu0 %v944
      %1019 = vmatprep.subr.bf16.mxu0 0
      %1020 = vmatpush1.bf16.msra.mxu0 %v943
      %1021 = vmatprep.subr.bf16.mxu0 0
      %1022 = vmatpush1.bf16.msra.mxu0 %v942
      %1023 = vmatprep.subr.bf16.mxu0 0
      %1024 = vmatpush1.bf16.msra.mxu0 %v941
      %1025 = vmatprep.subr.bf16.mxu0 0
      %1026 = vmatpush1.bf16.msra.mxu0 %v940
      %1027 = vmatprep.subr.bf16.mxu0 0
      %1028 = vmatpush1.bf16.msra.mxu0 %v939
      %1029 = vmatprep.subr.bf16.mxu0 0
      %1030 = vmatpush1.bf16.msra.mxu0 %v938
      %1031 = vmatprep.subr.bf16.mxu0 0
      %1032 = vmatpush1.bf16.msra.mxu0 %v937
      %1033 = vmatprep.subr.bf16.mxu0 0
      %1034 = vmatpush2.bf16.msra.mxu0 %v952
      %1035 = vmatprep.subr.bf16.mxu0 0
      %1036 = vmatpush2.bf16.msra.mxu0 %v951
      %1037 = vmatprep.subr.bf16.mxu0 0
      %1038 = vmatpush2.bf16.msra.mxu0 %v950
      %1039 = vmatprep.subr.bf16.mxu0 0
      %1040 = vmatpush2.bf16.msra.mxu0 %v949
      %1041 = vmatprep.subr.bf16.mxu0 0
      %1042 = vmatpush2.bf16.msra.mxu0 %v948
      %1043 = vmatprep.subr.bf16.mxu0 0
      %1044 = vmatpush2.bf16.msra.mxu0 %v947
      %1045 = vmatprep.subr.bf16.mxu0 0
      %1046 = vmatpush2.bf16.msra.mxu0 %v946
      %1047 = vmatprep.subr.bf16.mxu0 0
      %1048 = vmatpush2.bf16.msra.mxu0 %v945
      %1049 = vmatprep.mubr.bf16.mxu0 %v618
      %1050 = vmatmul.mubr.bf16.gmra.mxu0 %v617
      %v1051 = vpop.f32.mrf.mxu0
      %v1052 = vadd.f32 %v359, %v1051
      %v1053 = vpop.f32.mrf.mxu0
      %v1054 = vpop.f32.mrf.mxu0
      %v1055 = vadd.f32 %v359, %v1054
      %v1056 = vpop.f32.mrf.mxu0
      %1057 = vmatprep.mubr.bf16.mxu0 %v623
      %1058 = vmatmul.mubr.bf16.gmra.mxu0 %v622
      %v1059 = vpop.f32.mrf.mxu0
      %v1060 = vadd.f32 %v359, %v1059
      %v1061 = vpop.f32.mrf.mxu0
      %v1062 = vpop.f32.mrf.mxu0
      %v1063 = vadd.f32 %v359, %v1062
      %v1064 = vpop.f32.mrf.mxu0
      %1065 = vmatprep.mubr.bf16.mxu0 %v628
      %1066 = vmatmul.mubr.bf16.gmra.mxu0 %v627
      %v1067 = vpop.f32.mrf.mxu0
      %v1068 = vadd.f32 %v359, %v1067
      %v1069 = vpop.f32.mrf.mxu0
      %v1070 = vpop.f32.mrf.mxu0
      %v1071 = vadd.f32 %v359, %v1070
      %v1072 = vpop.f32.mrf.mxu0
      %1073 = vmatprep.mubr.bf16.mxu0 %v633
      %1074 = vmatmul.mubr.bf16.gmra.mxu0 %v632
      %v1075 = vpop.f32.mrf.mxu0
      %v1076 = vadd.f32 %v359, %v1075
      %v1077 = vpop.f32.mrf.mxu0
      %v1078 = vpop.f32.mrf.mxu0
      %v1079 = vadd.f32 %v359, %v1078
      %v1080 = vpop.f32.mrf.mxu0
      %1081 = vmatprep.mubr.bf16.mxu0 %v638
      %1082 = vmatmul.mubr.bf16.gmra.mxu0 %v637
      %v1083 = vpop.f32.mrf.mxu0
      %v1084 = vadd.f32 %v359, %v1083
      %v1085 = vpop.f32.mrf.mxu0
      %v1086 = vpop.f32.mrf.mxu0
      %v1087 = vadd.f32 %v359, %v1086
      %v1088 = vpop.f32.mrf.mxu0
      %1089 = vmatprep.mubr.bf16.mxu0 %v643
      %1090 = vmatmul.mubr.bf16.gmra.mxu0 %v642
      %v1091 = vpop.f32.mrf.mxu0
      %v1092 = vadd.f32 %v359, %v1091
      %v1093 = vpop.f32.mrf.mxu0
      %v1094 = vpop.f32.mrf.mxu0
      %v1095 = vadd.f32 %v359, %v1094
      %v1096 = vpop.f32.mrf.mxu0
      %1097 = vmatprep.mubr.bf16.mxu0 %v648
      %1098 = vmatmul.mubr.bf16.gmra.mxu0 %v647
      %v1099 = vpop.f32.mrf.mxu0
      %v1100 = vadd.f32 %v359, %v1099
      %v1101 = vpop.f32.mrf.mxu0
      %v1102 = vpop.f32.mrf.mxu0
      %v1103 = vadd.f32 %v359, %v1102
      %v1104 = vpop.f32.mrf.mxu0
      %1105 = vmatprep.mubr.bf16.mxu0 %v653
      %1106 = vmatmul.mubr.bf16.gmra.mxu0 %v652
      %v1107 = vpop.f32.mrf.mxu0
      %v1108 = vadd.f32 %v359, %v1107
      %v1109 = vpop.f32.mrf.mxu0
      %v1110 = vpop.f32.mrf.mxu0
      %v1111 = vadd.f32 %v359, %v1110
      %v1112 = vpop.f32.mrf.mxu0
      %1113 = vmatprep.mubr.bf16.mxu0 %v658
      %1114 = vmatmul.mubr.bf16.gmra.mxu0 %v657
      %v1115 = vpop.f32.mrf.mxu0
      %v1116 = vadd.f32 %v359, %v1115
      %v1117 = vpop.f32.mrf.mxu0
      %v1118 = vpop.f32.mrf.mxu0
      %v1119 = vadd.f32 %v359, %v1118
      %v1120 = vpop.f32.mrf.mxu0
      %1121 = vmatprep.mubr.bf16.mxu0 %v663
      %1122 = vmatmul.mubr.bf16.gmra.mxu0 %v662
      %v1123 = vpop.f32.mrf.mxu0
      %v1124 = vadd.f32 %v359, %v1123
      %v1125 = vpop.f32.mrf.mxu0
      %v1126 = vpop.f32.mrf.mxu0
      %v1127 = vadd.f32 %v359, %v1126
      %v1128 = vpop.f32.mrf.mxu0
      %1129 = vmatprep.mubr.bf16.mxu0 %v668
      %1130 = vmatmul.mubr.bf16.gmra.mxu0 %v667
      %v1131 = vpop.f32.mrf.mxu0
      %v1132 = vadd.f32 %v359, %v1131
      %v1133 = vpop.f32.mrf.mxu0
      %v1134 = vpop.f32.mrf.mxu0
      %v1135 = vadd.f32 %v359, %v1134
      %v1136 = vpop.f32.mrf.mxu0
      %1137 = vmatprep.mubr.bf16.mxu0 %v673
      %1138 = vmatmul.mubr.bf16.gmra.mxu0 %v672
      %v1139 = vpop.f32.mrf.mxu0
      %v1140 = vadd.f32 %v359, %v1139
      %v1141 = vpop.f32.mrf.mxu0
      %v1142 = vpop.f32.mrf.mxu0
      %v1143 = vadd.f32 %v359, %v1142
      %v1144 = vpop.f32.mrf.mxu0
      %1145 = vmatprep.mubr.bf16.mxu0 %v678
      %1146 = vmatmul.mubr.bf16.gmra.mxu0 %v677
      %v1147 = vpop.f32.mrf.mxu0
      %v1148 = vadd.f32 %v359, %v1147
      %v1149 = vpop.f32.mrf.mxu0
      %v1150 = vpop.f32.mrf.mxu0
      %v1151 = vadd.f32 %v359, %v1150
      %v1152 = vpop.f32.mrf.mxu0
      %1153 = vmatprep.mubr.bf16.mxu0 %v683
      %1154 = vmatmul.mubr.bf16.gmra.mxu0 %v682
      %v1155 = vpop.f32.mrf.mxu0
      %v1156 = vadd.f32 %v359, %v1155
      %v1157 = vpop.f32.mrf.mxu0
      %v1158 = vpop.f32.mrf.mxu0
      %v1159 = vadd.f32 %v359, %v1158
      %v1160 = vpop.f32.mrf.mxu0
      %1161 = vmatprep.mubr.bf16.mxu0 %v688
      %1162 = vmatmul.mubr.bf16.gmra.mxu0 %v687
      %v1163 = vpop.f32.mrf.mxu0
      %v1164 = vadd.f32 %v359, %v1163
      %v1165 = vpop.f32.mrf.mxu0
      %v1166 = vpop.f32.mrf.mxu0
      %v1167 = vadd.f32 %v359, %v1166
      %v1168 = vpop.f32.mrf.mxu0
      %1169 = vmatprep.mubr.bf16.mxu0 %v693
      %1170 = vmatmul.mubr.bf16.gmra.mxu0 %v692
      %v1171 = vpop.f32.mrf.mxu0
      %v1172 = vadd.f32 %v359, %v1171
      %v1173 = vpop.f32.mrf.mxu0
      %v1174 = vpop.f32.mrf.mxu0
      %v1175 = vadd.f32 %v359, %v1174
      %v1176 = vpop.f32.mrf.mxu0
      %1177 = vdwg.mxu0
      %1178 = vmatprep.subr.bf16.mxu0 0
      %1179 = vmatpush1.bf16.msra.mxu0 %v960
      %1180 = vmatprep.subr.bf16.mxu0 0
      %1181 = vmatpush1.bf16.msra.mxu0 %v959
      %1182 = vmatprep.subr.bf16.mxu0 0
      %1183 = vmatpush1.bf16.msra.mxu0 %v958
      %1184 = vmatprep.subr.bf16.mxu0 0
      %1185 = vmatpush1.bf16.msra.mxu0 %v957
      %1186 = vmatprep.subr.bf16.mxu0 0
      %1187 = vmatpush1.bf16.msra.mxu0 %v956
      %1188 = vmatprep.subr.bf16.mxu0 0
      %1189 = vmatpush1.bf16.msra.mxu0 %v955
      %1190 = vmatprep.subr.bf16.mxu0 0
      %1191 = vmatpush1.bf16.msra.mxu0 %v954
      %1192 = vmatprep.subr.bf16.mxu0 0
      %1193 = vmatpush1.bf16.msra.mxu0 %v953
      %1194 = vmatprep.subr.bf16.mxu0 0
      %1195 = vmatpush2.bf16.msra.mxu0 %v968
      %1196 = vmatprep.subr.bf16.mxu0 0
      %1197 = vmatpush2.bf16.msra.mxu0 %v967
      %1198 = vmatprep.subr.bf16.mxu0 0
      %1199 = vmatpush2.bf16.msra.mxu0 %v966
      %1200 = vmatprep.subr.bf16.mxu0 0
      %1201 = vmatpush2.bf16.msra.mxu0 %v965
      %1202 = vmatprep.subr.bf16.mxu0 0
      %1203 = vmatpush2.bf16.msra.mxu0 %v964
      %1204 = vmatprep.subr.bf16.mxu0 0
      %1205 = vmatpush2.bf16.msra.mxu0 %v963
      %1206 = vmatprep.subr.bf16.mxu0 0
      %1207 = vmatpush2.bf16.msra.mxu0 %v962
      %1208 = vmatprep.subr.bf16.mxu0 0
      %1209 = vmatpush2.bf16.msra.mxu0 %v961
      %1210 = vmatprep.mubr.bf16.mxu0 %v620
      %1211 = vmatmul.mubr.bf16.gmra.mxu0 %v619
      %v1212 = vpop.f32.mrf.mxu0
      %v1213 = vadd.f32 %v1052, %v1212
      %v1214 = vpop.f32.mrf.mxu0
      %v1215 = vpop.f32.mrf.mxu0
      %v1216 = vadd.f32 %v1055, %v1215
      %v1217 = vpop.f32.mrf.mxu0
      %1218 = vmatprep.mubr.bf16.mxu0 %v625
      %1219 = vmatmul.mubr.bf16.gmra.mxu0 %v624
      %v1220 = vpop.f32.mrf.mxu0
      %v1221 = vadd.f32 %v1060, %v1220
      %v1222 = vpop.f32.mrf.mxu0
      %v1223 = vpop.f32.mrf.mxu0
      %v1224 = vadd.f32 %v1063, %v1223
      %v1225 = vpop.f32.mrf.mxu0
      %1226 = vmatprep.mubr.bf16.mxu0 %v630
      %1227 = vmatmul.mubr.bf16.gmra.mxu0 %v629
      %v1228 = vpop.f32.mrf.mxu0
      %v1229 = vadd.f32 %v1068, %v1228
      %v1230 = vpop.f32.mrf.mxu0
      %v1231 = vpop.f32.mrf.mxu0
      %v1232 = vadd.f32 %v1071, %v1231
      %v1233 = vpop.f32.mrf.mxu0
      %1234 = vmatprep.mubr.bf16.mxu0 %v635
      %1235 = vmatmul.mubr.bf16.gmra.mxu0 %v634
      %v1236 = vpop.f32.mrf.mxu0
      %v1237 = vadd.f32 %v1076, %v1236
      %v1238 = vpop.f32.mrf.mxu0
      %v1239 = vpop.f32.mrf.mxu0
      %v1240 = vadd.f32 %v1079, %v1239
      %v1241 = vpop.f32.mrf.mxu0
      %1242 = vmatprep.mubr.bf16.mxu0 %v640
      %1243 = vmatmul.mubr.bf16.gmra.mxu0 %v639
      %v1244 = vpop.f32.mrf.mxu0
      %v1245 = vadd.f32 %v1084, %v1244
      %v1246 = vpop.f32.mrf.mxu0
      %v1247 = vpop.f32.mrf.mxu0
      %v1248 = vadd.f32 %v1087, %v1247
      %v1249 = vpop.f32.mrf.mxu0
      %1250 = vmatprep.mubr.bf16.mxu0 %v645
      %1251 = vmatmul.mubr.bf16.gmra.mxu0 %v644
      %v1252 = vpop.f32.mrf.mxu0
      %v1253 = vadd.f32 %v1092, %v1252
      %v1254 = vpop.f32.mrf.mxu0
      %v1255 = vpop.f32.mrf.mxu0
      %v1256 = vadd.f32 %v1095, %v1255
      %v1257 = vpop.f32.mrf.mxu0
      %1258 = vmatprep.mubr.bf16.mxu0 %v650
      %1259 = vmatmul.mubr.bf16.gmra.mxu0 %v649
      %v1260 = vpop.f32.mrf.mxu0
      %v1261 = vadd.f32 %v1100, %v1260
      %v1262 = vpop.f32.mrf.mxu0
      %v1263 = vpop.f32.mrf.mxu0
      %v1264 = vadd.f32 %v1103, %v1263
      %v1265 = vpop.f32.mrf.mxu0
      %1266 = vmatprep.mubr.bf16.mxu0 %v655
      %1267 = vmatmul.mubr.bf16.gmra.mxu0 %v654
      %v1268 = vpop.f32.mrf.mxu0
      %v1269 = vadd.f32 %v1108, %v1268
      %v1270 = vpop.f32.mrf.mxu0
      %v1271 = vpop.f32.mrf.mxu0
      %v1272 = vadd.f32 %v1111, %v1271
      %v1273 = vpop.f32.mrf.mxu0
      %1274 = vmatprep.mubr.bf16.mxu0 %v660
      %1275 = vmatmul.mubr.bf16.gmra.mxu0 %v659
      %v1276 = vpop.f32.mrf.mxu0
      %v1277 = vadd.f32 %v1116, %v1276
      %v1278 = vpop.f32.mrf.mxu0
      %v1279 = vpop.f32.mrf.mxu0
      %v1280 = vadd.f32 %v1119, %v1279
      %v1281 = vpop.f32.mrf.mxu0
      %1282 = vmatprep.mubr.bf16.mxu0 %v665
      %1283 = vmatmul.mubr.bf16.gmra.mxu0 %v664
      %v1284 = vpop.f32.mrf.mxu0
      %v1285 = vadd.f32 %v1124, %v1284
      %v1286 = vpop.f32.mrf.mxu0
      %v1287 = vpop.f32.mrf.mxu0
      %v1288 = vadd.f32 %v1127, %v1287
      %v1289 = vpop.f32.mrf.mxu0
      %1290 = vmatprep.mubr.bf16.mxu0 %v670
      %1291 = vmatmul.mubr.bf16.gmra.mxu0 %v669
      %v1292 = vpop.f32.mrf.mxu0
      %v1293 = vadd.f32 %v1132, %v1292
      %v1294 = vpop.f32.mrf.mxu0
      %v1295 = vpop.f32.mrf.mxu0
      %v1296 = vadd.f32 %v1135, %v1295
      %v1297 = vpop.f32.mrf.mxu0
      %1298 = vmatprep.mubr.bf16.mxu0 %v675
      %1299 = vmatmul.mubr.bf16.gmra.mxu0 %v674
      %v1300 = vpop.f32.mrf.mxu0
      %v1301 = vadd.f32 %v1140, %v1300
      %v1302 = vpop.f32.mrf.mxu0
      %v1303 = vpop.f32.mrf.mxu0
      %v1304 = vadd.f32 %v1143, %v1303
      %v1305 = vpop.f32.mrf.mxu0
      %1306 = vmatprep.mubr.bf16.mxu0 %v680
      %1307 = vmatmul.mubr.bf16.gmra.mxu0 %v679
      %v1308 = vpop.f32.mrf.mxu0
      %v1309 = vadd.f32 %v1148, %v1308
      %v1310 = vpop.f32.mrf.mxu0
      %v1311 = vpop.f32.mrf.mxu0
      %v1312 = vadd.f32 %v1151, %v1311
      %v1313 = vpop.f32.mrf.mxu0
      %1314 = vmatprep.mubr.bf16.mxu0 %v685
      %1315 = vmatmul.mubr.bf16.gmra.mxu0 %v684
      %v1316 = vpop.f32.mrf.mxu0
      %v1317 = vadd.f32 %v1156, %v1316
      %v1318 = vpop.f32.mrf.mxu0
      %v1319 = vpop.f32.mrf.mxu0
      %v1320 = vadd.f32 %v1159, %v1319
      %v1321 = vpop.f32.mrf.mxu0
      %1322 = vmatprep.mubr.bf16.mxu0 %v690
      %1323 = vmatmul.mubr.bf16.gmra.mxu0 %v689
      %v1324 = vpop.f32.mrf.mxu0
      %v1325 = vadd.f32 %v1164, %v1324
      %v1326 = vpop.f32.mrf.mxu0
      %v1327 = vpop.f32.mrf.mxu0
      %v1328 = vadd.f32 %v1167, %v1327
      %v1329 = vpop.f32.mrf.mxu0
      %1330 = vmatprep.mubr.bf16.mxu0 %v695
      %1331 = vmatmul.mubr.bf16.gmra.mxu0 %v694
      %v1332 = vpop.f32.mrf.mxu0
      %v1333 = vadd.f32 %v1172, %v1332
      %v1334 = vpop.f32.mrf.mxu0
      %v1335 = vpop.f32.mrf.mxu0
      %v1336 = vadd.f32 %v1175, %v1335
      %v1337 = vpop.f32.mrf.mxu0
      %1338 = vdwg.mxu0
      %1339 = vmatprep.subr.bf16.mxu0 0
      %1340 = vmatpush1.bf16.msra.mxu0 %v976
      %1341 = vmatprep.subr.bf16.mxu0 0
      %1342 = vmatpush1.bf16.msra.mxu0 %v975
      %1343 = vmatprep.subr.bf16.mxu0 0
      %1344 = vmatpush1.bf16.msra.mxu0 %v974
      %1345 = vmatprep.subr.bf16.mxu0 0
      %1346 = vmatpush1.bf16.msra.mxu0 %v973
      %1347 = vmatprep.subr.bf16.mxu0 0
      %1348 = vmatpush1.bf16.msra.mxu0 %v972
      %1349 = vmatprep.subr.bf16.mxu0 0
      %1350 = vmatpush1.bf16.msra.mxu0 %v971
      %1351 = vmatprep.subr.bf16.mxu0 0
      %1352 = vmatpush1.bf16.msra.mxu0 %v970
      %1353 = vmatprep.subr.bf16.mxu0 0
      %1354 = vmatpush1.bf16.msra.mxu0 %v969
      %1355 = vmatprep.subr.bf16.mxu0 0
      %1356 = vmatpush2.bf16.msra.mxu0 0
      %1357 = vmatprep.subr.bf16.mxu0 0
      %1358 = vmatpush2.bf16.msra.mxu0 0
      %1359 = vmatprep.subr.bf16.mxu0 0
      %1360 = vmatpush2.bf16.msra.mxu0 0
      %1361 = vmatprep.subr.bf16.mxu0 0
      %1362 = vmatpush2.bf16.msra.mxu0 0
      %1363 = vmatprep.subr.bf16.mxu0 0
      %1364 = vmatpush2.bf16.msra.mxu0 0
      %1365 = vmatprep.subr.bf16.mxu0 0
      %1366 = vmatpush2.bf16.msra.mxu0 0
      %1367 = vmatprep.subr.bf16.mxu0 0
      %1368 = vmatpush2.bf16.msra.mxu0 0
      %1369 = vmatprep.subr.bf16.mxu0 0
      %1370 = vmatpush2.bf16.msra.mxu0 0
      %1371 = vmatprep.mubr.bf16.mxu0 0
      %1372 = vmatmul.mubr.bf16.gmra.mxu0 %v621
      %v1373 = vpop.f32.mrf.mxu0
      %v1374 = vadd.f32 %v1213, %v1373
      %v1375 = vpop.f32.mrf.mxu0
      %v1376 = vpop.f32.mrf.mxu0
      %v1377 = vadd.f32 %v1216, %v1376
      %v1378 = vpop.f32.mrf.mxu0
      %1379 = vmatprep.mubr.bf16.mxu0 0
      %1380 = vmatmul.mubr.bf16.gmra.mxu0 %v626
      %v1381 = vpop.f32.mrf.mxu0
      %v1382 = vadd.f32 %v1221, %v1381
      %v1383 = vpop.f32.mrf.mxu0
      %v1384 = vpop.f32.mrf.mxu0
      %v1385 = vadd.f32 %v1224, %v1384
      %v1386 = vpop.f32.mrf.mxu0
      %1387 = vmatprep.mubr.bf16.mxu0 0
      %1388 = vmatmul.mubr.bf16.gmra.mxu0 %v631
      %v1389 = vpop.f32.mrf.mxu0
      %v1390 = vadd.f32 %v1229, %v1389
      %v1391 = vpop.f32.mrf.mxu0
      %v1392 = vpop.f32.mrf.mxu0
      %v1393 = vadd.f32 %v1232, %v1392
      %v1394 = vpop.f32.mrf.mxu0
      %1395 = vmatprep.mubr.bf16.mxu0 0
      %1396 = vmatmul.mubr.bf16.gmra.mxu0 %v636
      %v1397 = vpop.f32.mrf.mxu0
      %v1398 = vadd.f32 %v1237, %v1397
      %v1399 = vpop.f32.mrf.mxu0
      %v1400 = vpop.f32.mrf.mxu0
      %v1401 = vadd.f32 %v1240, %v1400
      %v1402 = vpop.f32.mrf.mxu0
      %1403 = vmatprep.mubr.bf16.mxu0 0
      %1404 = vmatmul.mubr.bf16.gmra.mxu0 %v641
      %v1405 = vpop.f32.mrf.mxu0
      %v1406 = vadd.f32 %v1245, %v1405
      %v1407 = vpop.f32.mrf.mxu0
      %v1408 = vpop.f32.mrf.mxu0
      %v1409 = vadd.f32 %v1248, %v1408
      %v1410 = vpop.f32.mrf.mxu0
      %1411 = vmatprep.mubr.bf16.mxu0 0
      %1412 = vmatmul.mubr.bf16.gmra.mxu0 %v646
      %v1413 = vpop.f32.mrf.mxu0
      %v1414 = vadd.f32 %v1253, %v1413
      %v1415 = vpop.f32.mrf.mxu0
      %v1416 = vpop.f32.mrf.mxu0
      %v1417 = vadd.f32 %v1256, %v1416
      %v1418 = vpop.f32.mrf.mxu0
      %1419 = vmatprep.mubr.bf16.mxu0 0
      %1420 = vmatmul.mubr.bf16.gmra.mxu0 %v651
      %v1421 = vpop.f32.mrf.mxu0
      %v1422 = vadd.f32 %v1261, %v1421
      %v1423 = vpop.f32.mrf.mxu0
      %v1424 = vpop.f32.mrf.mxu0
      %v1425 = vadd.f32 %v1264, %v1424
      %v1426 = vpop.f32.mrf.mxu0
      %1427 = vmatprep.mubr.bf16.mxu0 0
      %1428 = vmatmul.mubr.bf16.gmra.mxu0 %v656
      %v1429 = vpop.f32.mrf.mxu0
      %v1430 = vadd.f32 %v1269, %v1429
      %v1431 = vpop.f32.mrf.mxu0
      %v1432 = vpop.f32.mrf.mxu0
      %v1433 = vadd.f32 %v1272, %v1432
      %v1434 = vpop.f32.mrf.mxu0
      %1435 = vmatprep.mubr.bf16.mxu0 0
      %1436 = vmatmul.mubr.bf16.gmra.mxu0 %v661
      %v1437 = vpop.f32.mrf.mxu0
      %v1438 = vadd.f32 %v1277, %v1437
      %v1439 = vpop.f32.mrf.mxu0
      %v1440 = vpop.f32.mrf.mxu0
      %v1441 = vadd.f32 %v1280, %v1440
      %v1442 = vpop.f32.mrf.mxu0
      %1443 = vmatprep.mubr.bf16.mxu0 0
      %1444 = vmatmul.mubr.bf16.gmra.mxu0 %v666
      %v1445 = vpop.f32.mrf.mxu0
      %v1446 = vadd.f32 %v1285, %v1445
      %v1447 = vpop.f32.mrf.mxu0
      %v1448 = vpop.f32.mrf.mxu0
      %v1449 = vadd.f32 %v1288, %v1448
      %v1450 = vpop.f32.mrf.mxu0
      %1451 = vmatprep.mubr.bf16.mxu0 0
      %1452 = vmatmul.mubr.bf16.gmra.mxu0 %v671
      %v1453 = vpop.f32.mrf.mxu0
      %v1454 = vadd.f32 %v1293, %v1453
      %v1455 = vpop.f32.mrf.mxu0
      %v1456 = vpop.f32.mrf.mxu0
      %v1457 = vadd.f32 %v1296, %v1456
      %v1458 = vpop.f32.mrf.mxu0
      %1459 = vmatprep.mubr.bf16.mxu0 0
      %1460 = vmatmul.mubr.bf16.gmra.mxu0 %v676
      %v1461 = vpop.f32.mrf.mxu0
      %v1462 = vadd.f32 %v1301, %v1461
      %v1463 = vpop.f32.mrf.mxu0
      %v1464 = vpop.f32.mrf.mxu0
      %v1465 = vadd.f32 %v1304, %v1464
      %v1466 = vpop.f32.mrf.mxu0
      %1467 = vmatprep.mubr.bf16.mxu0 0
      %1468 = vmatmul.mubr.bf16.gmra.mxu0 %v681
      %v1469 = vpop.f32.mrf.mxu0
      %v1470 = vadd.f32 %v1309, %v1469
      %v1471 = vpop.f32.mrf.mxu0
      %v1472 = vpop.f32.mrf.mxu0
      %v1473 = vadd.f32 %v1312, %v1472
      %v1474 = vpop.f32.mrf.mxu0
      %1475 = vmatprep.mubr.bf16.mxu0 0
      %1476 = vmatmul.mubr.bf16.gmra.mxu0 %v686
      %v1477 = vpop.f32.mrf.mxu0
      %v1478 = vadd.f32 %v1317, %v1477
      %v1479 = vpop.f32.mrf.mxu0
      %v1480 = vpop.f32.mrf.mxu0
      %v1481 = vadd.f32 %v1320, %v1480
      %v1482 = vpop.f32.mrf.mxu0
      %1483 = vmatprep.mubr.bf16.mxu0 0
      %1484 = vmatmul.mubr.bf16.gmra.mxu0 %v691
      %v1485 = vpop.f32.mrf.mxu0
      %v1486 = vadd.f32 %v1325, %v1485
      %v1487 = vpop.f32.mrf.mxu0
      %v1488 = vpop.f32.mrf.mxu0
      %v1489 = vadd.f32 %v1328, %v1488
      %v1490 = vpop.f32.mrf.mxu0
      %1491 = vmatprep.mubr.bf16.mxu0 0
      %1492 = vmatmul.mubr.bf16.gmra.mxu0 %v696
      %v1493 = vpop.f32.mrf.mxu0
      %v1494 = vadd.f32 %v1333, %v1493
      %v1495 = vpop.f32.mrf.mxu0
      %v1496 = vpop.f32.mrf.mxu0
      %v1497 = vadd.f32 %v1336, %v1496
      %v1498 = vpop.f32.mrf.mxu0
      %1499 = vdwg.mxu0
      %vm1500 = vcmp.gt.f32.partialorder %v1374, 0.0
      %vm1501 = vcmp.gt.f32.partialorder %v1377, 0.0
      %vm1502 = vcmp.gt.f32.partialorder %v1382, 0.0
      %vm1503 = vcmp.gt.f32.partialorder %v1385, 0.0
      %vm1504 = vcmp.gt.f32.partialorder %v1390, 0.0
      %vm1505 = vcmp.gt.f32.partialorder %v1393, 0.0
      %vm1506 = vcmp.gt.f32.partialorder %v1398, 0.0
      %vm1507 = vcmp.gt.f32.partialorder %v1401, 0.0
      %vm1508 = vcmp.gt.f32.partialorder %v1406, 0.0
      %vm1509 = vcmp.gt.f32.partialorder %v1409, 0.0
      %vm1510 = vcmp.gt.f32.partialorder %v1414, 0.0
      %vm1511 = vcmp.gt.f32.partialorder %v1417, 0.0
      %vm1512 = vcmp.gt.f32.partialorder %v1422, 0.0
      %vm1513 = vcmp.gt.f32.partialorder %v1425, 0.0
      %vm1514 = vcmp.gt.f32.partialorder %v1430, 0.0
      %vm1515 = vcmp.gt.f32.partialorder %v1433, 0.0
      %vm1516 = vcmp.gt.f32.partialorder %v1438, 0.0
      %vm1517 = vcmp.gt.f32.partialorder %v1441, 0.0
      %vm1518 = vcmp.gt.f32.partialorder %v1446, 0.0
      %vm1519 = vcmp.gt.f32.partialorder %v1449, 0.0
      %vm1520 = vcmp.gt.f32.partialorder %v1454, 0.0
      %vm1521 = vcmp.gt.f32.partialorder %v1457, 0.0
      %vm1522 = vcmp.gt.f32.partialorder %v1462, 0.0
      %vm1523 = vcmp.gt.f32.partialorder %v1465, 0.0
      %vm1524 = vcmp.gt.f32.partialorder %v1470, 0.0
      %vm1525 = vcmp.gt.f32.partialorder %v1473, 0.0
      %vm1526 = vcmp.gt.f32.partialorder %v1478, 0.0
      %vm1527 = vcmp.gt.f32.partialorder %v1481, 0.0
      %vm1528 = vcmp.gt.f32.partialorder %v1486, 0.0
      %vm1529 = vcmp.gt.f32.partialorder %v1489, 0.0
      %vm1530 = vcmp.gt.f32.partialorder %v1494, 0.0
      %vm1531 = vcmp.gt.f32.partialorder %v1497, 0.0
      %v1532 = vmin.f32 %v1374, 0.0
      %v1533 = vmin.f32 %v1377, 0.0
      %v1534 = vmin.f32 %v1382, 0.0
      %v1535 = vmin.f32 %v1385, 0.0
      %v1536 = vmin.f32 %v1390, 0.0
      %v1537 = vmin.f32 %v1393, 0.0
      %v1538 = vmin.f32 %v1398, 0.0
      %v1539 = vmin.f32 %v1401, 0.0
      %v1540 = vmin.f32 %v1406, 0.0
      %v1541 = vmin.f32 %v1409, 0.0
      %v1542 = vmin.f32 %v1414, 0.0
      %v1543 = vmin.f32 %v1417, 0.0
      %v1544 = vmin.f32 %v1422, 0.0
      %v1545 = vmin.f32 %v1425, 0.0
      %v1546 = vmin.f32 %v1430, 0.0
      %v1547 = vmin.f32 %v1433, 0.0
      %v1548 = vmin.f32 %v1438, 0.0
      %v1549 = vmin.f32 %v1441, 0.0
      %v1550 = vmin.f32 %v1446, 0.0
      %v1551 = vmin.f32 %v1449, 0.0
      %v1552 = vmin.f32 %v1454, 0.0
      %v1553 = vmin.f32 %v1457, 0.0
      %v1554 = vmin.f32 %v1462, 0.0
      %v1555 = vmin.f32 %v1465, 0.0
      %v1556 = vmin.f32 %v1470, 0.0
      %v1557 = vmin.f32 %v1473, 0.0
      %v1558 = vmin.f32 %v1478, 0.0
      %v1559 = vmin.f32 %v1481, 0.0
      %v1560 = vmin.f32 %v1486, 0.0
      %v1561 = vmin.f32 %v1489, 0.0
      %v1562 = vmin.f32 %v1494, 0.0
      %v1563 = vmin.f32 %v1497, 0.0
      %v1564 = vmul.f32 %v1532, 1.442695
      %v1565 = vpow.pop %v1564
      %v1566 = vmul.f32 %v1533, 1.442695
      %v1567 = vpow.pop %v1566
      %v1568 = vmul.f32 %v1534, 1.442695
      %v1569 = vpow.pop %v1568
      %v1570 = vmul.f32 %v1535, 1.442695
      %v1571 = vpow.pop %v1570
      %v1572 = vmul.f32 %v1536, 1.442695
      %v1573 = vpow.pop %v1572
      %v1574 = vmul.f32 %v1537, 1.442695
      %v1575 = vpow.pop %v1574
      %v1576 = vmul.f32 %v1538, 1.442695
      %v1577 = vpow.pop %v1576
      %v1578 = vmul.f32 %v1539, 1.442695
      %v1579 = vpow.pop %v1578
      %v1580 = vmul.f32 %v1540, 1.442695
      %v1581 = vpow.pop %v1580
      %v1582 = vmul.f32 %v1541, 1.442695
      %v1583 = vpow.pop %v1582
      %v1584 = vmul.f32 %v1542, 1.442695
      %v1585 = vpow.pop %v1584
      %v1586 = vmul.f32 %v1543, 1.442695
      %v1587 = vpow.pop %v1586
      %v1588 = vmul.f32 %v1544, 1.442695
      %v1589 = vpow.pop %v1588
      %v1590 = vmul.f32 %v1545, 1.442695
      %v1591 = vpow.pop %v1590
      %v1592 = vmul.f32 %v1546, 1.442695
      %v1593 = vpow.pop %v1592
      %v1594 = vmul.f32 %v1547, 1.442695
      %v1595 = vpow.pop %v1594
      %v1596 = vmul.f32 %v1548, 1.442695
      %v1597 = vpow.pop %v1596
      %v1598 = vmul.f32 %v1549, 1.442695
      %v1599 = vpow.pop %v1598
      %v1600 = vmul.f32 %v1550, 1.442695
      %v1601 = vpow.pop %v1600
      %v1602 = vmul.f32 %v1551, 1.442695
      %v1603 = vpow.pop %v1602
      %v1604 = vmul.f32 %v1552, 1.442695
      %v1605 = vpow.pop %v1604
      %v1606 = vmul.f32 %v1553, 1.442695
      %v1607 = vpow.pop %v1606
      %v1608 = vmul.f32 %v1554, 1.442695
      %v1609 = vpow.pop %v1608
      %v1610 = vmul.f32 %v1555, 1.442695
      %v1611 = vpow.pop %v1610
      %v1612 = vmul.f32 %v1556, 1.442695
      %v1613 = vpow.pop %v1612
      %v1614 = vmul.f32 %v1557, 1.442695
      %v1615 = vpow.pop %v1614
      %v1616 = vmul.f32 %v1558, 1.442695
      %v1617 = vpow.pop %v1616
      %v1618 = vmul.f32 %v1559, 1.442695
      %v1619 = vpow.pop %v1618
      %v1620 = vmul.f32 %v1560, 1.442695
      %v1621 = vpow.pop %v1620
      %v1622 = vmul.f32 %v1561, 1.442695
      %v1623 = vpow.pop %v1622
      %v1624 = vmul.f32 %v1562, 1.442695
      %v1625 = vpow.pop %v1624
      %v1626 = vmul.f32 %v1563, 1.442695
      %v1627 = vpow.pop %v1626
      %v1628 = vsub.f32 %v1565, 1.0
      %v1629 = vsub.f32 %v1567, 1.0
      %v1630 = vsub.f32 %v1569, 1.0
      %v1631 = vsub.f32 %v1571, 1.0
      %v1632 = vsub.f32 %v1573, 1.0
      %v1633 = vsub.f32 %v1575, 1.0
      %v1634 = vsub.f32 %v1577, 1.0
      %v1635 = vsub.f32 %v1579, 1.0
      %v1636 = vsub.f32 %v1581, 1.0
      %v1637 = vsub.f32 %v1583, 1.0
      %v1638 = vsub.f32 %v1585, 1.0
      %v1639 = vsub.f32 %v1587, 1.0
      %v1640 = vsub.f32 %v1589, 1.0
      %v1641 = vsub.f32 %v1591, 1.0
      %v1642 = vsub.f32 %v1593, 1.0
      %v1643 = vsub.f32 %v1595, 1.0
      %v1644 = vsub.f32 %v1597, 1.0
      %v1645 = vsub.f32 %v1599, 1.0
      %v1646 = vsub.f32 %v1601, 1.0
      %v1647 = vsub.f32 %v1603, 1.0
      %v1648 = vsub.f32 %v1605, 1.0
      %v1649 = vsub.f32 %v1607, 1.0
      %v1650 = vsub.f32 %v1609, 1.0
      %v1651 = vsub.f32 %v1611, 1.0
      %v1652 = vsub.f32 %v1613, 1.0
      %v1653 = vsub.f32 %v1615, 1.0
      %v1654 = vsub.f32 %v1617, 1.0
      %v1655 = vsub.f32 %v1619, 1.0
      %v1656 = vsub.f32 %v1621, 1.0
      %v1657 = vsub.f32 %v1623, 1.0
      %v1658 = vsub.f32 %v1625, 1.0
      %v1659 = vsub.f32 %v1627, 1.0
      %v1660 = vsel %vm1500, %v1374, %v1628
      %v1661 = vsel %vm1501, %v1377, %v1629
      %v1662 = vsel %vm1502, %v1382, %v1630
      %v1663 = vsel %vm1503, %v1385, %v1631
      %v1664 = vsel %vm1504, %v1390, %v1632
      %v1665 = vsel %vm1505, %v1393, %v1633
      %v1666 = vsel %vm1506, %v1398, %v1634
      %v1667 = vsel %vm1507, %v1401, %v1635
      %v1668 = vsel %vm1508, %v1406, %v1636
      %v1669 = vsel %vm1509, %v1409, %v1637
      %v1670 = vsel %vm1510, %v1414, %v1638
      %v1671 = vsel %vm1511, %v1417, %v1639
      %v1672 = vsel %vm1512, %v1422, %v1640
      %v1673 = vsel %vm1513, %v1425, %v1641
      %v1674 = vsel %vm1514, %v1430, %v1642
      %v1675 = vsel %vm1515, %v1433, %v1643
      %v1676 = vsel %vm1516, %v1438, %v1644
      %v1677 = vsel %vm1517, %v1441, %v1645
      %v1678 = vsel %vm1518, %v1446, %v1646
      %v1679 = vsel %vm1519, %v1449, %v1647
      %v1680 = vsel %vm1520, %v1454, %v1648
      %v1681 = vsel %vm1521, %v1457, %v1649
      %v1682 = vsel %vm1522, %v1462, %v1650
      %v1683 = vsel %vm1523, %v1465, %v1651
      %v1684 = vsel %vm1524, %v1470, %v1652
      %v1685 = vsel %vm1525, %v1473, %v1653
      %v1686 = vsel %vm1526, %v1478, %v1654
      %v1687 = vsel %vm1527, %v1481, %v1655
      %v1688 = vsel %vm1528, %v1486, %v1656
      %v1689 = vsel %vm1529, %v1489, %v1657
      %v1690 = vsel %vm1530, %v1494, %v1658
      %v1691 = vsel %vm1531, %v1497, %v1659
      %v1692 = vpack.c.bf16 %v1661, %v1660
      %v1693 = vpack.c.bf16 %v1663, %v1662
      %v1694 = vpack.c.bf16 %v1665, %v1664
      %v1695 = vpack.c.bf16 %v1667, %v1666
      %v1696 = vpack.c.bf16 %v1669, %v1668
      %v1697 = vpack.c.bf16 %v1671, %v1670
      %v1698 = vpack.c.bf16 %v1673, %v1672
      %v1699 = vpack.c.bf16 %v1675, %v1674
      %v1700 = vpack.c.bf16 %v1677, %v1676
      %v1701 = vpack.c.bf16 %v1679, %v1678
      %v1702 = vpack.c.bf16 %v1681, %v1680
      %v1703 = vpack.c.bf16 %v1683, %v1682
      %v1704 = vpack.c.bf16 %v1685, %v1684
      %v1705 = vpack.c.bf16 %v1687, %v1686
      %v1706 = vpack.c.bf16 %v1689, %v1688
      %v1707 = vpack.c.bf16 %v1691, %v1690
      %v1724 = vunpack.c.l.b16 %v1692
      %v1725 = vunpack.c.h.b16 %v1692
      %v1726 = vunpack.c.l.b16 %v1693
      %v1727 = vunpack.c.h.b16 %v1693
      %v1728 = vunpack.c.l.b16 %v1694
      %v1729 = vunpack.c.h.b16 %v1694
      %v1730 = vunpack.c.l.b16 %v1695
      %v1731 = vunpack.c.h.b16 %v1695
      %v1732 = vunpack.c.l.b16 %v1696
      %v1733 = vunpack.c.h.b16 %v1696
      %v1734 = vunpack.c.l.b16 %v1697
      %v1735 = vunpack.c.h.b16 %v1697
      %v1736 = vunpack.c.l.b16 %v1698
      %v1737 = vunpack.c.h.b16 %v1698
      %v1738 = vunpack.c.l.b16 %v1699
      %v1739 = vunpack.c.h.b16 %v1699
      %v1740 = vunpack.c.l.b16 %v1700
      %v1741 = vunpack.c.h.b16 %v1700
      %v1742 = vunpack.c.l.b16 %v1701
      %v1743 = vunpack.c.h.b16 %v1701
      %v1744 = vunpack.c.l.b16 %v1702
      %v1745 = vunpack.c.h.b16 %v1702
      %v1746 = vunpack.c.l.b16 %v1703
      %v1747 = vunpack.c.h.b16 %v1703
      %v1748 = vunpack.c.l.b16 %v1704
      %v1749 = vunpack.c.h.b16 %v1704
      %v1750 = vunpack.c.l.b16 %v1705
      %v1751 = vunpack.c.h.b16 %v1705
      %v1752 = vunpack.c.l.b16 %v1706
      %v1753 = vunpack.c.h.b16 %v1706
      %v1754 = vunpack.c.l.b16 %v1707
      %v1755 = vunpack.c.h.b16 %v1707
      %v1756 = vpack.c.b16 %v1724, %v1724
      %v1757 = vpack.c.b16 %v1725, %v1725
      %v1758 = vpack.c.b16 %v1726, %v1726
      %v1759 = vpack.c.b16 %v1727, %v1727
      %v1760 = vpack.c.b16 %v1728, %v1728
      %v1761 = vpack.c.b16 %v1729, %v1729
      %v1762 = vpack.c.b16 %v1730, %v1730
      %v1763 = vpack.c.b16 %v1731, %v1731
      %v1764 = vpack.c.b16 %v1732, %v1732
      %v1765 = vpack.c.b16 %v1733, %v1733
      %v1766 = vpack.c.b16 %v1734, %v1734
      %v1767 = vpack.c.b16 %v1735, %v1735
      %v1768 = vpack.c.b16 %v1736, %v1736
      %v1769 = vpack.c.b16 %v1737, %v1737
      %v1770 = vpack.c.b16 %v1738, %v1738
      %v1771 = vpack.c.b16 %v1739, %v1739
      %v1772 = vpack.c.b16 %v1740, %v1740
      %v1773 = vpack.c.b16 %v1741, %v1741
      %v1774 = vpack.c.b16 %v1742, %v1742
      %v1775 = vpack.c.b16 %v1743, %v1743
      %v1776 = vpack.c.b16 %v1744, %v1744
      %v1777 = vpack.c.b16 %v1745, %v1745
      %v1778 = vpack.c.b16 %v1746, %v1746
      %v1779 = vpack.c.b16 %v1747, %v1747
      %v1780 = vpack.c.b16 %v1748, %v1748
      %v1781 = vpack.c.b16 %v1749, %v1749
      %v1782 = vpack.c.b16 %v1750, %v1750
      %v1783 = vpack.c.b16 %v1751, %v1751
      %v1784 = vpack.c.b16 %v1752, %v1752
      %v1785 = vpack.c.b16 %v1753, %v1753
      %v1786 = vpack.c.b16 %v1754, %v1754
      %v1787 = vpack.c.b16 %v1755, %v1755
      %1820 = vst [vmem:[%s175] sm:$0xf] %v1756
      %1821 = vst [vmem:[%s175 + $0x4] sm:$0xf] %v1757
      %1822 = vst [vmem:[%s175 + $0x8] sm:$0xf] %v1758
      %1823 = vst [vmem:[%s175 + $0xc] sm:$0xf] %v1759
      %1824 = vst [vmem:[%s175 + $0x10] sm:$0xf] %v1760
      %1825 = vst [vmem:[%s175 + $0x14] sm:$0xf] %v1761
      %1826 = vst [vmem:[%s175 + $0x18] sm:$0xf] %v1762
      %1827 = vst [vmem:[%s175 + $0x1c] sm:$0xf] %v1763
      %1828 = vst [vmem:[%s175 + $0x20] sm:$0xf] %v1764
      %1829 = vst [vmem:[%s175 + $0x24] sm:$0xf] %v1765
      %1830 = vst [vmem:[%s175 + $0x28] sm:$0xf] %v1766
      %1831 = vst [vmem:[%s175 + $0x2c] sm:$0xf] %v1767
      %1832 = vst [vmem:[%s175 + $0x30] sm:$0xf] %v1768
      %1833 = vst [vmem:[%s175 + $0x34] sm:$0xf] %v1769
      %1834 = vst [vmem:[%s175 + $0x38] sm:$0xf] %v1770
      %1835 = vst [vmem:[%s175 + $0x3c] sm:$0xf] %v1771
      %1836 = vst [vmem:[%s175 + $0x40] sm:$0xf] %v1772
      %1837 = vst [vmem:[%s175 + $0x44] sm:$0xf] %v1773
      %1838 = vst [vmem:[%s175 + $0x48] sm:$0xf] %v1774
      %1839 = vst [vmem:[%s175 + $0x4c] sm:$0xf] %v1775
      %1840 = vst [vmem:[%s175 + $0x50] sm:$0xf] %v1776
      %1841 = vst [vmem:[%s175 + $0x54] sm:$0xf] %v1777
      %1842 = vst [vmem:[%s175 + $0x58] sm:$0xf] %v1778
      %1843 = vst [vmem:[%s175 + $0x5c] sm:$0xf] %v1779
      %1844 = vst [vmem:[%s175 + $0x60] sm:$0xf] %v1780
      %1845 = vst [vmem:[%s175 + $0x64] sm:$0xf] %v1781
      %1846 = vst [vmem:[%s175 + $0x68] sm:$0xf] %v1782
      %1847 = vst [vmem:[%s175 + $0x6c] sm:$0xf] %v1783
      %1848 = vst [vmem:[%s175 + $0x70] sm:$0xf] %v1784
      %1849 = vst [vmem:[%s175 + $0x74] sm:$0xf] %v1785
      %1850 = vst [vmem:[%s175 + $0x78] sm:$0xf] %v1786
      %1851 = vst [vmem:[%s175 + $0x7c] sm:$0xf] %v1787
      %s1852 = smul.u32 32, %s14
      %p1853 = scmp.lt.s32.totalorder %s1852, 63
      %s1854 = scalar_select %p1853, %s1852, 63
      %s1855 = smul.addr %s1854, 4
      %s1856 = scalar_lea.vmem %s3, %s1855
      // Predicated region
      $region33: #{nvidia_net_forward.7} parent=31 // pred_check
        %p1857 = pneg %p100
      $region34: #{nvidia_net_forward.7} parent=31 // pred_check_branch
        %1859 = sbr.rel (%p1857) target = $region36
      $region35: #{nvidia_net_forward.7} parent=31 // pred_region
        %s1860 = smul.u32 32, %s14
      $region36: #{nvidia_net_forward.7} parent=31 // pred_fallthru
        _
    $region32: #{nvidia_net_forward.7} parent=5 // pred_fallthru
      _
    %p1861 = scmp.le.s32.totalorder 2, %s9
    // Predicated region
    $region37: #{nvidia_net_forward.7} parent=5 // pred_check
      %p1862 = pneg %p1861
    $region38: #{nvidia_net_forward.7} parent=5 // pred_check_branch
      %1864 = sbr.rel (%p1862) target = $region40
    $region39: #{nvidia_net_forward.7} parent=5 // pred_region
      %s1865 = ssub.s32 %s9, 2
      // Predicated region
      $region41: #{nvidia_net_forward.7} parent=39 // pred_check
        %p1866 = pneg %p106
      $region42: #{nvidia_net_forward.7} parent=39 // pred_check_branch
        %1868 = sbr.rel (%p1866) target = $region44
      $region43: #{nvidia_net_forward.7} parent=39 // pred_region
        %s1869 = smul.u32 32, %s15
        %p1870 = scmp.lt.s32.totalorder %s1869, 63
        %s1871 = scalar_select %p1870, %s1869, 63
        %s1872 = smul.addr %s1871, 4
        %s1873 = scalar_lea.vmem %s3, %s1872
      $region44: #{nvidia_net_forward.7} parent=39 // pred_fallthru
        _
    $region40: #{nvidia_net_forward.7} parent=5 // pred_fallthru
      _
  $region6: #{nvidia_net_forward.7} parent=0 // loop_footer
    %s13 = sadd.s32 1, %s9
  $region7: #{nvidia_net_forward.7} parent=0 // loop_footer_branch
    %8 = sbr.rel target = $region3
  $region8: #{nvidia_net_forward.7} parent=0 // loop_exit
    _

// kernel: nvidia_net_forward.8
$region0: #{nvidia_net_forward.8}
  #allocation0 [shape = 'u32[]', space=smem, size = 0x4, offset = 0x4, fixed_abs, tag = 'smem constant byte address 0x4 - core index']
  #allocation1 [shape = 'u32[144,128]{1,0:T(1,128)}', space=vmem, size = 0x12000, scoped, tag = 'internal scratch']
  %s0 = inlined_call_operand.vmem [shape: bf16[56,1024], index: 0, kind: input, shape index: {}]
  %s1 = inlined_call_operand.vmem [shape: bf16[1024,128], index: 1, kind: input, shape index: {}]
  %s2 = inlined_call_operand.vmem [shape: f32[1,128], index: 2, kind: input, shape index: {}]
  %s3 = inlined_call_operand.vmem [shape: bf16[56,128], index: 3, kind: output, shape index: {}]
  %s4 = sld [smem:[#allocation0]]
  $region22: #{nvidia_net_forward.8} parent=0
    _
  %s6 = ssub.s32 1, %s4
  %s7 = scalar_select 0, %s6, %s4
  // Predicated region
  $region2: #{nvidia_net_forward.8} parent=0 // pred_check
    _
  $region3: #{nvidia_net_forward.8} parent=0 // pred_check_branch
    %9 = sbr.rel (0) target = $region5
  $region4: #{nvidia_net_forward.8} parent=0 // pred_region
    _
  $region5: #{nvidia_net_forward.8} parent=0 // pred_fallthru
    _
  // Predicated region
  $region6: #{nvidia_net_forward.8} parent=0 // pred_check
    _
  $region7: #{nvidia_net_forward.8} parent=0 // pred_check_branch
    %11 = sbr.rel (0) target = $region9
  $region8: #{nvidia_net_forward.8} parent=0 // pred_region
    _
  $region9: #{nvidia_net_forward.8} parent=0 // pred_fallthru
    _
  // Predicated region
  $region10: #{nvidia_net_forward.8} parent=0 // pred_check
    _
  $region11: #{nvidia_net_forward.8} parent=0 // pred_check_branch
    %13 = sbr.rel (0) target = $region13
  $region12: #{nvidia_net_forward.8} parent=0 // pred_region
    _
  $region13: #{nvidia_net_forward.8} parent=0 // pred_fallthru
    _
  %v15 = vld [vmem:[%s0] sm:$0xff]
  %v16 = vld [vmem:[%s0 + $0x8] sm:$0xff]
  %v17 = vld [vmem:[%s0 + $0x10] sm:$0xff]
  %v18 = vld [vmem:[%s0 + $0x18] sm:$0xff]
  %v19 = vld [vmem:[%s0 + $0x20] sm:$0xff]
  %v20 = vld [vmem:[%s0 + $0x28] sm:$0xff]
  %v21 = vld [vmem:[%s0 + $0x30] sm:$0xff]
  %v22 = vld [vmem:[%s0 + $0x38] sm:$0xff]
  %v23 = vld [vmem:[%s0 + $0x40] sm:$0xff]
  %v24 = vld [vmem:[%s0 + $0x48] sm:$0xff]
  %v25 = vld [vmem:[%s0 + $0x50] sm:$0xff]
  %v26 = vld [vmem:[%s0 + $0x58] sm:$0xff]
  %v27 = vld [vmem:[%s0 + $0x60] sm:$0xff]
  %v28 = vld [vmem:[%s0 + $0x68] sm:$0xff]
  %v29 = vld [vmem:[%s0 + $0x70] sm:$0xff]
  %v30 = vld [vmem:[%s0 + $0x78] sm:$0xff]
  %v31 = vld [vmem:[%s0 + $0x80] sm:$0xff]
  %v32 = vld [vmem:[%s0 + $0x88] sm:$0xff]
  %v33 = vld [vmem:[%s0 + $0x90] sm:$0xff]
  %v34 = vld [vmem:[%s0 + $0x98] sm:$0xff]
  %v35 = vld [vmem:[%s0 + $0xa0] sm:$0xff]
  %v36 = vld [vmem:[%s0 + $0xa8] sm:$0xff]
  %v37 = vld [vmem:[%s0 + $0xb0] sm:$0xff]
  %v38 = vld [vmem:[%s0 + $0xb8] sm:$0xff]
  %v39 = vld [vmem:[%s0 + $0xc0] sm:$0xff]
  %v40 = vld [vmem:[%s0 + $0xc8] sm:$0xff]
  %v41 = vld [vmem:[%s0 + $0xd0] sm:$0xff]
  %v42 = vld [vmem:[%s0 + $0xd8] sm:$0xff]
  %v43 = vld [vmem:[%s1] sm:$0xf]
  %v44 = vld [vmem:[%s1 + $0x4] sm:$0xf]
  %v45 = vld [vmem:[%s1 + $0x8] sm:$0xf]
  %v46 = vld [vmem:[%s1 + $0xc] sm:$0xf]
  %v47 = vld [vmem:[%s1 + $0x10] sm:$0xf]
  %v48 = vld [vmem:[%s1 + $0x14] sm:$0xf]
  %v49 = vld [vmem:[%s1 + $0x18] sm:$0xf]
  %v50 = vld [vmem:[%s1 + $0x1c] sm:$0xf]
  %v51 = vld [vmem:[%s1 + $0x20] sm:$0xf]
  %v52 = vld [vmem:[%s1 + $0x24] sm:$0xf]
  %v53 = vld [vmem:[%s1 + $0x28] sm:$0xf]
  %v54 = vld [vmem:[%s1 + $0x2c] sm:$0xf]
  %v55 = vld [vmem:[%s1 + $0x30] sm:$0xf]
  %v56 = vld [vmem:[%s1 + $0x34] sm:$0xf]
  %v57 = vld [vmem:[%s1 + $0x38] sm:$0xf]
  %v58 = vld [vmem:[%s1 + $0x3c] sm:$0xf]
  %v59 = vld [vmem:[%s1 + $0x40] sm:$0xf]
  %v60 = vld [vmem:[%s1 + $0x44] sm:$0xf]
  %v61 = vld [vmem:[%s1 + $0x48] sm:$0xf]
  %v62 = vld [vmem:[%s1 + $0x4c] sm:$0xf]
  %v63 = vld [vmem:[%s1 + $0x50] sm:$0xf]
  %v64 = vld [vmem:[%s1 + $0x54] sm:$0xf]
  %v65 = vld [vmem:[%s1 + $0x58] sm:$0xf]
  %v66 = vld [vmem:[%s1 + $0x5c] sm:$0xf]
  %v67 = vld [vmem:[%s1 + $0x60] sm:$0xf]
  %v68 = vld [vmem:[%s1 + $0x64] sm:$0xf]
  %v69 = vld [vmem:[%s1 + $0x68] sm:$0xf]
  %v70 = vld [vmem:[%s1 + $0x6c] sm:$0xf]
  %v71 = vld [vmem:[%s1 + $0x70] sm:$0xf]
  %v72 = vld [vmem:[%s1 + $0x74] sm:$0xf]
  %v73 = vld [vmem:[%s1 + $0x78] sm:$0xf]
  %v74 = vld [vmem:[%s1 + $0x7c] sm:$0xf]
  %v75 = vld [vmem:[%s1 + $0x80] sm:$0xf]
  %v76 = vld [vmem:[%s1 + $0x84] sm:$0xf]
  %v77 = vld [vmem:[%s1 + $0x88] sm:$0xf]
  %v78 = vld [vmem:[%s1 + $0x8c] sm:$0xf]
  %v79 = vld [vmem:[%s1 + $0x90] sm:$0xf]
  %v80 = vld [vmem:[%s1 + $0x94] sm:$0xf]
  %v81 = vld [vmem:[%s1 + $0x98] sm:$0xf]
  %v82 = vld [vmem:[%s1 + $0x9c] sm:$0xf]
  %v83 = vld [vmem:[%s1 + $0xa0] sm:$0xf]
  %v84 = vld [vmem:[%s1 + $0xa4] sm:$0xf]
  %v85 = vld [vmem:[%s1 + $0xa8] sm:$0xf]
  %v86 = vld [vmem:[%s1 + $0xac] sm:$0xf]
  %v87 = vld [vmem:[%s1 + $0xb0] sm:$0xf]
  %v88 = vld [vmem:[%s1 + $0xb4] sm:$0xf]
  %v89 = vld [vmem:[%s1 + $0xb8] sm:$0xf]
  %v90 = vld [vmem:[%s1 + $0xbc] sm:$0xf]
  %v91 = vld [vmem:[%s1 + $0xc0] sm:$0xf]
  %v92 = vld [vmem:[%s1 + $0xc4] sm:$0xf]
  %v93 = vld [vmem:[%s1 + $0xc8] sm:$0xf]
  %v94 = vld [vmem:[%s1 + $0xcc] sm:$0xf]
  %v95 = vld [vmem:[%s1 + $0xd0] sm:$0xf]
  %v96 = vld [vmem:[%s1 + $0xd4] sm:$0xf]
  %v97 = vld [vmem:[%s1 + $0xd8] sm:$0xf]
  %v98 = vld [vmem:[%s1 + $0xdc] sm:$0xf]
  %v99 = vld [vmem:[%s1 + $0xe0] sm:$0xf]
  %v100 = vld [vmem:[%s1 + $0xe4] sm:$0xf]
  %v101 = vld [vmem:[%s1 + $0xe8] sm:$0xf]
  %v102 = vld [vmem:[%s1 + $0xec] sm:$0xf]
  %v103 = vld [vmem:[%s1 + $0xf0] sm:$0xf]
  %v104 = vld [vmem:[%s1 + $0xf4] sm:$0xf]
  %v105 = vld [vmem:[%s1 + $0xf8] sm:$0xf]
  %v106 = vld [vmem:[%s1 + $0xfc] sm:$0xf]
  %v107 = vld [vmem:[%s1 + $0x100] sm:$0xf]
  %v108 = vld [vmem:[%s1 + $0x104] sm:$0xf]
  %v109 = vld [vmem:[%s1 + $0x108] sm:$0xf]
  %v110 = vld [vmem:[%s1 + $0x10c] sm:$0xf]
  %v111 = vld [vmem:[%s1 + $0x110] sm:$0xf]
  %v112 = vld [vmem:[%s1 + $0x114] sm:$0xf]
  %v113 = vld [vmem:[%s1 + $0x118] sm:$0xf]
  %v114 = vld [vmem:[%s1 + $0x11c] sm:$0xf]
  %v115 = vld [vmem:[%s1 + $0x120] sm:$0xf]
  %v116 = vld [vmem:[%s1 + $0x124] sm:$0xf]
  %v117 = vld [vmem:[%s1 + $0x128] sm:$0xf]
  %v118 = vld [vmem:[%s1 + $0x12c] sm:$0xf]
  %v119 = vld [vmem:[%s1 + $0x130] sm:$0xf]
  %v120 = vld [vmem:[%s1 + $0x134] sm:$0xf]
  %v121 = vld [vmem:[%s1 + $0x138] sm:$0xf]
  %v122 = vld [vmem:[%s1 + $0x13c] sm:$0xf]
  %v123 = vld [vmem:[%s1 + $0x140] sm:$0xf]
  %v124 = vld [vmem:[%s1 + $0x144] sm:$0xf]
  %v125 = vld [vmem:[%s1 + $0x148] sm:$0xf]
  %v126 = vld [vmem:[%s1 + $0x14c] sm:$0xf]
  %v127 = vld [vmem:[%s1 + $0x150] sm:$0xf]
  %v128 = vld [vmem:[%s1 + $0x154] sm:$0xf]
  %v129 = vld [vmem:[%s1 + $0x158] sm:$0xf]
  %v130 = vld [vmem:[%s1 + $0x15c] sm:$0xf]
  %v131 = vld [vmem:[%s1 + $0x160] sm:$0xf]
  %v132 = vld [vmem:[%s1 + $0x164] sm:$0xf]
  %v133 = vld [vmem:[%s1 + $0x168] sm:$0xf]
  %v134 = vld [vmem:[%s1 + $0x16c] sm:$0xf]
  %v135 = vld [vmem:[%s1 + $0x170] sm:$0xf]
  %v136 = vld [vmem:[%s1 + $0x174] sm:$0xf]
  %v137 = vld [vmem:[%s1 + $0x178] sm:$0xf]
  %v138 = vld [vmem:[%s1 + $0x17c] sm:$0xf]
  %v139 = vld [vmem:[%s1 + $0x180] sm:$0xf]
  %v140 = vld [vmem:[%s1 + $0x184] sm:$0xf]
  %v141 = vld [vmem:[%s1 + $0x188] sm:$0xf]
  %v142 = vld [vmem:[%s1 + $0x18c] sm:$0xf]
  %v143 = vld [vmem:[%s1 + $0x190] sm:$0xf]
  %v144 = vld [vmem:[%s1 + $0x194] sm:$0xf]
  %v145 = vld [vmem:[%s1 + $0x198] sm:$0xf]
  %v146 = vld [vmem:[%s1 + $0x19c] sm:$0xf]
  %v147 = vld [vmem:[%s1 + $0x1a0] sm:$0xf]
  %v148 = vld [vmem:[%s1 + $0x1a4] sm:$0xf]
  %v149 = vld [vmem:[%s1 + $0x1a8] sm:$0xf]
  %v150 = vld [vmem:[%s1 + $0x1ac] sm:$0xf]
  %v151 = vld [vmem:[%s1 + $0x1b0] sm:$0xf]
  %v152 = vld [vmem:[%s1 + $0x1b4] sm:$0xf]
  %v153 = vld [vmem:[%s1 + $0x1b8] sm:$0xf]
  %v154 = vld [vmem:[%s1 + $0x1bc] sm:$0xf]
  %v155 = vld [vmem:[%s1 + $0x1c0] sm:$0xf]
  %v156 = vld [vmem:[%s1 + $0x1c4] sm:$0xf]
  %v157 = vld [vmem:[%s1 + $0x1c8] sm:$0xf]
  %v158 = vld [vmem:[%s1 + $0x1cc] sm:$0xf]
  %v159 = vld [vmem:[%s1 + $0x1d0] sm:$0xf]
  %v160 = vld [vmem:[%s1 + $0x1d4] sm:$0xf]
  %v161 = vld [vmem:[%s1 + $0x1d8] sm:$0xf]
  %v162 = vld [vmem:[%s1 + $0x1dc] sm:$0xf]
  %v163 = vld [vmem:[%s1 + $0x1e0] sm:$0xf]
  %v164 = vld [vmem:[%s1 + $0x1e4] sm:$0xf]
  %v165 = vld [vmem:[%s1 + $0x1e8] sm:$0xf]
  %v166 = vld [vmem:[%s1 + $0x1ec] sm:$0xf]
  %v167 = vld [vmem:[%s1 + $0x1f0] sm:$0xf]
  %v168 = vld [vmem:[%s1 + $0x1f4] sm:$0xf]
  %v169 = vld [vmem:[%s1 + $0x1f8] sm:$0xf]
  %v170 = vld [vmem:[%s1 + $0x1fc] sm:$0xf]
  %v171 = vld [vmem:[%s2] sm:$0x1]
  %v173 = vlaneseq
  %v174 = vshrl.u32 %v173, 7
  %v175 = vsub.s32 0, %v174
  %v176 = vrot.slane %v171, %v175
  %v206 = vunpack.c.l.b16 %v15
  %v207 = vunpack.c.h.b16 %v15
  %v208 = vunpack.c.l.b16 %v16
  %v209 = vunpack.c.h.b16 %v16
  %v210 = vunpack.c.l.b16 %v17
  %v211 = vunpack.c.h.b16 %v17
  %v212 = vunpack.c.l.b16 %v18
  %v213 = vunpack.c.h.b16 %v18
  %v214 = vunpack.c.l.b16 %v19
  %v215 = vunpack.c.h.b16 %v19
  %v216 = vunpack.c.l.b16 %v20
  %v217 = vunpack.c.h.b16 %v20
  %v218 = vunpack.c.l.b16 %v21
  %v219 = vunpack.c.h.b16 %v21
  %v220 = vunpack.c.l.b16 %v22
  %v221 = vunpack.c.h.b16 %v22
  %v222 = vunpack.c.l.b16 %v23
  %v223 = vunpack.c.h.b16 %v23
  %v224 = vunpack.c.l.b16 %v24
  %v225 = vunpack.c.h.b16 %v24
  %v226 = vunpack.c.l.b16 %v25
  %v227 = vunpack.c.h.b16 %v25
  %v228 = vunpack.c.l.b16 %v26
  %v229 = vunpack.c.h.b16 %v26
  %v230 = vunpack.c.l.b16 %v27
  %v231 = vunpack.c.h.b16 %v27
  %v232 = vunpack.c.l.b16 %v28
  %v233 = vunpack.c.h.b16 %v28
  %v234 = vunpack.c.l.b16 %v29
  %v235 = vunpack.c.h.b16 %v29
  %v236 = vunpack.c.l.b16 %v30
  %v237 = vunpack.c.h.b16 %v30
  %v238 = vunpack.c.l.b16 %v31
  %v239 = vunpack.c.h.b16 %v31
  %v240 = vunpack.c.l.b16 %v32
  %v241 = vunpack.c.h.b16 %v32
  %v242 = vunpack.c.l.b16 %v33
  %v243 = vunpack.c.h.b16 %v33
  %v244 = vunpack.c.l.b16 %v34
  %v245 = vunpack.c.h.b16 %v34
  %v246 = vunpack.c.l.b16 %v35
  %v247 = vunpack.c.h.b16 %v35
  %v248 = vunpack.c.l.b16 %v36
  %v249 = vunpack.c.h.b16 %v36
  %v250 = vunpack.c.l.b16 %v37
  %v251 = vunpack.c.h.b16 %v37
  %v252 = vunpack.c.l.b16 %v38
  %v253 = vunpack.c.h.b16 %v38
  %v254 = vunpack.c.l.b16 %v39
  %v255 = vunpack.c.h.b16 %v39
  %v256 = vunpack.c.l.b16 %v40
  %v257 = vunpack.c.h.b16 %v40
  %v258 = vunpack.c.l.b16 %v41
  %v259 = vunpack.c.h.b16 %v41
  %v260 = vunpack.c.l.b16 %v42
  %v261 = vunpack.c.h.b16 %v42
  %v262 = vpack.c.b16 %v214, %v206
  %v263 = vpack.c.b16 %v215, %v207
  %v264 = vpack.c.b16 %v216, %v208
  %v265 = vpack.c.b16 %v217, %v209
  %v266 = vpack.c.b16 %v218, %v210
  %v267 = vpack.c.b16 %v219, %v211
  %v268 = vpack.c.b16 %v220, %v212
  %v269 = vpack.c.b16 %v221, %v213
  %v270 = vpack.c.b16 %v230, %v222
  %v271 = vpack.c.b16 %v231, %v223
  %v272 = vpack.c.b16 %v232, %v224
  %v273 = vpack.c.b16 %v233, %v225
  %v274 = vpack.c.b16 %v234, %v226
  %v275 = vpack.c.b16 %v235, %v227
  %v276 = vpack.c.b16 %v236, %v228
  %v277 = vpack.c.b16 %v237, %v229
  %v278 = vpack.c.b16 %v246, %v238
  %v279 = vpack.c.b16 %v247, %v239
  %v280 = vpack.c.b16 %v248, %v240
  %v281 = vpack.c.b16 %v249, %v241
  %v282 = vpack.c.b16 %v250, %v242
  %v283 = vpack.c.b16 %v251, %v243
  %v284 = vpack.c.b16 %v252, %v244
  %v285 = vpack.c.b16 %v253, %v245
  %v286 = vpack.c.b16 %v254, %v254
  %v287 = vpack.c.b16 %v255, %v255
  %v288 = vpack.c.b16 %v256, %v256
  %v289 = vpack.c.b16 %v257, %v257
  %v290 = vpack.c.b16 %v258, %v258
  %v291 = vpack.c.b16 %v259, %v259
  %v292 = vpack.c.b16 %v260, %v260
  %v293 = vpack.c.b16 %v261, %v261
  %v454 = vunpack.c.l.b16 %v43
  %v455 = vunpack.c.l.b16 %v44
  %v456 = vunpack.c.l.b16 %v45
  %v457 = vunpack.c.l.b16 %v46
  %v458 = vunpack.c.l.b16 %v47
  %v459 = vunpack.c.l.b16 %v48
  %v460 = vunpack.c.l.b16 %v49
  %v461 = vunpack.c.l.b16 %v50
  %v462 = vunpack.c.l.b16 %v51
  %v463 = vunpack.c.l.b16 %v52
  %v464 = vunpack.c.l.b16 %v53
  %v465 = vunpack.c.l.b16 %v54
  %v466 = vunpack.c.l.b16 %v55
  %v467 = vunpack.c.l.b16 %v56
  %v468 = vunpack.c.l.b16 %v57
  %v469 = vunpack.c.l.b16 %v58
  %v470 = vunpack.c.l.b16 %v59
  %v471 = vunpack.c.l.b16 %v60
  %v472 = vunpack.c.l.b16 %v61
  %v473 = vunpack.c.l.b16 %v62
  %v474 = vunpack.c.l.b16 %v63
  %v475 = vunpack.c.l.b16 %v64
  %v476 = vunpack.c.l.b16 %v65
  %v477 = vunpack.c.l.b16 %v66
  %v478 = vunpack.c.l.b16 %v67
  %v479 = vunpack.c.l.b16 %v68
  %v480 = vunpack.c.l.b16 %v69
  %v481 = vunpack.c.l.b16 %v70
  %v482 = vunpack.c.l.b16 %v71
  %v483 = vunpack.c.l.b16 %v72
  %v484 = vunpack.c.l.b16 %v73
  %v485 = vunpack.c.l.b16 %v74
  %v486 = vunpack.c.l.b16 %v75
  %v487 = vunpack.c.l.b16 %v76
  %v488 = vunpack.c.l.b16 %v77
  %v489 = vunpack.c.l.b16 %v78
  %v490 = vunpack.c.l.b16 %v79
  %v491 = vunpack.c.l.b16 %v80
  %v492 = vunpack.c.l.b16 %v81
  %v493 = vunpack.c.l.b16 %v82
  %v494 = vunpack.c.l.b16 %v83
  %v495 = vunpack.c.l.b16 %v84
  %v496 = vunpack.c.l.b16 %v85
  %v497 = vunpack.c.l.b16 %v86
  %v498 = vunpack.c.l.b16 %v87
  %v499 = vunpack.c.l.b16 %v88
  %v500 = vunpack.c.l.b16 %v89
  %v501 = vunpack.c.l.b16 %v90
  %v502 = vunpack.c.l.b16 %v91
  %v503 = vunpack.c.l.b16 %v92
  %v504 = vunpack.c.l.b16 %v93
  %v505 = vunpack.c.l.b16 %v94
  %v506 = vunpack.c.l.b16 %v95
  %v507 = vunpack.c.l.b16 %v96
  %v508 = vunpack.c.l.b16 %v97
  %v509 = vunpack.c.l.b16 %v98
  %v510 = vunpack.c.l.b16 %v99
  %v511 = vunpack.c.l.b16 %v100
  %v512 = vunpack.c.l.b16 %v101
  %v513 = vunpack.c.l.b16 %v102
  %v514 = vunpack.c.l.b16 %v103
  %v515 = vunpack.c.l.b16 %v104
  %v516 = vunpack.c.l.b16 %v105
  %v517 = vunpack.c.l.b16 %v106
  %v518 = vunpack.c.l.b16 %v107
  %v519 = vunpack.c.l.b16 %v108
  %v520 = vunpack.c.l.b16 %v109
  %v521 = vunpack.c.l.b16 %v110
  %v522 = vunpack.c.l.b16 %v111
  %v523 = vunpack.c.l.b16 %v112
  %v524 = vunpack.c.l.b16 %v113
  %v525 = vunpack.c.l.b16 %v114
  %v526 = vunpack.c.l.b16 %v115
  %v527 = vunpack.c.l.b16 %v116
  %v528 = vunpack.c.l.b16 %v117
  %v529 = vunpack.c.l.b16 %v118
  %v530 = vunpack.c.l.b16 %v119
  %v531 = vunpack.c.l.b16 %v120
  %v532 = vunpack.c.l.b16 %v121
  %v533 = vunpack.c.l.b16 %v122
  %v534 = vunpack.c.l.b16 %v123
  %v535 = vunpack.c.l.b16 %v124
  %v536 = vunpack.c.l.b16 %v125
  %v537 = vunpack.c.l.b16 %v126
  %v538 = vunpack.c.l.b16 %v127
  %v539 = vunpack.c.l.b16 %v128
  %v540 = vunpack.c.l.b16 %v129
  %v541 = vunpack.c.l.b16 %v130
  %v542 = vunpack.c.l.b16 %v131
  %v543 = vunpack.c.l.b16 %v132
  %v544 = vunpack.c.l.b16 %v133
  %v545 = vunpack.c.l.b16 %v134
  %v546 = vunpack.c.l.b16 %v135
  %v547 = vunpack.c.l.b16 %v136
  %v548 = vunpack.c.l.b16 %v137
  %v549 = vunpack.c.l.b16 %v138
  %v550 = vunpack.c.l.b16 %v139
  %v551 = vunpack.c.l.b16 %v140
  %v552 = vunpack.c.l.b16 %v141
  %v553 = vunpack.c.l.b16 %v142
  %v554 = vunpack.c.l.b16 %v143
  %v555 = vunpack.c.l.b16 %v144
  %v556 = vunpack.c.l.b16 %v145
  %v557 = vunpack.c.l.b16 %v146
  %v558 = vunpack.c.l.b16 %v147
  %v559 = vunpack.c.l.b16 %v148
  %v560 = vunpack.c.l.b16 %v149
  %v561 = vunpack.c.l.b16 %v150
  %v562 = vunpack.c.l.b16 %v151
  %v563 = vunpack.c.l.b16 %v152
  %v564 = vunpack.c.l.b16 %v153
  %v565 = vunpack.c.l.b16 %v154
  %v566 = vunpack.c.l.b16 %v155
  %v567 = vunpack.c.l.b16 %v156
  %v568 = vunpack.c.l.b16 %v157
  %v569 = vunpack.c.l.b16 %v158
  %v570 = vunpack.c.l.b16 %v159
  %v571 = vunpack.c.l.b16 %v160
  %v572 = vunpack.c.l.b16 %v161
  %v573 = vunpack.c.l.b16 %v162
  %v574 = vunpack.c.l.b16 %v163
  %v575 = vunpack.c.l.b16 %v164
  %v576 = vunpack.c.l.b16 %v165
  %v577 = vunpack.c.l.b16 %v166
  %v578 = vunpack.c.l.b16 %v167
  %v579 = vunpack.c.l.b16 %v168
  %v580 = vunpack.c.l.b16 %v169
  %v581 = vunpack.c.l.b16 %v170
  %v582 = vpack.c.b16 %v455, %v454
  %v583 = vpack.c.b16 %v457, %v456
  %v584 = vpack.c.b16 %v459, %v458
  %v585 = vpack.c.b16 %v461, %v460
  %v586 = vpack.c.b16 %v463, %v462
  %v587 = vpack.c.b16 %v465, %v464
  %v588 = vpack.c.b16 %v467, %v466
  %v589 = vpack.c.b16 %v469, %v468
  %v590 = vpack.c.b16 %v471, %v470
  %v591 = vpack.c.b16 %v473, %v472
  %v592 = vpack.c.b16 %v475, %v474
  %v593 = vpack.c.b16 %v477, %v476
  %v594 = vpack.c.b16 %v479, %v478
  %v595 = vpack.c.b16 %v481, %v480
  %v596 = vpack.c.b16 %v483, %v482
  %v597 = vpack.c.b16 %v485, %v484
  %v598 = vpack.c.b16 %v487, %v486
  %v599 = vpack.c.b16 %v489, %v488
  %v600 = vpack.c.b16 %v491, %v490
  %v601 = vpack.c.b16 %v493, %v492
  %v602 = vpack.c.b16 %v495, %v494
  %v603 = vpack.c.b16 %v497, %v496
  %v604 = vpack.c.b16 %v499, %v498
  %v605 = vpack.c.b16 %v501, %v500
  %v606 = vpack.c.b16 %v503, %v502
  %v607 = vpack.c.b16 %v505, %v504
  %v608 = vpack.c.b16 %v507, %v506
  %v609 = vpack.c.b16 %v509, %v508
  %v610 = vpack.c.b16 %v511, %v510
  %v611 = vpack.c.b16 %v513, %v512
  %v612 = vpack.c.b16 %v515, %v514
  %v613 = vpack.c.b16 %v517, %v516
  %v614 = vpack.c.b16 %v519, %v518
  %v615 = vpack.c.b16 %v521, %v520
  %v616 = vpack.c.b16 %v523, %v522
  %v617 = vpack.c.b16 %v525, %v524
  %v618 = vpack.c.b16 %v527, %v526
  %v619 = vpack.c.b16 %v529, %v528
  %v620 = vpack.c.b16 %v531, %v530
  %v621 = vpack.c.b16 %v533, %v532
  %v622 = vpack.c.b16 %v535, %v534
  %v623 = vpack.c.b16 %v537, %v536
  %v624 = vpack.c.b16 %v539, %v538
  %v625 = vpack.c.b16 %v541, %v540
  %v626 = vpack.c.b16 %v543, %v542
  %v627 = vpack.c.b16 %v545, %v544
  %v628 = vpack.c.b16 %v547, %v546
  %v629 = vpack.c.b16 %v549, %v548
  %v630 = vpack.c.b16 %v551, %v550
  %v631 = vpack.c.b16 %v553, %v552
  %v632 = vpack.c.b16 %v555, %v554
  %v633 = vpack.c.b16 %v557, %v556
  %v634 = vpack.c.b16 %v559, %v558
  %v635 = vpack.c.b16 %v561, %v560
  %v636 = vpack.c.b16 %v563, %v562
  %v637 = vpack.c.b16 %v565, %v564
  %v638 = vpack.c.b16 %v567, %v566
  %v639 = vpack.c.b16 %v569, %v568
  %v640 = vpack.c.b16 %v571, %v570
  %v641 = vpack.c.b16 %v573, %v572
  %v642 = vpack.c.b16 %v575, %v574
  %v643 = vpack.c.b16 %v577, %v576
  %v644 = vpack.c.b16 %v579, %v578
  %v645 = vpack.c.b16 %v581, %v580
  %710 = vmatprep.subr.bf16.mxu0 0
  %711 = vmatpush1.bf16.msra.mxu0 %v589
  %712 = vmatprep.subr.bf16.mxu0 0
  %713 = vmatpush1.bf16.msra.mxu0 %v588
  %714 = vmatprep.subr.bf16.mxu0 0
  %715 = vmatpush1.bf16.msra.mxu0 %v587
  %716 = vmatprep.subr.bf16.mxu0 0
  %717 = vmatpush1.bf16.msra.mxu0 %v586
  %718 = vmatprep.subr.bf16.mxu0 0
  %719 = vmatpush1.bf16.msra.mxu0 %v585
  %720 = vmatprep.subr.bf16.mxu0 0
  %721 = vmatpush1.bf16.msra.mxu0 %v584
  %722 = vmatprep.subr.bf16.mxu0 0
  %723 = vmatpush1.bf16.msra.mxu0 %v583
  %724 = vmatprep.subr.bf16.mxu0 0
  %725 = vmatpush1.bf16.msra.mxu0 %v582
  %726 = vmatprep.subr.bf16.mxu0 0
  %727 = vmatpush2.bf16.msra.mxu0 %v597
  %728 = vmatprep.subr.bf16.mxu0 0
  %729 = vmatpush2.bf16.msra.mxu0 %v596
  %730 = vmatprep.subr.bf16.mxu0 0
  %731 = vmatpush2.bf16.msra.mxu0 %v595
  %732 = vmatprep.subr.bf16.mxu0 0
  %733 = vmatpush2.bf16.msra.mxu0 %v594
  %734 = vmatprep.subr.bf16.mxu0 0
  %735 = vmatpush2.bf16.msra.mxu0 %v593
  %736 = vmatprep.subr.bf16.mxu0 0
  %737 = vmatpush2.bf16.msra.mxu0 %v592
  %738 = vmatprep.subr.bf16.mxu0 0
  %739 = vmatpush2.bf16.msra.mxu0 %v591
  %740 = vmatprep.subr.bf16.mxu0 0
  %741 = vmatpush2.bf16.msra.mxu0 %v590
  %742 = vmatprep.mubr.bf16.mxu0 %v263
  %743 = vmatmul.mubr.bf16.gmra.mxu0 %v262
  %v744 = vpop.f32.mrf.mxu0
  %v745 = vadd.f32 %v176, %v744
  %v746 = vpop.f32.mrf.mxu0
  %v747 = vpop.f32.mrf.mxu0
  %v748 = vadd.f32 %v176, %v747
  %v749 = vpop.f32.mrf.mxu0
  %750 = vmatprep.mubr.bf16.mxu0 %v271
  %751 = vmatmul.mubr.bf16.gmra.mxu0 %v270
  %v752 = vpop.f32.mrf.mxu0
  %v753 = vadd.f32 %v176, %v752
  %v754 = vpop.f32.mrf.mxu0
  %v755 = vpop.f32.mrf.mxu0
  %v756 = vadd.f32 %v176, %v755
  %v757 = vpop.f32.mrf.mxu0
  %758 = vmatprep.mubr.bf16.mxu0 %v279
  %759 = vmatmul.mubr.bf16.gmra.mxu0 %v278
  %v760 = vpop.f32.mrf.mxu0
  %v761 = vadd.f32 %v176, %v760
  %v762 = vpop.f32.mrf.mxu0
  %v763 = vpop.f32.mrf.mxu0
  %v764 = vadd.f32 %v176, %v763
  %v765 = vpop.f32.mrf.mxu0
  %766 = vmatprep.mubr.bf16.mxu0 %v287
  %767 = vmatmul.mubr.bf16.gmra.mxu0 %v286
  %v768 = vpop.f32.mrf.mxu0
  %v769 = vadd.f32 %v176, %v768
  %v770 = vpop.f32.mrf.mxu0
  %v771 = vpop.f32.mrf.mxu0
  %v772 = vpop.f32.mrf.mxu0
  %773 = vdwg.mxu0
  %774 = vmatprep.subr.bf16.mxu0 0
  %775 = vmatpush1.bf16.msra.mxu0 %v605
  %776 = vmatprep.subr.bf16.mxu0 0
  %777 = vmatpush1.bf16.msra.mxu0 %v604
  %778 = vmatprep.subr.bf16.mxu0 0
  %779 = vmatpush1.bf16.msra.mxu0 %v603
  %780 = vmatprep.subr.bf16.mxu0 0
  %781 = vmatpush1.bf16.msra.mxu0 %v602
  %782 = vmatprep.subr.bf16.mxu0 0
  %783 = vmatpush1.bf16.msra.mxu0 %v601
  %784 = vmatprep.subr.bf16.mxu0 0
  %785 = vmatpush1.bf16.msra.mxu0 %v600
  %786 = vmatprep.subr.bf16.mxu0 0
  %787 = vmatpush1.bf16.msra.mxu0 %v599
  %788 = vmatprep.subr.bf16.mxu0 0
  %789 = vmatpush1.bf16.msra.mxu0 %v598
  %790 = vmatprep.subr.bf16.mxu0 0
  %791 = vmatpush2.bf16.msra.mxu0 %v613
  %792 = vmatprep.subr.bf16.mxu0 0
  %793 = vmatpush2.bf16.msra.mxu0 %v612
  %794 = vmatprep.subr.bf16.mxu0 0
  %795 = vmatpush2.bf16.msra.mxu0 %v611
  %796 = vmatprep.subr.bf16.mxu0 0
  %797 = vmatpush2.bf16.msra.mxu0 %v610
  %798 = vmatprep.subr.bf16.mxu0 0
  %799 = vmatpush2.bf16.msra.mxu0 %v609
  %800 = vmatprep.subr.bf16.mxu0 0
  %801 = vmatpush2.bf16.msra.mxu0 %v608
  %802 = vmatprep.subr.bf16.mxu0 0
  %803 = vmatpush2.bf16.msra.mxu0 %v607
  %804 = vmatprep.subr.bf16.mxu0 0
  %805 = vmatpush2.bf16.msra.mxu0 %v606
  %806 = vmatprep.mubr.bf16.mxu0 %v265
  %807 = vmatmul.mubr.bf16.gmra.mxu0 %v264
  %v808 = vpop.f32.mrf.mxu0
  %v809 = vadd.f32 %v745, %v808
  %v810 = vpop.f32.mrf.mxu0
  %v811 = vpop.f32.mrf.mxu0
  %v812 = vadd.f32 %v748, %v811
  %v813 = vpop.f32.mrf.mxu0
  %814 = vmatprep.mubr.bf16.mxu0 %v273
  %815 = vmatmul.mubr.bf16.gmra.mxu0 %v272
  %v816 = vpop.f32.mrf.mxu0
  %v817 = vadd.f32 %v753, %v816
  %v818 = vpop.f32.mrf.mxu0
  %v819 = vpop.f32.mrf.mxu0
  %v820 = vadd.f32 %v756, %v819
  %v821 = vpop.f32.mrf.mxu0
  %822 = vmatprep.mubr.bf16.mxu0 %v281
  %823 = vmatmul.mubr.bf16.gmra.mxu0 %v280
  %v824 = vpop.f32.mrf.mxu0
  %v825 = vadd.f32 %v761, %v824
  %v826 = vpop.f32.mrf.mxu0
  %v827 = vpop.f32.mrf.mxu0
  %v828 = vadd.f32 %v764, %v827
  %v829 = vpop.f32.mrf.mxu0
  %830 = vmatprep.mubr.bf16.mxu0 %v289
  %831 = vmatmul.mubr.bf16.gmra.mxu0 %v288
  %v832 = vpop.f32.mrf.mxu0
  %v833 = vadd.f32 %v769, %v832
  %v834 = vpop.f32.mrf.mxu0
  %v835 = vpop.f32.mrf.mxu0
  %v836 = vpop.f32.mrf.mxu0
  %837 = vdwg.mxu0
  %838 = vmatprep.subr.bf16.mxu0 0
  %839 = vmatpush1.bf16.msra.mxu0 %v621
  %840 = vmatprep.subr.bf16.mxu0 0
  %841 = vmatpush1.bf16.msra.mxu0 %v620
  %842 = vmatprep.subr.bf16.mxu0 0
  %843 = vmatpush1.bf16.msra.mxu0 %v619
  %844 = vmatprep.subr.bf16.mxu0 0
  %845 = vmatpush1.bf16.msra.mxu0 %v618
  %846 = vmatprep.subr.bf16.mxu0 0
  %847 = vmatpush1.bf16.msra.mxu0 %v617
  %848 = vmatprep.subr.bf16.mxu0 0
  %849 = vmatpush1.bf16.msra.mxu0 %v616
  %850 = vmatprep.subr.bf16.mxu0 0
  %851 = vmatpush1.bf16.msra.mxu0 %v615
  %852 = vmatprep.subr.bf16.mxu0 0
  %853 = vmatpush1.bf16.msra.mxu0 %v614
  %854 = vmatprep.subr.bf16.mxu0 0
  %855 = vmatpush2.bf16.msra.mxu0 %v629
  %856 = vmatprep.subr.bf16.mxu0 0
  %857 = vmatpush2.bf16.msra.mxu0 %v628
  %858 = vmatprep.subr.bf16.mxu0 0
  %859 = vmatpush2.bf16.msra.mxu0 %v627
  %860 = vmatprep.subr.bf16.mxu0 0
  %861 = vmatpush2.bf16.msra.mxu0 %v626
  %862 = vmatprep.subr.bf16.mxu0 0
  %863 = vmatpush2.bf16.msra.mxu0 %v625
  %864 = vmatprep.subr.bf16.mxu0 0
  %865 = vmatpush2.bf16.msra.mxu0 %v624
  %866 = vmatprep.subr.bf16.mxu0 0
  %867 = vmatpush2.bf16.msra.mxu0 %v623
  %868 = vmatprep.subr.bf16.mxu0 0
  %869 = vmatpush2.bf16.msra.mxu0 %v622
  %870 = vmatprep.mubr.bf16.mxu0 %v267
  %871 = vmatmul.mubr.bf16.gmra.mxu0 %v266
  %v872 = vpop.f32.mrf.mxu0
  %v873 = vadd.f32 %v809, %v872
  %v874 = vpop.f32.mrf.mxu0
  %v875 = vpop.f32.mrf.mxu0
  %v876 = vadd.f32 %v812, %v875
  %v877 = vpop.f32.mrf.mxu0
  %878 = vmatprep.mubr.bf16.mxu0 %v275
  %879 = vmatmul.mubr.bf16.gmra.mxu0 %v274
  %v880 = vpop.f32.mrf.mxu0
  %v881 = vadd.f32 %v817, %v880
  %v882 = vpop.f32.mrf.mxu0
  %v883 = vpop.f32.mrf.mxu0
  %v884 = vadd.f32 %v820, %v883
  %v885 = vpop.f32.mrf.mxu0
  %886 = vmatprep.mubr.bf16.mxu0 %v283
  %887 = vmatmul.mubr.bf16.gmra.mxu0 %v282
  %v888 = vpop.f32.mrf.mxu0
  %v889 = vadd.f32 %v825, %v888
  %v890 = vpop.f32.mrf.mxu0
  %v891 = vpop.f32.mrf.mxu0
  %v892 = vadd.f32 %v828, %v891
  %v893 = vpop.f32.mrf.mxu0
  %894 = vmatprep.mubr.bf16.mxu0 %v291
  %895 = vmatmul.mubr.bf16.gmra.mxu0 %v290
  %v896 = vpop.f32.mrf.mxu0
  %v897 = vadd.f32 %v833, %v896
  %v898 = vpop.f32.mrf.mxu0
  %v899 = vpop.f32.mrf.mxu0
  %v900 = vpop.f32.mrf.mxu0
  %901 = vdwg.mxu0
  %902 = vmatprep.subr.bf16.mxu0 0
  %903 = vmatpush1.bf16.msra.mxu0 %v637
  %904 = vmatprep.subr.bf16.mxu0 0
  %905 = vmatpush1.bf16.msra.mxu0 %v636
  %906 = vmatprep.subr.bf16.mxu0 0
  %907 = vmatpush1.bf16.msra.mxu0 %v635
  %908 = vmatprep.subr.bf16.mxu0 0
  %909 = vmatpush1.bf16.msra.mxu0 %v634
  %910 = vmatprep.subr.bf16.mxu0 0
  %911 = vmatpush1.bf16.msra.mxu0 %v633
  %912 = vmatprep.subr.bf16.mxu0 0
  %913 = vmatpush1.bf16.msra.mxu0 %v632
  %914 = vmatprep.subr.bf16.mxu0 0
  %915 = vmatpush1.bf16.msra.mxu0 %v631
  %916 = vmatprep.subr.bf16.mxu0 0
  %917 = vmatpush1.bf16.msra.mxu0 %v630
  %918 = vmatprep.subr.bf16.mxu0 0
  %919 = vmatpush2.bf16.msra.mxu0 %v645
  %920 = vmatprep.subr.bf16.mxu0 0
  %921 = vmatpush2.bf16.msra.mxu0 %v644
  %922 = vmatprep.subr.bf16.mxu0 0
  %923 = vmatpush2.bf16.msra.mxu0 %v643
  %924 = vmatprep.subr.bf16.mxu0 0
  %925 = vmatpush2.bf16.msra.mxu0 %v642
  %926 = vmatprep.subr.bf16.mxu0 0
  %927 = vmatpush2.bf16.msra.mxu0 %v641
  %928 = vmatprep.subr.bf16.mxu0 0
  %929 = vmatpush2.bf16.msra.mxu0 %v640
  %930 = vmatprep.subr.bf16.mxu0 0
  %931 = vmatpush2.bf16.msra.mxu0 %v639
  %932 = vmatprep.subr.bf16.mxu0 0
  %933 = vmatpush2.bf16.msra.mxu0 %v638
  %934 = vmatprep.mubr.bf16.mxu0 %v269
  %935 = vmatmul.mubr.bf16.gmra.mxu0 %v268
  %v936 = vpop.f32.mrf.mxu0
  %v937 = vadd.f32 %v873, %v936
  %v938 = vpop.f32.mrf.mxu0
  %v939 = vpop.f32.mrf.mxu0
  %v940 = vadd.f32 %v876, %v939
  %v941 = vpop.f32.mrf.mxu0
  %942 = vmatprep.mubr.bf16.mxu0 %v277
  %943 = vmatmul.mubr.bf16.gmra.mxu0 %v276
  %v944 = vpop.f32.mrf.mxu0
  %v945 = vadd.f32 %v881, %v944
  %v946 = vpop.f32.mrf.mxu0
  %v947 = vpop.f32.mrf.mxu0
  %v948 = vadd.f32 %v884, %v947
  %v949 = vpop.f32.mrf.mxu0
  %950 = vmatprep.mubr.bf16.mxu0 %v285
  %951 = vmatmul.mubr.bf16.gmra.mxu0 %v284
  %v952 = vpop.f32.mrf.mxu0
  %v953 = vadd.f32 %v889, %v952
  %v954 = vpop.f32.mrf.mxu0
  %v955 = vpop.f32.mrf.mxu0
  %v956 = vadd.f32 %v892, %v955
  %v957 = vpop.f32.mrf.mxu0
  %958 = vmatprep.mubr.bf16.mxu0 %v293
  %959 = vmatmul.mubr.bf16.gmra.mxu0 %v292
  %v960 = vpop.f32.mrf.mxu0
  %v961 = vadd.f32 %v897, %v960
  %v962 = vpop.f32.mrf.mxu0
  %v963 = vpop.f32.mrf.mxu0
  %v964 = vpop.f32.mrf.mxu0
  %965 = vdwg.mxu0
  %vm966 = vcmp.gt.f32.partialorder %v937, 0.0
  %vm967 = vcmp.gt.f32.partialorder %v940, 0.0
  %vm968 = vcmp.gt.f32.partialorder %v945, 0.0
  %vm969 = vcmp.gt.f32.partialorder %v948, 0.0
  %vm970 = vcmp.gt.f32.partialorder %v953, 0.0
  %vm971 = vcmp.gt.f32.partialorder %v956, 0.0
  %vm972 = vcmp.gt.f32.partialorder %v961, 0.0
  %v973 = vmin.f32 %v937, 0.0
  %v974 = vmin.f32 %v940, 0.0
  %v975 = vmin.f32 %v945, 0.0
  %v976 = vmin.f32 %v948, 0.0
  %v977 = vmin.f32 %v953, 0.0
  %v978 = vmin.f32 %v956, 0.0
  %v979 = vmin.f32 %v961, 0.0
  %v980 = vmul.f32 %v973, 1.442695
  %v981 = vpow.pop %v980
  %v982 = vmul.f32 %v974, 1.442695
  %v983 = vpow.pop %v982
  %v984 = vmul.f32 %v975, 1.442695
  %v985 = vpow.pop %v984
  %v986 = vmul.f32 %v976, 1.442695
  %v987 = vpow.pop %v986
  %v988 = vmul.f32 %v977, 1.442695
  %v989 = vpow.pop %v988
  %v990 = vmul.f32 %v978, 1.442695
  %v991 = vpow.pop %v990
  %v992 = vmul.f32 %v979, 1.442695
  %v993 = vpow.pop %v992
  %v994 = vsub.f32 %v981, 1.0
  %v995 = vsub.f32 %v983, 1.0
  %v996 = vsub.f32 %v985, 1.0
  %v997 = vsub.f32 %v987, 1.0
  %v998 = vsub.f32 %v989, 1.0
  %v999 = vsub.f32 %v991, 1.0
  %v1000 = vsub.f32 %v993, 1.0
  %v1001 = vsel %vm966, %v937, %v994
  %v1002 = vsel %vm967, %v940, %v995
  %v1003 = vsel %vm968, %v945, %v996
  %v1004 = vsel %vm969, %v948, %v997
  %v1005 = vsel %vm970, %v953, %v998
  %v1006 = vsel %vm971, %v956, %v999
  %v1007 = vsel %vm972, %v961, %v1000
  %v1008 = vpack.c.bf16 %v1002, %v1001
  %v1009 = vpack.c.bf16 %v1004, %v1003
  %v1010 = vpack.c.bf16 %v1006, %v1005
  %v1011 = vpack.c.bf16 %v1007, %v1007
  %v1016 = vunpack.c.l.b16 %v1008
  %v1017 = vunpack.c.h.b16 %v1008
  %v1018 = vunpack.c.l.b16 %v1009
  %v1019 = vunpack.c.h.b16 %v1009
  %v1020 = vunpack.c.l.b16 %v1010
  %v1021 = vunpack.c.h.b16 %v1010
  %v1022 = vunpack.c.l.b16 %v1011
  %v1023 = vpack.c.b16 %v1016, %v1016
  %v1024 = vpack.c.b16 %v1017, %v1017
  %v1025 = vpack.c.b16 %v1018, %v1018
  %v1026 = vpack.c.b16 %v1019, %v1019
  %v1027 = vpack.c.b16 %v1020, %v1020
  %v1028 = vpack.c.b16 %v1021, %v1021
  %v1029 = vpack.c.b16 %v1022, %v1022
  %1037 = vst [vmem:[%s3] sm:$0xf] %v1023
  %1038 = vst [vmem:[%s3 + $0x4] sm:$0xf] %v1024
  %1039 = vst [vmem:[%s3 + $0x8] sm:$0xf] %v1025
  %1040 = vst [vmem:[%s3 + $0xc] sm:$0xf] %v1026
  %1041 = vst [vmem:[%s3 + $0x10] sm:$0xf] %v1027
  %1042 = vst [vmem:[%s3 + $0x14] sm:$0xf] %v1028
  %1043 = vst [vmem:[%s3 + $0x18] sm:$0xf] %v1029
  // Predicated region
  $region14: #{nvidia_net_forward.8} parent=0 // pred_check
    _
  $region15: #{nvidia_net_forward.8} parent=0 // pred_check_branch
    %1045 = sbr.rel (0) target = $region17
  $region16: #{nvidia_net_forward.8} parent=0 // pred_region
    _
  $region17: #{nvidia_net_forward.8} parent=0 // pred_fallthru
    _
  // Predicated region
  $region18: #{nvidia_net_forward.8} parent=0 // pred_check
    _
  $region19: #{nvidia_net_forward.8} parent=0 // pred_check_branch
    %1047 = sbr.rel (0) target = $region21
  $region20: #{nvidia_net_forward.8} parent=0 // pred_region
    _
  $region21: #{nvidia_net_forward.8} parent=0 // pred_fallthru
    _

// kernel: nvidia_net_forward.9
$region0: #{nvidia_net_forward.9}
  #allocation0 [shape = 'u32[]', space=smem, size = 0x4, offset = 0x4, fixed_abs, tag = 'smem constant byte address 0x4 - core index']
  #allocation1 [shape = 'u32[144,128]{1,0:T(1,128)}', space=vmem, size = 0x12000, scoped, tag = 'internal scratch']
  %s0 = inlined_call_operand.vmem [shape: bf16[24,512], index: 0, kind: input, shape index: {}]
  %s1 = inlined_call_operand.vmem [shape: bf16[512,128], index: 1, kind: input, shape index: {}]
  %s2 = inlined_call_operand.vmem [shape: f32[1,128], index: 2, kind: input, shape index: {}]
  %s3 = inlined_call_operand.vmem [shape: bf16[24,128], index: 3, kind: output, shape index: {}]
  %s4 = sld [smem:[#allocation0]]
  $region22: #{nvidia_net_forward.9} parent=0
    _
  %s6 = ssub.s32 1, %s4
  %s7 = scalar_select 0, %s6, %s4
  // Predicated region
  $region2: #{nvidia_net_forward.9} parent=0 // pred_check
    _
  $region3: #{nvidia_net_forward.9} parent=0 // pred_check_branch
    %9 = sbr.rel (0) target = $region5
  $region4: #{nvidia_net_forward.9} parent=0 // pred_region
    _
  $region5: #{nvidia_net_forward.9} parent=0 // pred_fallthru
    _
  // Predicated region
  $region6: #{nvidia_net_forward.9} parent=0 // pred_check
    _
  $region7: #{nvidia_net_forward.9} parent=0 // pred_check_branch
    %11 = sbr.rel (0) target = $region9
  $region8: #{nvidia_net_forward.9} parent=0 // pred_region
    _
  $region9: #{nvidia_net_forward.9} parent=0 // pred_fallthru
    _
  // Predicated region
  $region10: #{nvidia_net_forward.9} parent=0 // pred_check
    _
  $region11: #{nvidia_net_forward.9} parent=0 // pred_check_branch
    %13 = sbr.rel (0) target = $region13
  $region12: #{nvidia_net_forward.9} parent=0 // pred_region
    _
  $region13: #{nvidia_net_forward.9} parent=0 // pred_fallthru
    _
  %v15 = vld [vmem:[%s0] sm:$0xff]
  %v16 = vld [vmem:[%s0 + $0x8] sm:$0xff]
  %v17 = vld [vmem:[%s0 + $0x10] sm:$0xff]
  %v18 = vld [vmem:[%s0 + $0x18] sm:$0xff]
  %v19 = vld [vmem:[%s0 + $0x20] sm:$0xff]
  %v20 = vld [vmem:[%s0 + $0x28] sm:$0xff]
  %v21 = vld [vmem:[%s1] sm:$0xf]
  %v22 = vld [vmem:[%s1 + $0x4] sm:$0xf]
  %v23 = vld [vmem:[%s1 + $0x8] sm:$0xf]
  %v24 = vld [vmem:[%s1 + $0xc] sm:$0xf]
  %v25 = vld [vmem:[%s1 + $0x10] sm:$0xf]
  %v26 = vld [vmem:[%s1 + $0x14] sm:$0xf]
  %v27 = vld [vmem:[%s1 + $0x18] sm:$0xf]
  %v28 = vld [vmem:[%s1 + $0x1c] sm:$0xf]
  %v29 = vld [vmem:[%s1 + $0x20] sm:$0xf]
  %v30 = vld [vmem:[%s1 + $0x24] sm:$0xf]
  %v31 = vld [vmem:[%s1 + $0x28] sm:$0xf]
  %v32 = vld [vmem:[%s1 + $0x2c] sm:$0xf]
  %v33 = vld [vmem:[%s1 + $0x30] sm:$0xf]
  %v34 = vld [vmem:[%s1 + $0x34] sm:$0xf]
  %v35 = vld [vmem:[%s1 + $0x38] sm:$0xf]
  %v36 = vld [vmem:[%s1 + $0x3c] sm:$0xf]
  %v37 = vld [vmem:[%s1 + $0x40] sm:$0xf]
  %v38 = vld [vmem:[%s1 + $0x44] sm:$0xf]
  %v39 = vld [vmem:[%s1 + $0x48] sm:$0xf]
  %v40 = vld [vmem:[%s1 + $0x4c] sm:$0xf]
  %v41 = vld [vmem:[%s1 + $0x50] sm:$0xf]
  %v42 = vld [vmem:[%s1 + $0x54] sm:$0xf]
  %v43 = vld [vmem:[%s1 + $0x58] sm:$0xf]
  %v44 = vld [vmem:[%s1 + $0x5c] sm:$0xf]
  %v45 = vld [vmem:[%s1 + $0x60] sm:$0xf]
  %v46 = vld [vmem:[%s1 + $0x64] sm:$0xf]
  %v47 = vld [vmem:[%s1 + $0x68] sm:$0xf]
  %v48 = vld [vmem:[%s1 + $0x6c] sm:$0xf]
  %v49 = vld [vmem:[%s1 + $0x70] sm:$0xf]
  %v50 = vld [vmem:[%s1 + $0x74] sm:$0xf]
  %v51 = vld [vmem:[%s1 + $0x78] sm:$0xf]
  %v52 = vld [vmem:[%s1 + $0x7c] sm:$0xf]
  %v53 = vld [vmem:[%s1 + $0x80] sm:$0xf]
  %v54 = vld [vmem:[%s1 + $0x84] sm:$0xf]
  %v55 = vld [vmem:[%s1 + $0x88] sm:$0xf]
  %v56 = vld [vmem:[%s1 + $0x8c] sm:$0xf]
  %v57 = vld [vmem:[%s1 + $0x90] sm:$0xf]
  %v58 = vld [vmem:[%s1 + $0x94] sm:$0xf]
  %v59 = vld [vmem:[%s1 + $0x98] sm:$0xf]
  %v60 = vld [vmem:[%s1 + $0x9c] sm:$0xf]
  %v61 = vld [vmem:[%s1 + $0xa0] sm:$0xf]
  %v62 = vld [vmem:[%s1 + $0xa4] sm:$0xf]
  %v63 = vld [vmem:[%s1 + $0xa8] sm:$0xf]
  %v64 = vld [vmem:[%s1 + $0xac] sm:$0xf]
  %v65 = vld [vmem:[%s1 + $0xb0] sm:$0xf]
  %v66 = vld [vmem:[%s1 + $0xb4] sm:$0xf]
  %v67 = vld [vmem:[%s1 + $0xb8] sm:$0xf]
  %v68 = vld [vmem:[%s1 + $0xbc] sm:$0xf]
  %v69 = vld [vmem:[%s1 + $0xc0] sm:$0xf]
  %v70 = vld [vmem:[%s1 + $0xc4] sm:$0xf]
  %v71 = vld [vmem:[%s1 + $0xc8] sm:$0xf]
  %v72 = vld [vmem:[%s1 + $0xcc] sm:$0xf]
  %v73 = vld [vmem:[%s1 + $0xd0] sm:$0xf]
  %v74 = vld [vmem:[%s1 + $0xd4] sm:$0xf]
  %v75 = vld [vmem:[%s1 + $0xd8] sm:$0xf]
  %v76 = vld [vmem:[%s1 + $0xdc] sm:$0xf]
  %v77 = vld [vmem:[%s1 + $0xe0] sm:$0xf]
  %v78 = vld [vmem:[%s1 + $0xe4] sm:$0xf]
  %v79 = vld [vmem:[%s1 + $0xe8] sm:$0xf]
  %v80 = vld [vmem:[%s1 + $0xec] sm:$0xf]
  %v81 = vld [vmem:[%s1 + $0xf0] sm:$0xf]
  %v82 = vld [vmem:[%s1 + $0xf4] sm:$0xf]
  %v83 = vld [vmem:[%s1 + $0xf8] sm:$0xf]
  %v84 = vld [vmem:[%s1 + $0xfc] sm:$0xf]
  %v85 = vld [vmem:[%s2] sm:$0x1]
  %v87 = vlaneseq
  %v88 = vshrl.u32 %v87, 7
  %v89 = vsub.s32 0, %v88
  %v90 = vrot.slane %v85, %v89
  %v98 = vunpack.c.l.b16 %v15
  %v99 = vunpack.c.h.b16 %v15
  %v100 = vunpack.c.l.b16 %v16
  %v101 = vunpack.c.h.b16 %v16
  %v102 = vunpack.c.l.b16 %v17
  %v103 = vunpack.c.h.b16 %v17
  %v104 = vunpack.c.l.b16 %v18
  %v105 = vunpack.c.h.b16 %v18
  %v106 = vunpack.c.l.b16 %v19
  %v107 = vunpack.c.h.b16 %v19
  %v108 = vunpack.c.l.b16 %v20
  %v109 = vunpack.c.h.b16 %v20
  %v110 = vpack.c.b16 %v102, %v98
  %v111 = vpack.c.b16 %v103, %v99
  %v112 = vpack.c.b16 %v104, %v100
  %v113 = vpack.c.b16 %v105, %v101
  %v114 = vpack.c.b16 %v106, %v106
  %v115 = vpack.c.b16 %v107, %v107
  %v116 = vpack.c.b16 %v108, %v108
  %v117 = vpack.c.b16 %v109, %v109
  %v190 = vunpack.c.l.b16 %v21
  %v191 = vunpack.c.l.b16 %v22
  %v192 = vunpack.c.l.b16 %v23
  %v193 = vunpack.c.l.b16 %v24
  %v194 = vunpack.c.l.b16 %v25
  %v195 = vunpack.c.l.b16 %v26
  %v196 = vunpack.c.l.b16 %v27
  %v197 = vunpack.c.l.b16 %v28
  %v198 = vunpack.c.l.b16 %v29
  %v199 = vunpack.c.l.b16 %v30
  %v200 = vunpack.c.l.b16 %v31
  %v201 = vunpack.c.l.b16 %v32
  %v202 = vunpack.c.l.b16 %v33
  %v203 = vunpack.c.l.b16 %v34
  %v204 = vunpack.c.l.b16 %v35
  %v205 = vunpack.c.l.b16 %v36
  %v206 = vunpack.c.l.b16 %v37
  %v207 = vunpack.c.l.b16 %v38
  %v208 = vunpack.c.l.b16 %v39
  %v209 = vunpack.c.l.b16 %v40
  %v210 = vunpack.c.l.b16 %v41
  %v211 = vunpack.c.l.b16 %v42
  %v212 = vunpack.c.l.b16 %v43
  %v213 = vunpack.c.l.b16 %v44
  %v214 = vunpack.c.l.b16 %v45
  %v215 = vunpack.c.l.b16 %v46
  %v216 = vunpack.c.l.b16 %v47
  %v217 = vunpack.c.l.b16 %v48
  %v218 = vunpack.c.l.b16 %v49
  %v219 = vunpack.c.l.b16 %v50
  %v220 = vunpack.c.l.b16 %v51
  %v221 = vunpack.c.l.b16 %v52
  %v222 = vunpack.c.l.b16 %v53
  %v223 = vunpack.c.l.b16 %v54
  %v224 = vunpack.c.l.b16 %v55
  %v225 = vunpack.c.l.b16 %v56
  %v226 = vunpack.c.l.b16 %v57
  %v227 = vunpack.c.l.b16 %v58
  %v228 = vunpack.c.l.b16 %v59
  %v229 = vunpack.c.l.b16 %v60
  %v230 = vunpack.c.l.b16 %v61
  %v231 = vunpack.c.l.b16 %v62
  %v232 = vunpack.c.l.b16 %v63
  %v233 = vunpack.c.l.b16 %v64
  %v234 = vunpack.c.l.b16 %v65
  %v235 = vunpack.c.l.b16 %v66
  %v236 = vunpack.c.l.b16 %v67
  %v237 = vunpack.c.l.b16 %v68
  %v238 = vunpack.c.l.b16 %v69
  %v239 = vunpack.c.l.b16 %v70
  %v240 = vunpack.c.l.b16 %v71
  %v241 = vunpack.c.l.b16 %v72
  %v242 = vunpack.c.l.b16 %v73
  %v243 = vunpack.c.l.b16 %v74
  %v244 = vunpack.c.l.b16 %v75
  %v245 = vunpack.c.l.b16 %v76
  %v246 = vunpack.c.l.b16 %v77
  %v247 = vunpack.c.l.b16 %v78
  %v248 = vunpack.c.l.b16 %v79
  %v249 = vunpack.c.l.b16 %v80
  %v250 = vunpack.c.l.b16 %v81
  %v251 = vunpack.c.l.b16 %v82
  %v252 = vunpack.c.l.b16 %v83
  %v253 = vunpack.c.l.b16 %v84
  %v254 = vpack.c.b16 %v191, %v190
  %v255 = vpack.c.b16 %v193, %v192
  %v256 = vpack.c.b16 %v195, %v194
  %v257 = vpack.c.b16 %v197, %v196
  %v258 = vpack.c.b16 %v199, %v198
  %v259 = vpack.c.b16 %v201, %v200
  %v260 = vpack.c.b16 %v203, %v202
  %v261 = vpack.c.b16 %v205, %v204
  %v262 = vpack.c.b16 %v207, %v206
  %v263 = vpack.c.b16 %v209, %v208
  %v264 = vpack.c.b16 %v211, %v210
  %v265 = vpack.c.b16 %v213, %v212
  %v266 = vpack.c.b16 %v215, %v214
  %v267 = vpack.c.b16 %v217, %v216
  %v268 = vpack.c.b16 %v219, %v218
  %v269 = vpack.c.b16 %v221, %v220
  %v270 = vpack.c.b16 %v223, %v222
  %v271 = vpack.c.b16 %v225, %v224
  %v272 = vpack.c.b16 %v227, %v226
  %v273 = vpack.c.b16 %v229, %v228
  %v274 = vpack.c.b16 %v231, %v230
  %v275 = vpack.c.b16 %v233, %v232
  %v276 = vpack.c.b16 %v235, %v234
  %v277 = vpack.c.b16 %v237, %v236
  %v278 = vpack.c.b16 %v239, %v238
  %v279 = vpack.c.b16 %v241, %v240
  %v280 = vpack.c.b16 %v243, %v242
  %v281 = vpack.c.b16 %v245, %v244
  %v282 = vpack.c.b16 %v247, %v246
  %v283 = vpack.c.b16 %v249, %v248
  %v284 = vpack.c.b16 %v251, %v250
  %v285 = vpack.c.b16 %v253, %v252
  %318 = vmatprep.subr.bf16.mxu0 0
  %319 = vmatpush1.bf16.msra.mxu0 %v261
  %320 = vmatprep.subr.bf16.mxu0 0
  %321 = vmatpush1.bf16.msra.mxu0 %v260
  %322 = vmatprep.subr.bf16.mxu0 0
  %323 = vmatpush1.bf16.msra.mxu0 %v259
  %324 = vmatprep.subr.bf16.mxu0 0
  %325 = vmatpush1.bf16.msra.mxu0 %v258
  %326 = vmatprep.subr.bf16.mxu0 0
  %327 = vmatpush1.bf16.msra.mxu0 %v257
  %328 = vmatprep.subr.bf16.mxu0 0
  %329 = vmatpush1.bf16.msra.mxu0 %v256
  %330 = vmatprep.subr.bf16.mxu0 0
  %331 = vmatpush1.bf16.msra.mxu0 %v255
  %332 = vmatprep.subr.bf16.mxu0 0
  %333 = vmatpush1.bf16.msra.mxu0 %v254
  %334 = vmatprep.subr.bf16.mxu0 0
  %335 = vmatpush2.bf16.msra.mxu0 %v269
  %336 = vmatprep.subr.bf16.mxu0 0
  %337 = vmatpush2.bf16.msra.mxu0 %v268
  %338 = vmatprep.subr.bf16.mxu0 0
  %339 = vmatpush2.bf16.msra.mxu0 %v267
  %340 = vmatprep.subr.bf16.mxu0 0
  %341 = vmatpush2.bf16.msra.mxu0 %v266
  %342 = vmatprep.subr.bf16.mxu0 0
  %343 = vmatpush2.bf16.msra.mxu0 %v265
  %344 = vmatprep.subr.bf16.mxu0 0
  %345 = vmatpush2.bf16.msra.mxu0 %v264
  %346 = vmatprep.subr.bf16.mxu0 0
  %347 = vmatpush2.bf16.msra.mxu0 %v263
  %348 = vmatprep.subr.bf16.mxu0 0
  %349 = vmatpush2.bf16.msra.mxu0 %v262
  %350 = vmatprep.mubr.bf16.mxu0 %v111
  %351 = vmatmul.mubr.bf16.gmra.mxu0 %v110
  %v352 = vpop.f32.mrf.mxu0
  %v353 = vadd.f32 %v90, %v352
  %v354 = vpop.f32.mrf.mxu0
  %v355 = vpop.f32.mrf.mxu0
  %v356 = vadd.f32 %v90, %v355
  %v357 = vpop.f32.mrf.mxu0
  %358 = vmatprep.mubr.bf16.mxu0 %v115
  %359 = vmatmul.mubr.bf16.gmra.mxu0 %v114
  %v360 = vpop.f32.mrf.mxu0
  %v361 = vadd.f32 %v90, %v360
  %v362 = vpop.f32.mrf.mxu0
  %v363 = vpop.f32.mrf.mxu0
  %v364 = vpop.f32.mrf.mxu0
  %365 = vdwg.mxu0
  %366 = vmatprep.subr.bf16.mxu0 0
  %367 = vmatpush1.bf16.msra.mxu0 %v277
  %368 = vmatprep.subr.bf16.mxu0 0
  %369 = vmatpush1.bf16.msra.mxu0 %v276
  %370 = vmatprep.subr.bf16.mxu0 0
  %371 = vmatpush1.bf16.msra.mxu0 %v275
  %372 = vmatprep.subr.bf16.mxu0 0
  %373 = vmatpush1.bf16.msra.mxu0 %v274
  %374 = vmatprep.subr.bf16.mxu0 0
  %375 = vmatpush1.bf16.msra.mxu0 %v273
  %376 = vmatprep.subr.bf16.mxu0 0
  %377 = vmatpush1.bf16.msra.mxu0 %v272
  %378 = vmatprep.subr.bf16.mxu0 0
  %379 = vmatpush1.bf16.msra.mxu0 %v271
  %380 = vmatprep.subr.bf16.mxu0 0
  %381 = vmatpush1.bf16.msra.mxu0 %v270
  %382 = vmatprep.subr.bf16.mxu0 0
  %383 = vmatpush2.bf16.msra.mxu0 %v285
  %384 = vmatprep.subr.bf16.mxu0 0
  %385 = vmatpush2.bf16.msra.mxu0 %v284
  %386 = vmatprep.subr.bf16.mxu0 0
  %387 = vmatpush2.bf16.msra.mxu0 %v283
  %388 = vmatprep.subr.bf16.mxu0 0
  %389 = vmatpush2.bf16.msra.mxu0 %v282
  %390 = vmatprep.subr.bf16.mxu0 0
  %391 = vmatpush2.bf16.msra.mxu0 %v281
  %392 = vmatprep.subr.bf16.mxu0 0
  %393 = vmatpush2.bf16.msra.mxu0 %v280
  %394 = vmatprep.subr.bf16.mxu0 0
  %395 = vmatpush2.bf16.msra.mxu0 %v279
  %396 = vmatprep.subr.bf16.mxu0 0
  %397 = vmatpush2.bf16.msra.mxu0 %v278
  %398 = vmatprep.mubr.bf16.mxu0 %v113
  %399 = vmatmul.mubr.bf16.gmra.mxu0 %v112
  %v400 = vpop.f32.mrf.mxu0
  %v401 = vadd.f32 %v353, %v400
  %v402 = vpop.f32.mrf.mxu0
  %v403 = vpop.f32.mrf.mxu0
  %v404 = vadd.f32 %v356, %v403
  %v405 = vpop.f32.mrf.mxu0
  %406 = vmatprep.mubr.bf16.mxu0 %v117
  %407 = vmatmul.mubr.bf16.gmra.mxu0 %v116
  %v408 = vpop.f32.mrf.mxu0
  %v409 = vadd.f32 %v361, %v408
  %v410 = vpop.f32.mrf.mxu0
  %v411 = vpop.f32.mrf.mxu0
  %v412 = vpop.f32.mrf.mxu0
  %413 = vdwg.mxu0
  %vm414 = vcmp.gt.f32.partialorder %v401, 0.0
  %vm415 = vcmp.gt.f32.partialorder %v404, 0.0
  %vm416 = vcmp.gt.f32.partialorder %v409, 0.0
  %v417 = vmin.f32 %v401, 0.0
  %v418 = vmin.f32 %v404, 0.0
  %v419 = vmin.f32 %v409, 0.0
  %v420 = vmul.f32 %v417, 1.442695
  %v421 = vpow.pop %v420
  %v422 = vmul.f32 %v418, 1.442695
  %v423 = vpow.pop %v422
  %v424 = vmul.f32 %v419, 1.442695
  %v425 = vpow.pop %v424
  %v426 = vsub.f32 %v421, 1.0
  %v427 = vsub.f32 %v423, 1.0
  %v428 = vsub.f32 %v425, 1.0
  %v429 = vsel %vm414, %v401, %v426
  %v430 = vsel %vm415, %v404, %v427
  %v431 = vsel %vm416, %v409, %v428
  %v432 = vpack.c.bf16 %v430, %v429
  %v433 = vpack.c.bf16 %v431, %v431
  %v436 = vunpack.c.l.b16 %v432
  %v437 = vunpack.c.h.b16 %v432
  %v438 = vunpack.c.l.b16 %v433
  %v439 = vpack.c.b16 %v436, %v436
  %v440 = vpack.c.b16 %v437, %v437
  %v441 = vpack.c.b16 %v438, %v438
  %445 = vst [vmem:[%s3] sm:$0xf] %v439
  %446 = vst [vmem:[%s3 + $0x4] sm:$0xf] %v440
  %447 = vst [vmem:[%s3 + $0x8] sm:$0xf] %v441
  // Predicated region
  $region14: #{nvidia_net_forward.9} parent=0 // pred_check
    _
  $region15: #{nvidia_net_forward.9} parent=0 // pred_check_branch
    %449 = sbr.rel (0) target = $region17
  $region16: #{nvidia_net_forward.9} parent=0 // pred_region
    _
  $region17: #{nvidia_net_forward.9} parent=0 // pred_fallthru
    _
  // Predicated region
  $region18: #{nvidia_net_forward.9} parent=0 // pred_check
    _
  $region19: #{nvidia_net_forward.9} parent=0 // pred_check_branch
    %451 = sbr.rel (0) target = $region21
  $region20: #{nvidia_net_forward.9} parent=0 // pred_region
    _
  $region21: #{nvidia_net_forward.9} parent=0 // pred_fallthru
    _

// kernel: nvidia_net_forward.10
$region0: #{nvidia_net_forward.10}
  #allocation0 [shape = 'u32[]', space=smem, size = 0x4, offset = 0x4, fixed_abs, tag = 'smem constant byte address 0x4 - core index']
  #allocation1 [shape = 'u32[144,128]{1,0:T(1,128)}', space=vmem, size = 0x12000, scoped, tag = 'internal scratch']
  %s0 = inlined_call_operand.vmem [shape: bf16[8,640], index: 0, kind: input, shape index: {}]
  %s1 = inlined_call_operand.vmem [shape: bf16[640,128], index: 1, kind: input, shape index: {}]
  %s2 = inlined_call_operand.vmem [shape: f32[1,128], index: 2, kind: input, shape index: {}]
  %s3 = inlined_call_operand.vmem [shape: bf16[8,128], index: 3, kind: output, shape index: {}]
  %s4 = sld [smem:[#allocation0]]
  $region22: #{nvidia_net_forward.10} parent=0
    _
  %s6 = ssub.s32 1, %s4
  %s7 = scalar_select 0, %s6, %s4
  // Predicated region
  $region2: #{nvidia_net_forward.10} parent=0 // pred_check
    _
  $region3: #{nvidia_net_forward.10} parent=0 // pred_check_branch
    %9 = sbr.rel (0) target = $region5
  $region4: #{nvidia_net_forward.10} parent=0 // pred_region
    _
  $region5: #{nvidia_net_forward.10} parent=0 // pred_fallthru
    _
  // Predicated region
  $region6: #{nvidia_net_forward.10} parent=0 // pred_check
    _
  $region7: #{nvidia_net_forward.10} parent=0 // pred_check_branch
    %11 = sbr.rel (0) target = $region9
  $region8: #{nvidia_net_forward.10} parent=0 // pred_region
    _
  $region9: #{nvidia_net_forward.10} parent=0 // pred_fallthru
    _
  // Predicated region
  $region10: #{nvidia_net_forward.10} parent=0 // pred_check
    _
  $region11: #{nvidia_net_forward.10} parent=0 // pred_check_branch
    %13 = sbr.rel (0) target = $region13
  $region12: #{nvidia_net_forward.10} parent=0 // pred_region
    _
  $region13: #{nvidia_net_forward.10} parent=0 // pred_fallthru
    _
  %v15 = vld [vmem:[%s0] sm:$0xff]
  %v16 = vld [vmem:[%s0 + $0x8] sm:$0xff]
  %v17 = vld [vmem:[%s0 + $0x10] sm:$0xf]
  %v18 = vld [vmem:[%s1] sm:$0xf]
  %v19 = vld [vmem:[%s1 + $0x4] sm:$0xf]
  %v20 = vld [vmem:[%s1 + $0x8] sm:$0xf]
  %v21 = vld [vmem:[%s1 + $0xc] sm:$0xf]
  %v22 = vld [vmem:[%s1 + $0x10] sm:$0xf]
  %v23 = vld [vmem:[%s1 + $0x14] sm:$0xf]
  %v24 = vld [vmem:[%s1 + $0x18] sm:$0xf]
  %v25 = vld [vmem:[%s1 + $0x1c] sm:$0xf]
  %v26 = vld [vmem:[%s1 + $0x20] sm:$0xf]
  %v27 = vld [vmem:[%s1 + $0x24] sm:$0xf]
  %v28 = vld [vmem:[%s1 + $0x28] sm:$0xf]
  %v29 = vld [vmem:[%s1 + $0x2c] sm:$0xf]
  %v30 = vld [vmem:[%s1 + $0x30] sm:$0xf]
  %v31 = vld [vmem:[%s1 + $0x34] sm:$0xf]
  %v32 = vld [vmem:[%s1 + $0x38] sm:$0xf]
  %v33 = vld [vmem:[%s1 + $0x3c] sm:$0xf]
  %v34 = vld [vmem:[%s1 + $0x40] sm:$0xf]
  %v35 = vld [vmem:[%s1 + $0x44] sm:$0xf]
  %v36 = vld [vmem:[%s1 + $0x48] sm:$0xf]
  %v37 = vld [vmem:[%s1 + $0x4c] sm:$0xf]
  %v38 = vld [vmem:[%s1 + $0x50] sm:$0xf]
  %v39 = vld [vmem:[%s1 + $0x54] sm:$0xf]
  %v40 = vld [vmem:[%s1 + $0x58] sm:$0xf]
  %v41 = vld [vmem:[%s1 + $0x5c] sm:$0xf]
  %v42 = vld [vmem:[%s1 + $0x60] sm:$0xf]
  %v43 = vld [vmem:[%s1 + $0x64] sm:$0xf]
  %v44 = vld [vmem:[%s1 + $0x68] sm:$0xf]
  %v45 = vld [vmem:[%s1 + $0x6c] sm:$0xf]
  %v46 = vld [vmem:[%s1 + $0x70] sm:$0xf]
  %v47 = vld [vmem:[%s1 + $0x74] sm:$0xf]
  %v48 = vld [vmem:[%s1 + $0x78] sm:$0xf]
  %v49 = vld [vmem:[%s1 + $0x7c] sm:$0xf]
  %v50 = vld [vmem:[%s1 + $0x80] sm:$0xf]
  %v51 = vld [vmem:[%s1 + $0x84] sm:$0xf]
  %v52 = vld [vmem:[%s1 + $0x88] sm:$0xf]
  %v53 = vld [vmem:[%s1 + $0x8c] sm:$0xf]
  %v54 = vld [vmem:[%s1 + $0x90] sm:$0xf]
  %v55 = vld [vmem:[%s1 + $0x94] sm:$0xf]
  %v56 = vld [vmem:[%s1 + $0x98] sm:$0xf]
  %v57 = vld [vmem:[%s1 + $0x9c] sm:$0xf]
  %v58 = vld [vmem:[%s1 + $0xa0] sm:$0xf]
  %v59 = vld [vmem:[%s1 + $0xa4] sm:$0xf]
  %v60 = vld [vmem:[%s1 + $0xa8] sm:$0xf]
  %v61 = vld [vmem:[%s1 + $0xac] sm:$0xf]
  %v62 = vld [vmem:[%s1 + $0xb0] sm:$0xf]
  %v63 = vld [vmem:[%s1 + $0xb4] sm:$0xf]
  %v64 = vld [vmem:[%s1 + $0xb8] sm:$0xf]
  %v65 = vld [vmem:[%s1 + $0xbc] sm:$0xf]
  %v66 = vld [vmem:[%s1 + $0xc0] sm:$0xf]
  %v67 = vld [vmem:[%s1 + $0xc4] sm:$0xf]
  %v68 = vld [vmem:[%s1 + $0xc8] sm:$0xf]
  %v69 = vld [vmem:[%s1 + $0xcc] sm:$0xf]
  %v70 = vld [vmem:[%s1 + $0xd0] sm:$0xf]
  %v71 = vld [vmem:[%s1 + $0xd4] sm:$0xf]
  %v72 = vld [vmem:[%s1 + $0xd8] sm:$0xf]
  %v73 = vld [vmem:[%s1 + $0xdc] sm:$0xf]
  %v74 = vld [vmem:[%s1 + $0xe0] sm:$0xf]
  %v75 = vld [vmem:[%s1 + $0xe4] sm:$0xf]
  %v76 = vld [vmem:[%s1 + $0xe8] sm:$0xf]
  %v77 = vld [vmem:[%s1 + $0xec] sm:$0xf]
  %v78 = vld [vmem:[%s1 + $0xf0] sm:$0xf]
  %v79 = vld [vmem:[%s1 + $0xf4] sm:$0xf]
  %v80 = vld [vmem:[%s1 + $0xf8] sm:$0xf]
  %v81 = vld [vmem:[%s1 + $0xfc] sm:$0xf]
  %v82 = vld [vmem:[%s1 + $0x100] sm:$0xf]
  %v83 = vld [vmem:[%s1 + $0x104] sm:$0xf]
  %v84 = vld [vmem:[%s1 + $0x108] sm:$0xf]
  %v85 = vld [vmem:[%s1 + $0x10c] sm:$0xf]
  %v86 = vld [vmem:[%s1 + $0x110] sm:$0xf]
  %v87 = vld [vmem:[%s1 + $0x114] sm:$0xf]
  %v88 = vld [vmem:[%s1 + $0x118] sm:$0xf]
  %v89 = vld [vmem:[%s1 + $0x11c] sm:$0xf]
  %v90 = vld [vmem:[%s1 + $0x120] sm:$0xf]
  %v91 = vld [vmem:[%s1 + $0x124] sm:$0xf]
  %v92 = vld [vmem:[%s1 + $0x128] sm:$0xf]
  %v93 = vld [vmem:[%s1 + $0x12c] sm:$0xf]
  %v94 = vld [vmem:[%s1 + $0x130] sm:$0xf]
  %v95 = vld [vmem:[%s1 + $0x134] sm:$0xf]
  %v96 = vld [vmem:[%s1 + $0x138] sm:$0xf]
  %v97 = vld [vmem:[%s1 + $0x13c] sm:$0xf]
  %v98 = vld [vmem:[%s2] sm:$0x1]
  %v100 = vlaneseq
  %v101 = vshrl.u32 %v100, 7
  %v102 = vsub.s32 0, %v101
  %v103 = vrot.slane %v98, %v102
  %v108 = vunpack.c.l.b16 %v15
  %v109 = vunpack.c.h.b16 %v15
  %v110 = vunpack.c.l.b16 %v16
  %v111 = vunpack.c.h.b16 %v16
  %v112 = vunpack.c.l.b16 %v17
  %v113 = vpack.c.b16 %v108, %v108
  %v114 = vpack.c.b16 %v109, %v109
  %v115 = vpack.c.b16 %v110, %v110
  %v116 = vpack.c.b16 %v111, %v111
  %v117 = vpack.c.b16 %v112, %v112
  %v203 = vunpack.c.l.b16 %v18
  %v204 = vunpack.c.l.b16 %v19
  %v205 = vunpack.c.l.b16 %v20
  %v206 = vunpack.c.l.b16 %v21
  %v207 = vunpack.c.l.b16 %v22
  %v208 = vunpack.c.l.b16 %v23
  %v209 = vunpack.c.l.b16 %v24
  %v210 = vunpack.c.l.b16 %v25
  %v211 = vunpack.c.l.b16 %v26
  %v212 = vunpack.c.l.b16 %v27
  %v213 = vunpack.c.l.b16 %v28
  %v214 = vunpack.c.l.b16 %v29
  %v215 = vunpack.c.l.b16 %v30
  %v216 = vunpack.c.l.b16 %v31
  %v217 = vunpack.c.l.b16 %v32
  %v218 = vunpack.c.l.b16 %v33
  %v219 = vunpack.c.l.b16 %v34
  %v220 = vunpack.c.l.b16 %v35
  %v221 = vunpack.c.l.b16 %v36
  %v222 = vunpack.c.l.b16 %v37
  %v223 = vunpack.c.l.b16 %v38
  %v224 = vunpack.c.l.b16 %v39
  %v225 = vunpack.c.l.b16 %v40
  %v226 = vunpack.c.l.b16 %v41
  %v227 = vunpack.c.l.b16 %v42
  %v228 = vunpack.c.l.b16 %v43
  %v229 = vunpack.c.l.b16 %v44
  %v230 = vunpack.c.l.b16 %v45
  %v231 = vunpack.c.l.b16 %v46
  %v232 = vunpack.c.l.b16 %v47
  %v233 = vunpack.c.l.b16 %v48
  %v234 = vunpack.c.l.b16 %v49
  %v235 = vunpack.c.l.b16 %v50
  %v236 = vunpack.c.l.b16 %v51
  %v237 = vunpack.c.l.b16 %v52
  %v238 = vunpack.c.l.b16 %v53
  %v239 = vunpack.c.l.b16 %v54
  %v240 = vunpack.c.l.b16 %v55
  %v241 = vunpack.c.l.b16 %v56
  %v242 = vunpack.c.l.b16 %v57
  %v243 = vunpack.c.l.b16 %v58
  %v244 = vunpack.c.l.b16 %v59
  %v245 = vunpack.c.l.b16 %v60
  %v246 = vunpack.c.l.b16 %v61
  %v247 = vunpack.c.l.b16 %v62
  %v248 = vunpack.c.l.b16 %v63
  %v249 = vunpack.c.l.b16 %v64
  %v250 = vunpack.c.l.b16 %v65
  %v251 = vunpack.c.l.b16 %v66
  %v252 = vunpack.c.l.b16 %v67
  %v253 = vunpack.c.l.b16 %v68
  %v254 = vunpack.c.l.b16 %v69
  %v255 = vunpack.c.l.b16 %v70
  %v256 = vunpack.c.l.b16 %v71
  %v257 = vunpack.c.l.b16 %v72
  %v258 = vunpack.c.l.b16 %v73
  %v259 = vunpack.c.l.b16 %v74
  %v260 = vunpack.c.l.b16 %v75
  %v261 = vunpack.c.l.b16 %v76
  %v262 = vunpack.c.l.b16 %v77
  %v263 = vunpack.c.l.b16 %v78
  %v264 = vunpack.c.l.b16 %v79
  %v265 = vunpack.c.l.b16 %v80
  %v266 = vunpack.c.l.b16 %v81
  %v267 = vunpack.c.l.b16 %v82
  %v268 = vunpack.c.l.b16 %v83
  %v269 = vunpack.c.l.b16 %v84
  %v270 = vunpack.c.l.b16 %v85
  %v271 = vunpack.c.l.b16 %v86
  %v272 = vunpack.c.l.b16 %v87
  %v273 = vunpack.c.l.b16 %v88
  %v274 = vunpack.c.l.b16 %v89
  %v275 = vunpack.c.l.b16 %v90
  %v276 = vunpack.c.l.b16 %v91
  %v277 = vunpack.c.l.b16 %v92
  %v278 = vunpack.c.l.b16 %v93
  %v279 = vunpack.c.l.b16 %v94
  %v280 = vunpack.c.l.b16 %v95
  %v281 = vunpack.c.l.b16 %v96
  %v282 = vunpack.c.l.b16 %v97
  %v283 = vpack.c.b16 %v204, %v203
  %v284 = vpack.c.b16 %v206, %v205
  %v285 = vpack.c.b16 %v208, %v207
  %v286 = vpack.c.b16 %v210, %v209
  %v287 = vpack.c.b16 %v212, %v211
  %v288 = vpack.c.b16 %v214, %v213
  %v289 = vpack.c.b16 %v216, %v215
  %v290 = vpack.c.b16 %v218, %v217
  %v291 = vpack.c.b16 %v220, %v219
  %v292 = vpack.c.b16 %v222, %v221
  %v293 = vpack.c.b16 %v224, %v223
  %v294 = vpack.c.b16 %v226, %v225
  %v295 = vpack.c.b16 %v228, %v227
  %v296 = vpack.c.b16 %v230, %v229
  %v297 = vpack.c.b16 %v232, %v231
  %v298 = vpack.c.b16 %v234, %v233
  %v299 = vpack.c.b16 %v236, %v235
  %v300 = vpack.c.b16 %v238, %v237
  %v301 = vpack.c.b16 %v240, %v239
  %v302 = vpack.c.b16 %v242, %v241
  %v303 = vpack.c.b16 %v244, %v243
  %v304 = vpack.c.b16 %v246, %v245
  %v305 = vpack.c.b16 %v248, %v247
  %v306 = vpack.c.b16 %v250, %v249
  %v307 = vpack.c.b16 %v252, %v251
  %v308 = vpack.c.b16 %v254, %v253
  %v309 = vpack.c.b16 %v256, %v255
  %v310 = vpack.c.b16 %v258, %v257
  %v311 = vpack.c.b16 %v260, %v259
  %v312 = vpack.c.b16 %v262, %v261
  %v313 = vpack.c.b16 %v264, %v263
  %v314 = vpack.c.b16 %v266, %v265
  %v315 = vpack.c.b16 %v268, %v267
  %v316 = vpack.c.b16 %v270, %v269
  %v317 = vpack.c.b16 %v272, %v271
  %v318 = vpack.c.b16 %v274, %v273
  %v319 = vpack.c.b16 %v276, %v275
  %v320 = vpack.c.b16 %v278, %v277
  %v321 = vpack.c.b16 %v280, %v279
  %v322 = vpack.c.b16 %v282, %v281
  %363 = vmatprep.subr.bf16.mxu0 0
  %364 = vmatpush1.bf16.msra.mxu0 %v290
  %365 = vmatprep.subr.bf16.mxu0 0
  %366 = vmatpush1.bf16.msra.mxu0 %v289
  %367 = vmatprep.subr.bf16.mxu0 0
  %368 = vmatpush1.bf16.msra.mxu0 %v288
  %369 = vmatprep.subr.bf16.mxu0 0
  %370 = vmatpush1.bf16.msra.mxu0 %v287
  %371 = vmatprep.subr.bf16.mxu0 0
  %372 = vmatpush1.bf16.msra.mxu0 %v286
  %373 = vmatprep.subr.bf16.mxu0 0
  %374 = vmatpush1.bf16.msra.mxu0 %v285
  %375 = vmatprep.subr.bf16.mxu0 0
  %376 = vmatpush1.bf16.msra.mxu0 %v284
  %377 = vmatprep.subr.bf16.mxu0 0
  %378 = vmatpush1.bf16.msra.mxu0 %v283
  %379 = vmatprep.subr.bf16.mxu0 0
  %380 = vmatpush2.bf16.msra.mxu0 %v298
  %381 = vmatprep.subr.bf16.mxu0 0
  %382 = vmatpush2.bf16.msra.mxu0 %v297
  %383 = vmatprep.subr.bf16.mxu0 0
  %384 = vmatpush2.bf16.msra.mxu0 %v296
  %385 = vmatprep.subr.bf16.mxu0 0
  %386 = vmatpush2.bf16.msra.mxu0 %v295
  %387 = vmatprep.subr.bf16.mxu0 0
  %388 = vmatpush2.bf16.msra.mxu0 %v294
  %389 = vmatprep.subr.bf16.mxu0 0
  %390 = vmatpush2.bf16.msra.mxu0 %v293
  %391 = vmatprep.subr.bf16.mxu0 0
  %392 = vmatpush2.bf16.msra.mxu0 %v292
  %393 = vmatprep.subr.bf16.mxu0 0
  %394 = vmatpush2.bf16.msra.mxu0 %v291
  %395 = vmatprep.mubr.bf16.mxu0 %v114
  %396 = vmatmul.mubr.bf16.gmra.mxu0 %v113
  %v397 = vpop.f32.mrf.mxu0
  %v398 = vadd.f32 %v103, %v397
  %v399 = vpop.f32.mrf.mxu0
  %v400 = vpop.f32.mrf.mxu0
  %v401 = vpop.f32.mrf.mxu0
  %402 = vdwg.mxu0
  %403 = vmatprep.subr.bf16.mxu0 0
  %404 = vmatpush1.bf16.msra.mxu0 %v306
  %405 = vmatprep.subr.bf16.mxu0 0
  %406 = vmatpush1.bf16.msra.mxu0 %v305
  %407 = vmatprep.subr.bf16.mxu0 0
  %408 = vmatpush1.bf16.msra.mxu0 %v304
  %409 = vmatprep.subr.bf16.mxu0 0
  %410 = vmatpush1.bf16.msra.mxu0 %v303
  %411 = vmatprep.subr.bf16.mxu0 0
  %412 = vmatpush1.bf16.msra.mxu0 %v302
  %413 = vmatprep.subr.bf16.mxu0 0
  %414 = vmatpush1.bf16.msra.mxu0 %v301
  %415 = vmatprep.subr.bf16.mxu0 0
  %416 = vmatpush1.bf16.msra.mxu0 %v300
  %417 = vmatprep.subr.bf16.mxu0 0
  %418 = vmatpush1.bf16.msra.mxu0 %v299
  %419 = vmatprep.subr.bf16.mxu0 0
  %420 = vmatpush2.bf16.msra.mxu0 %v314
  %421 = vmatprep.subr.bf16.mxu0 0
  %422 = vmatpush2.bf16.msra.mxu0 %v313
  %423 = vmatprep.subr.bf16.mxu0 0
  %424 = vmatpush2.bf16.msra.mxu0 %v312
  %425 = vmatprep.subr.bf16.mxu0 0
  %426 = vmatpush2.bf16.msra.mxu0 %v311
  %427 = vmatprep.subr.bf16.mxu0 0
  %428 = vmatpush2.bf16.msra.mxu0 %v310
  %429 = vmatprep.subr.bf16.mxu0 0
  %430 = vmatpush2.bf16.msra.mxu0 %v309
  %431 = vmatprep.subr.bf16.mxu0 0
  %432 = vmatpush2.bf16.msra.mxu0 %v308
  %433 = vmatprep.subr.bf16.mxu0 0
  %434 = vmatpush2.bf16.msra.mxu0 %v307
  %435 = vmatprep.mubr.bf16.mxu0 %v116
  %436 = vmatmul.mubr.bf16.gmra.mxu0 %v115
  %v437 = vpop.f32.mrf.mxu0
  %v438 = vadd.f32 %v398, %v437
  %v439 = vpop.f32.mrf.mxu0
  %v440 = vpop.f32.mrf.mxu0
  %v441 = vpop.f32.mrf.mxu0
  %442 = vdwg.mxu0
  %443 = vmatprep.subr.bf16.mxu0 0
  %444 = vmatpush1.bf16.msra.mxu0 %v322
  %445 = vmatprep.subr.bf16.mxu0 0
  %446 = vmatpush1.bf16.msra.mxu0 %v321
  %447 = vmatprep.subr.bf16.mxu0 0
  %448 = vmatpush1.bf16.msra.mxu0 %v320
  %449 = vmatprep.subr.bf16.mxu0 0
  %450 = vmatpush1.bf16.msra.mxu0 %v319
  %451 = vmatprep.subr.bf16.mxu0 0
  %452 = vmatpush1.bf16.msra.mxu0 %v318
  %453 = vmatprep.subr.bf16.mxu0 0
  %454 = vmatpush1.bf16.msra.mxu0 %v317
  %455 = vmatprep.subr.bf16.mxu0 0
  %456 = vmatpush1.bf16.msra.mxu0 %v316
  %457 = vmatprep.subr.bf16.mxu0 0
  %458 = vmatpush1.bf16.msra.mxu0 %v315
  %459 = vmatprep.subr.bf16.mxu0 0
  %460 = vmatpush2.bf16.msra.mxu0 0
  %461 = vmatprep.subr.bf16.mxu0 0
  %462 = vmatpush2.bf16.msra.mxu0 0
  %463 = vmatprep.subr.bf16.mxu0 0
  %464 = vmatpush2.bf16.msra.mxu0 0
  %465 = vmatprep.subr.bf16.mxu0 0
  %466 = vmatpush2.bf16.msra.mxu0 0
  %467 = vmatprep.subr.bf16.mxu0 0
  %468 = vmatpush2.bf16.msra.mxu0 0
  %469 = vmatprep.subr.bf16.mxu0 0
  %470 = vmatpush2.bf16.msra.mxu0 0
  %471 = vmatprep.subr.bf16.mxu0 0
  %472 = vmatpush2.bf16.msra.mxu0 0
  %473 = vmatprep.subr.bf16.mxu0 0
  %474 = vmatpush2.bf16.msra.mxu0 0
  %475 = vmatprep.mubr.bf16.mxu0 0
  %476 = vmatmul.mubr.bf16.gmra.mxu0 %v117
  %v477 = vpop.f32.mrf.mxu0
  %v478 = vadd.f32 %v438, %v477
  %v479 = vpop.f32.mrf.mxu0
  %v480 = vpop.f32.mrf.mxu0
  %v481 = vpop.f32.mrf.mxu0
  %482 = vdwg.mxu0
  %v483 = vpack.c.bf16 %v478, %v478
  %484 = vst [vmem:[%s3] sm:$0xf] %v483
  // Predicated region
  $region14: #{nvidia_net_forward.10} parent=0 // pred_check
    _
  $region15: #{nvidia_net_forward.10} parent=0 // pred_check_branch
    %486 = sbr.rel (0) target = $region17
  $region16: #{nvidia_net_forward.10} parent=0 // pred_region
    _
  $region17: #{nvidia_net_forward.10} parent=0 // pred_fallthru
    _
  // Predicated region
  $region18: #{nvidia_net_forward.10} parent=0 // pred_check
    _
  $region19: #{nvidia_net_forward.10} parent=0 // pred_check_branch
    %488 = sbr.rel (0) target = $region21
  $region20: #{nvidia_net_forward.10} parent=0 // pred_region
    _
  $region21: #{nvidia_net_forward.10} parent=0 // pred_fallthru
    _

// kernel: nvidia_net_forward.11
$region0: #{nvidia_net_forward.11}
  #allocation0 [shape = 'u32[]', space=smem, size = 0x4, offset = 0x4, fixed_abs, tag = 'smem constant byte address 0x4 - core index']
  #allocation1 [shape = 'u32[144,128]{1,0:T(1,128)}', space=vmem, size = 0x12000, scoped, tag = 'internal scratch']
  %s0 = inlined_call_operand.vmem [shape: bf16[8,128], index: 0, kind: input, shape index: {}]
  %s1 = inlined_call_operand.vmem [shape: bf16[128,128], index: 1, kind: input, shape index: {}]
  %s2 = inlined_call_operand.vmem [shape: f32[1,128], index: 2, kind: input, shape index: {}]
  %s3 = inlined_call_operand.vmem [shape: bf16[128,128], index: 3, kind: input, shape index: {}]
  %s4 = inlined_call_operand.vmem [shape: f32[1,128], index: 4, kind: input, shape index: {}]
  %s5 = inlined_call_operand.vmem [shape: bf16[128,128], index: 5, kind: input, shape index: {}]
  %s6 = inlined_call_operand.vmem [shape: f32[1,128], index: 6, kind: input, shape index: {}]
  %s7 = inlined_call_operand.vmem [shape: bf16[128,128], index: 7, kind: input, shape index: {}]
  %s8 = inlined_call_operand.vmem [shape: f32[1,128], index: 8, kind: input, shape index: {}]
  %s9 = inlined_call_operand.vmem [shape: f32[8,128], index: 9, kind: output, shape index: {}]
  %s10 = sld [smem:[#allocation0]]
  $region46: #{nvidia_net_forward.11} parent=0
    _
  %s12 = ssub.s32 1, %s10
  %s13 = scalar_select 0, %s12, %s10
  // Predicated region
  $region2: #{nvidia_net_forward.11} parent=0 // pred_check
    _
  $region3: #{nvidia_net_forward.11} parent=0 // pred_check_branch
    %15 = sbr.rel (0) target = $region5
  $region4: #{nvidia_net_forward.11} parent=0 // pred_region
    _
  $region5: #{nvidia_net_forward.11} parent=0 // pred_fallthru
    _
  // Predicated region
  $region6: #{nvidia_net_forward.11} parent=0 // pred_check
    _
  $region7: #{nvidia_net_forward.11} parent=0 // pred_check_branch
    %17 = sbr.rel (0) target = $region9
  $region8: #{nvidia_net_forward.11} parent=0 // pred_region
    _
  $region9: #{nvidia_net_forward.11} parent=0 // pred_fallthru
    _
  // Predicated region
  $region10: #{nvidia_net_forward.11} parent=0 // pred_check
    _
  $region11: #{nvidia_net_forward.11} parent=0 // pred_check_branch
    %19 = sbr.rel (0) target = $region13
  $region12: #{nvidia_net_forward.11} parent=0 // pred_region
    _
  $region13: #{nvidia_net_forward.11} parent=0 // pred_fallthru
    _
  // Predicated region
  $region14: #{nvidia_net_forward.11} parent=0 // pred_check
    _
  $region15: #{nvidia_net_forward.11} parent=0 // pred_check_branch
    %21 = sbr.rel (0) target = $region17
  $region16: #{nvidia_net_forward.11} parent=0 // pred_region
    _
  $region17: #{nvidia_net_forward.11} parent=0 // pred_fallthru
    _
  // Predicated region
  $region18: #{nvidia_net_forward.11} parent=0 // pred_check
    _
  $region19: #{nvidia_net_forward.11} parent=0 // pred_check_branch
    %23 = sbr.rel (0) target = $region21
  $region20: #{nvidia_net_forward.11} parent=0 // pred_region
    _
  $region21: #{nvidia_net_forward.11} parent=0 // pred_fallthru
    _
  // Predicated region
  $region22: #{nvidia_net_forward.11} parent=0 // pred_check
    _
  $region23: #{nvidia_net_forward.11} parent=0 // pred_check_branch
    %25 = sbr.rel (0) target = $region25
  $region24: #{nvidia_net_forward.11} parent=0 // pred_region
    _
  $region25: #{nvidia_net_forward.11} parent=0 // pred_fallthru
    _
  // Predicated region
  $region26: #{nvidia_net_forward.11} parent=0 // pred_check
    _
  $region27: #{nvidia_net_forward.11} parent=0 // pred_check_branch
    %27 = sbr.rel (0) target = $region29
  $region28: #{nvidia_net_forward.11} parent=0 // pred_region
    _
  $region29: #{nvidia_net_forward.11} parent=0 // pred_fallthru
    _
  // Predicated region
  $region30: #{nvidia_net_forward.11} parent=0 // pred_check
    _
  $region31: #{nvidia_net_forward.11} parent=0 // pred_check_branch
    %29 = sbr.rel (0) target = $region33
  $region32: #{nvidia_net_forward.11} parent=0 // pred_region
    _
  $region33: #{nvidia_net_forward.11} parent=0 // pred_fallthru
    _
  // Predicated region
  $region34: #{nvidia_net_forward.11} parent=0 // pred_check
    _
  $region35: #{nvidia_net_forward.11} parent=0 // pred_check_branch
    %31 = sbr.rel (0) target = $region37
  $region36: #{nvidia_net_forward.11} parent=0 // pred_region
    _
  $region37: #{nvidia_net_forward.11} parent=0 // pred_fallthru
    _
  %v33 = vld [vmem:[%s0] sm:$0xf]
  %v34 = vld [vmem:[%s1] sm:$0xf]
  %v35 = vld [vmem:[%s1 + $0x4] sm:$0xf]
  %v36 = vld [vmem:[%s1 + $0x8] sm:$0xf]
  %v37 = vld [vmem:[%s1 + $0xc] sm:$0xf]
  %v38 = vld [vmem:[%s1 + $0x10] sm:$0xf]
  %v39 = vld [vmem:[%s1 + $0x14] sm:$0xf]
  %v40 = vld [vmem:[%s1 + $0x18] sm:$0xf]
  %v41 = vld [vmem:[%s1 + $0x1c] sm:$0xf]
  %v42 = vld [vmem:[%s1 + $0x20] sm:$0xf]
  %v43 = vld [vmem:[%s1 + $0x24] sm:$0xf]
  %v44 = vld [vmem:[%s1 + $0x28] sm:$0xf]
  %v45 = vld [vmem:[%s1 + $0x2c] sm:$0xf]
  %v46 = vld [vmem:[%s1 + $0x30] sm:$0xf]
  %v47 = vld [vmem:[%s1 + $0x34] sm:$0xf]
  %v48 = vld [vmem:[%s1 + $0x38] sm:$0xf]
  %v49 = vld [vmem:[%s1 + $0x3c] sm:$0xf]
  %v50 = vld [vmem:[%s2] sm:$0x1]
  %v52 = vlaneseq
  %v53 = vshrl.u32 %v52, 7
  %v54 = vsub.s32 0, %v53
  %v55 = vrot.slane %v50, %v54
  %v73 = vunpack.c.l.b16 %v34
  %v74 = vunpack.c.l.b16 %v35
  %v75 = vunpack.c.l.b16 %v36
  %v76 = vunpack.c.l.b16 %v37
  %v77 = vunpack.c.l.b16 %v38
  %v78 = vunpack.c.l.b16 %v39
  %v79 = vunpack.c.l.b16 %v40
  %v80 = vunpack.c.l.b16 %v41
  %v81 = vunpack.c.l.b16 %v42
  %v82 = vunpack.c.l.b16 %v43
  %v83 = vunpack.c.l.b16 %v44
  %v84 = vunpack.c.l.b16 %v45
  %v85 = vunpack.c.l.b16 %v46
  %v86 = vunpack.c.l.b16 %v47
  %v87 = vunpack.c.l.b16 %v48
  %v88 = vunpack.c.l.b16 %v49
  %v89 = vpack.c.b16 %v74, %v73
  %v90 = vpack.c.b16 %v76, %v75
  %v91 = vpack.c.b16 %v78, %v77
  %v92 = vpack.c.b16 %v80, %v79
  %v93 = vpack.c.b16 %v82, %v81
  %v94 = vpack.c.b16 %v84, %v83
  %v95 = vpack.c.b16 %v86, %v85
  %v96 = vpack.c.b16 %v88, %v87
  %105 = vmatprep.subr.bf16.mxu0 0
  %106 = vmatpush1.bf16.msra.mxu0 %v96
  %107 = vmatprep.subr.bf16.mxu0 0
  %108 = vmatpush1.bf16.msra.mxu0 %v95
  %109 = vmatprep.subr.bf16.mxu0 0
  %110 = vmatpush1.bf16.msra.mxu0 %v94
  %111 = vmatprep.subr.bf16.mxu0 0
  %112 = vmatpush1.bf16.msra.mxu0 %v93
  %113 = vmatprep.subr.bf16.mxu0 0
  %114 = vmatpush1.bf16.msra.mxu0 %v92
  %115 = vmatprep.subr.bf16.mxu0 0
  %116 = vmatpush1.bf16.msra.mxu0 %v91
  %117 = vmatprep.subr.bf16.mxu0 0
  %118 = vmatpush1.bf16.msra.mxu0 %v90
  %119 = vmatprep.subr.bf16.mxu0 0
  %120 = vmatpush1.bf16.msra.mxu0 %v89
  %121 = vmatprep.subr.bf16.mxu0 0
  %122 = vmatpush2.bf16.msra.mxu0 0
  %123 = vmatprep.subr.bf16.mxu0 0
  %124 = vmatpush2.bf16.msra.mxu0 0
  %125 = vmatprep.subr.bf16.mxu0 0
  %126 = vmatpush2.bf16.msra.mxu0 0
  %127 = vmatprep.subr.bf16.mxu0 0
  %128 = vmatpush2.bf16.msra.mxu0 0
  %129 = vmatprep.subr.bf16.mxu0 0
  %130 = vmatpush2.bf16.msra.mxu0 0
  %131 = vmatprep.subr.bf16.mxu0 0
  %132 = vmatpush2.bf16.msra.mxu0 0
  %133 = vmatprep.subr.bf16.mxu0 0
  %134 = vmatpush2.bf16.msra.mxu0 0
  %135 = vmatprep.subr.bf16.mxu0 0
  %136 = vmatpush2.bf16.msra.mxu0 0
  %137 = vmatprep.mubr.bf16.mxu0 0
  %138 = vmatmul.mubr.bf16.gmra.mxu0 %v33
  %v139 = vpop.f32.mrf.mxu0
  %v140 = vadd.f32 %v55, %v139
  %v141 = vpop.f32.mrf.mxu0
  %v142 = vpop.f32.mrf.mxu0
  %v143 = vpop.f32.mrf.mxu0
  %144 = vdwg.mxu0
  %vm145 = vcmp.gt.f32.partialorder %v140, 0.0
  %v146 = vmin.f32 %v140, 0.0
  %v147 = vmul.f32 %v146, 1.442695
  %v148 = vpow.pop %v147
  %v149 = vsub.f32 %v148, 1.0
  %v150 = vsel %vm145, %v140, %v149
  %v151 = vpack.c.bf16 %v150, %v150
  %v152 = vld [vmem:[%s3] sm:$0xf]
  %v153 = vld [vmem:[%s3 + $0x4] sm:$0xf]
  %v154 = vld [vmem:[%s3 + $0x8] sm:$0xf]
  %v155 = vld [vmem:[%s3 + $0xc] sm:$0xf]
  %v156 = vld [vmem:[%s3 + $0x10] sm:$0xf]
  %v157 = vld [vmem:[%s3 + $0x14] sm:$0xf]
  %v158 = vld [vmem:[%s3 + $0x18] sm:$0xf]
  %v159 = vld [vmem:[%s3 + $0x1c] sm:$0xf]
  %v160 = vld [vmem:[%s3 + $0x20] sm:$0xf]
  %v161 = vld [vmem:[%s3 + $0x24] sm:$0xf]
  %v162 = vld [vmem:[%s3 + $0x28] sm:$0xf]
  %v163 = vld [vmem:[%s3 + $0x2c] sm:$0xf]
  %v164 = vld [vmem:[%s3 + $0x30] sm:$0xf]
  %v165 = vld [vmem:[%s3 + $0x34] sm:$0xf]
  %v166 = vld [vmem:[%s3 + $0x38] sm:$0xf]
  %v167 = vld [vmem:[%s3 + $0x3c] sm:$0xf]
  %v168 = vld [vmem:[%s4] sm:$0x1]
  %v170 = vlaneseq
  %v171 = vshrl.u32 %v170, 7
  %v172 = vsub.s32 0, %v171
  %v173 = vrot.slane %v168, %v172
  %v191 = vunpack.c.l.b16 %v152
  %v192 = vunpack.c.l.b16 %v153
  %v193 = vunpack.c.l.b16 %v154
  %v194 = vunpack.c.l.b16 %v155
  %v195 = vunpack.c.l.b16 %v156
  %v196 = vunpack.c.l.b16 %v157
  %v197 = vunpack.c.l.b16 %v158
  %v198 = vunpack.c.l.b16 %v159
  %v199 = vunpack.c.l.b16 %v160
  %v200 = vunpack.c.l.b16 %v161
  %v201 = vunpack.c.l.b16 %v162
  %v202 = vunpack.c.l.b16 %v163
  %v203 = vunpack.c.l.b16 %v164
  %v204 = vunpack.c.l.b16 %v165
  %v205 = vunpack.c.l.b16 %v166
  %v206 = vunpack.c.l.b16 %v167
  %v207 = vpack.c.b16 %v192, %v191
  %v208 = vpack.c.b16 %v194, %v193
  %v209 = vpack.c.b16 %v196, %v195
  %v210 = vpack.c.b16 %v198, %v197
  %v211 = vpack.c.b16 %v200, %v199
  %v212 = vpack.c.b16 %v202, %v201
  %v213 = vpack.c.b16 %v204, %v203
  %v214 = vpack.c.b16 %v206, %v205
  %223 = vmatprep.subr.bf16.mxu0 0
  %224 = vmatpush1.bf16.msra.mxu0 %v214
  %225 = vmatprep.subr.bf16.mxu0 0
  %226 = vmatpush1.bf16.msra.mxu0 %v213
  %227 = vmatprep.subr.bf16.mxu0 0
  %228 = vmatpush1.bf16.msra.mxu0 %v212
  %229 = vmatprep.subr.bf16.mxu0 0
  %230 = vmatpush1.bf16.msra.mxu0 %v211
  %231 = vmatprep.subr.bf16.mxu0 0
  %232 = vmatpush1.bf16.msra.mxu0 %v210
  %233 = vmatprep.subr.bf16.mxu0 0
  %234 = vmatpush1.bf16.msra.mxu0 %v209
  %235 = vmatprep.subr.bf16.mxu0 0
  %236 = vmatpush1.bf16.msra.mxu0 %v208
  %237 = vmatprep.subr.bf16.mxu0 0
  %238 = vmatpush1.bf16.msra.mxu0 %v207
  %239 = vmatprep.subr.bf16.mxu0 0
  %240 = vmatpush2.bf16.msra.mxu0 0
  %241 = vmatprep.subr.bf16.mxu0 0
  %242 = vmatpush2.bf16.msra.mxu0 0
  %243 = vmatprep.subr.bf16.mxu0 0
  %244 = vmatpush2.bf16.msra.mxu0 0
  %245 = vmatprep.subr.bf16.mxu0 0
  %246 = vmatpush2.bf16.msra.mxu0 0
  %247 = vmatprep.subr.bf16.mxu0 0
  %248 = vmatpush2.bf16.msra.mxu0 0
  %249 = vmatprep.subr.bf16.mxu0 0
  %250 = vmatpush2.bf16.msra.mxu0 0
  %251 = vmatprep.subr.bf16.mxu0 0
  %252 = vmatpush2.bf16.msra.mxu0 0
  %253 = vmatprep.subr.bf16.mxu0 0
  %254 = vmatpush2.bf16.msra.mxu0 0
  %255 = vmatprep.mubr.bf16.mxu0 0
  %256 = vmatmul.mubr.bf16.gmra.mxu0 %v151
  %v257 = vpop.f32.mrf.mxu0
  %v258 = vadd.f32 %v173, %v257
  %v259 = vpop.f32.mrf.mxu0
  %v260 = vpop.f32.mrf.mxu0
  %v261 = vpop.f32.mrf.mxu0
  %262 = vdwg.mxu0
  %vm263 = vcmp.gt.f32.partialorder %v258, 0.0
  %v264 = vmin.f32 %v258, 0.0
  %v265 = vmul.f32 %v264, 1.442695
  %v266 = vpow.pop %v265
  %v267 = vsub.f32 %v266, 1.0
  %v268 = vsel %vm263, %v258, %v267
  %v269 = vpack.c.bf16 %v268, %v268
  %v270 = vld [vmem:[%s5] sm:$0xf]
  %v271 = vld [vmem:[%s5 + $0x4] sm:$0xf]
  %v272 = vld [vmem:[%s5 + $0x8] sm:$0xf]
  %v273 = vld [vmem:[%s5 + $0xc] sm:$0xf]
  %v274 = vld [vmem:[%s5 + $0x10] sm:$0xf]
  %v275 = vld [vmem:[%s5 + $0x14] sm:$0xf]
  %v276 = vld [vmem:[%s5 + $0x18] sm:$0xf]
  %v277 = vld [vmem:[%s5 + $0x1c] sm:$0xf]
  %v278 = vld [vmem:[%s5 + $0x20] sm:$0xf]
  %v279 = vld [vmem:[%s5 + $0x24] sm:$0xf]
  %v280 = vld [vmem:[%s5 + $0x28] sm:$0xf]
  %v281 = vld [vmem:[%s5 + $0x2c] sm:$0xf]
  %v282 = vld [vmem:[%s5 + $0x30] sm:$0xf]
  %v283 = vld [vmem:[%s5 + $0x34] sm:$0xf]
  %v284 = vld [vmem:[%s5 + $0x38] sm:$0xf]
  %v285 = vld [vmem:[%s5 + $0x3c] sm:$0xf]
  %v286 = vld [vmem:[%s6] sm:$0x1]
  %v288 = vlaneseq
  %v289 = vshrl.u32 %v288, 7
  %v290 = vsub.s32 0, %v289
  %v291 = vrot.slane %v286, %v290
  %v309 = vunpack.c.l.b16 %v270
  %v310 = vunpack.c.l.b16 %v271
  %v311 = vunpack.c.l.b16 %v272
  %v312 = vunpack.c.l.b16 %v273
  %v313 = vunpack.c.l.b16 %v274
  %v314 = vunpack.c.l.b16 %v275
  %v315 = vunpack.c.l.b16 %v276
  %v316 = vunpack.c.l.b16 %v277
  %v317 = vunpack.c.l.b16 %v278
  %v318 = vunpack.c.l.b16 %v279
  %v319 = vunpack.c.l.b16 %v280
  %v320 = vunpack.c.l.b16 %v281
  %v321 = vunpack.c.l.b16 %v282
  %v322 = vunpack.c.l.b16 %v283
  %v323 = vunpack.c.l.b16 %v284
  %v324 = vunpack.c.l.b16 %v285
  %v325 = vpack.c.b16 %v310, %v309
  %v326 = vpack.c.b16 %v312, %v311
  %v327 = vpack.c.b16 %v314, %v313
  %v328 = vpack.c.b16 %v316, %v315
  %v329 = vpack.c.b16 %v318, %v317
  %v330 = vpack.c.b16 %v320, %v319
  %v331 = vpack.c.b16 %v322, %v321
  %v332 = vpack.c.b16 %v324, %v323
  %341 = vmatprep.subr.bf16.mxu0 0
  %342 = vmatpush1.bf16.msra.mxu0 %v332
  %343 = vmatprep.subr.bf16.mxu0 0
  %344 = vmatpush1.bf16.msra.mxu0 %v331
  %345 = vmatprep.subr.bf16.mxu0 0
  %346 = vmatpush1.bf16.msra.mxu0 %v330
  %347 = vmatprep.subr.bf16.mxu0 0
  %348 = vmatpush1.bf16.msra.mxu0 %v329
  %349 = vmatprep.subr.bf16.mxu0 0
  %350 = vmatpush1.bf16.msra.mxu0 %v328
  %351 = vmatprep.subr.bf16.mxu0 0
  %352 = vmatpush1.bf16.msra.mxu0 %v327
  %353 = vmatprep.subr.bf16.mxu0 0
  %354 = vmatpush1.bf16.msra.mxu0 %v326
  %355 = vmatprep.subr.bf16.mxu0 0
  %356 = vmatpush1.bf16.msra.mxu0 %v325
  %357 = vmatprep.subr.bf16.mxu0 0
  %358 = vmatpush2.bf16.msra.mxu0 0
  %359 = vmatprep.subr.bf16.mxu0 0
  %360 = vmatpush2.bf16.msra.mxu0 0
  %361 = vmatprep.subr.bf16.mxu0 0
  %362 = vmatpush2.bf16.msra.mxu0 0
  %363 = vmatprep.subr.bf16.mxu0 0
  %364 = vmatpush2.bf16.msra.mxu0 0
  %365 = vmatprep.subr.bf16.mxu0 0
  %366 = vmatpush2.bf16.msra.mxu0 0
  %367 = vmatprep.subr.bf16.mxu0 0
  %368 = vmatpush2.bf16.msra.mxu0 0
  %369 = vmatprep.subr.bf16.mxu0 0
  %370 = vmatpush2.bf16.msra.mxu0 0
  %371 = vmatprep.subr.bf16.mxu0 0
  %372 = vmatpush2.bf16.msra.mxu0 0
  %373 = vmatprep.mubr.bf16.mxu0 0
  %374 = vmatmul.mubr.bf16.gmra.mxu0 %v269
  %v375 = vpop.f32.mrf.mxu0
  %v376 = vadd.f32 %v291, %v375
  %v377 = vpop.f32.mrf.mxu0
  %v378 = vpop.f32.mrf.mxu0
  %v379 = vpop.f32.mrf.mxu0
  %380 = vdwg.mxu0
  %v381 = vpack.c.bf16 %v376, %v376
  %v382 = vld [vmem:[%s7] sm:$0xf]
  %v383 = vld [vmem:[%s7 + $0x4] sm:$0xf]
  %v384 = vld [vmem:[%s7 + $0x8] sm:$0xf]
  %v385 = vld [vmem:[%s7 + $0xc] sm:$0xf]
  %v386 = vld [vmem:[%s7 + $0x10] sm:$0xf]
  %v387 = vld [vmem:[%s7 + $0x14] sm:$0xf]
  %v388 = vld [vmem:[%s7 + $0x18] sm:$0xf]
  %v389 = vld [vmem:[%s7 + $0x1c] sm:$0xf]
  %v390 = vld [vmem:[%s7 + $0x20] sm:$0xf]
  %v391 = vld [vmem:[%s7 + $0x24] sm:$0xf]
  %v392 = vld [vmem:[%s7 + $0x28] sm:$0xf]
  %v393 = vld [vmem:[%s7 + $0x2c] sm:$0xf]
  %v394 = vld [vmem:[%s7 + $0x30] sm:$0xf]
  %v395 = vld [vmem:[%s7 + $0x34] sm:$0xf]
  %v396 = vld [vmem:[%s7 + $0x38] sm:$0xf]
  %v397 = vld [vmem:[%s7 + $0x3c] sm:$0xf]
  %v398 = vld [vmem:[%s8] sm:$0x1]
  %v400 = vlaneseq
  %v401 = vshrl.u32 %v400, 7
  %v402 = vsub.s32 0, %v401
  %v403 = vrot.slane %v398, %v402
  %v421 = vunpack.c.l.b16 %v382
  %v422 = vunpack.c.l.b16 %v383
  %v423 = vunpack.c.l.b16 %v384
  %v424 = vunpack.c.l.b16 %v385
  %v425 = vunpack.c.l.b16 %v386
  %v426 = vunpack.c.l.b16 %v387
  %v427 = vunpack.c.l.b16 %v388
  %v428 = vunpack.c.l.b16 %v389
  %v429 = vunpack.c.l.b16 %v390
  %v430 = vunpack.c.l.b16 %v391
  %v431 = vunpack.c.l.b16 %v392
  %v432 = vunpack.c.l.b16 %v393
  %v433 = vunpack.c.l.b16 %v394
  %v434 = vunpack.c.l.b16 %v395
  %v435 = vunpack.c.l.b16 %v396
  %v436 = vunpack.c.l.b16 %v397
  %v437 = vpack.c.b16 %v422, %v421
  %v438 = vpack.c.b16 %v424, %v423
  %v439 = vpack.c.b16 %v426, %v425
  %v440 = vpack.c.b16 %v428, %v427
  %v441 = vpack.c.b16 %v430, %v429
  %v442 = vpack.c.b16 %v432, %v431
  %v443 = vpack.c.b16 %v434, %v433
  %v444 = vpack.c.b16 %v436, %v435
  %453 = vmatprep.subr.bf16.mxu0 0
  %454 = vmatpush1.bf16.msra.mxu0 %v444
  %455 = vmatprep.subr.bf16.mxu0 0
  %456 = vmatpush1.bf16.msra.mxu0 %v443
  %457 = vmatprep.subr.bf16.mxu0 0
  %458 = vmatpush1.bf16.msra.mxu0 %v442
  %459 = vmatprep.subr.bf16.mxu0 0
  %460 = vmatpush1.bf16.msra.mxu0 %v441
  %461 = vmatprep.subr.bf16.mxu0 0
  %462 = vmatpush1.bf16.msra.mxu0 %v440
  %463 = vmatprep.subr.bf16.mxu0 0
  %464 = vmatpush1.bf16.msra.mxu0 %v439
  %465 = vmatprep.subr.bf16.mxu0 0
  %466 = vmatpush1.bf16.msra.mxu0 %v438
  %467 = vmatprep.subr.bf16.mxu0 0
  %468 = vmatpush1.bf16.msra.mxu0 %v437
  %469 = vmatprep.subr.bf16.mxu0 0
  %470 = vmatpush2.bf16.msra.mxu0 0
  %471 = vmatprep.subr.bf16.mxu0 0
  %472 = vmatpush2.bf16.msra.mxu0 0
  %473 = vmatprep.subr.bf16.mxu0 0
  %474 = vmatpush2.bf16.msra.mxu0 0
  %475 = vmatprep.subr.bf16.mxu0 0
  %476 = vmatpush2.bf16.msra.mxu0 0
  %477 = vmatprep.subr.bf16.mxu0 0
  %478 = vmatpush2.bf16.msra.mxu0 0
  %479 = vmatprep.subr.bf16.mxu0 0
  %480 = vmatpush2.bf16.msra.mxu0 0
  %481 = vmatprep.subr.bf16.mxu0 0
  %482 = vmatpush2.bf16.msra.mxu0 0
  %483 = vmatprep.subr.bf16.mxu0 0
  %484 = vmatpush2.bf16.msra.mxu0 0
  %485 = vmatprep.mubr.bf16.mxu0 0
  %486 = vmatmul.mubr.bf16.gmra.mxu0 %v381
  %v487 = vpop.f32.mrf.mxu0
  %v488 = vadd.f32 %v403, %v487
  %v489 = vpop.f32.mrf.mxu0
  %v490 = vpop.f32.mrf.mxu0
  %v491 = vpop.f32.mrf.mxu0
  %492 = vdwg.mxu0
  %493 = vst [vmem:[%s9] sm:$0xff] %v488
  // Predicated region
  $region38: #{nvidia_net_forward.11} parent=0 // pred_check
    _
  $region39: #{nvidia_net_forward.11} parent=0 // pred_check_branch
    %495 = sbr.rel (0) target = $region41
  $region40: #{nvidia_net_forward.11} parent=0 // pred_region
    _
  $region41: #{nvidia_net_forward.11} parent=0 // pred_fallthru
    _
  // Predicated region
  $region42: #{nvidia_net_forward.11} parent=0 // pred_check
    _
  $region43: #{nvidia_net_forward.11} parent=0 // pred_check_branch
    %497 = sbr.rel (0) target = $region45
  $region44: #{nvidia_net_forward.11} parent=0 // pred_region
    _
  $region45: #{nvidia_net_forward.11} parent=0 // pred_fallthru
    _

</llo_original>
